<compile_context>
chip_gen: v6e
topology: v6e:2x2x1
jax: 0.10.0
libtpu: 0.0.40
codegen_flags: <defaults>
</compile_context>

<pallas_src>
import math
from functools import partial

import jax
import jax.numpy as jnp
from jax import lax
from jax.experimental import pallas as pl
from jax.experimental.pallas import tpu as pltpu

_VMEM_LIMIT = 48 * 1024 * 1024  # fits v5e/v6e (128 MiB) and v7x (64 MiB) scoped VMEM


def _row_tile(m, target):
    """Largest tile <= target that divides m and is a multiple of 8 (sublane);
    fall back to the full dim (always a legal block) otherwise."""
    if m <= target:
        return m
    for t in range(target, 7, -1):
        if m % t == 0 and t % 8 == 0:
            return t
    return m


# ----------------------- Kernel 1: LayerNorm + Linear (in_proj) -----------------------
def _ln_linear_kernel(x_ref, g_ref, b_ref, w_ref, o_ref, *, eps):
    x = x_ref[...].astype(jnp.float32)
    mu = jnp.mean(x, axis=-1, keepdims=True)
    var = jnp.mean((x - mu) ** 2, axis=-1, keepdims=True)
    xn = (x - mu) * lax.rsqrt(var + eps)
    h = (xn * g_ref[...] + b_ref[...]).astype(jnp.bfloat16)          # bf16 MXU operand
    o_ref[...] = jnp.dot(h, w_ref[...],
                         preferred_element_type=jnp.float32).astype(o_ref.dtype)


def ln_linear(x, gamma, beta, w, eps=1e-5, tm_target=256, out_dtype=jnp.bfloat16):
    M, C = x.shape
    O = w.shape[1]
    tm = _row_tile(M, tm_target)
    return pl.pallas_call(
        partial(_ln_linear_kernel, eps=eps),
        out_shape=jax.ShapeDtypeStruct((M, O), out_dtype),
        grid_spec=pltpu.PrefetchScalarGridSpec(
            num_scalar_prefetch=0,
            grid=(M // tm,),
            in_specs=[
                pl.BlockSpec((tm, C), lambda i: (i, 0)),
                pl.BlockSpec((1, C), lambda i: (0, 0)),
                pl.BlockSpec((1, C), lambda i: (0, 0)),
                pl.BlockSpec((C, O), lambda i: (0, 0)),
            ],
            out_specs=pl.BlockSpec((tm, O), lambda i: (i, 0)),
        ),
        compiler_params=pltpu.CompilerParams(
            dimension_semantics=("parallel",),
            vmem_limit_bytes=_VMEM_LIMIT),
    )(x, gamma.reshape(1, C), beta.reshape(1, C), w)


# ----------------------- Kernel 2: depthwise 3x3 conv + bias + SiLU -----------------------
def _dwconv_silu_kernel(xp_ref, w_ref, b_ref, o_ref, *, H, W):
    w = w_ref[...].astype(jnp.float32)                    # (9, 1, D) taps, loaded once
    bias = b_ref[...].astype(jnp.float32)                 # (1, D)
    acc = jnp.zeros(o_ref.shape, jnp.float32)             # (H, W, D)
    for i in range(3):
        band = xp_ref[i:i + H, :, :].astype(jnp.float32)  # (H, W+2, D): one ref view per row offset
        for j in range(3):
            acc = acc + band[:, j:j + W, :] * w[i * 3 + j][None, :, :]
    acc = acc + bias[None, :, :]
    o_ref[...] = (acc * jax.nn.sigmoid(acc)).astype(o_ref.dtype)      # SiLU


def dwconv_silu(x, w, b, out_dtype=jnp.bfloat16):
    # x: (B, H, W, D), w: (9, 1, D) (3x3 taps, row-major), b: (1, D)
    # TODO(synk): for very large H*W*D, add an H-band grid axis to bound per-step VMEM.
    B, H, W, D = x.shape
    xp = jnp.pad(x, ((0, 0), (1, 1), (1, 1), (0, 0)))
    return pl.pallas_call(
        partial(_dwconv_silu_kernel, H=H, W=W),
        out_shape=jax.ShapeDtypeStruct((B, H, W, D), out_dtype),
        grid_spec=pltpu.PrefetchScalarGridSpec(
            num_scalar_prefetch=0,
            grid=(B,),
            in_specs=[
                pl.BlockSpec((None, H + 2, W + 2, D), lambda bb: (bb, 0, 0, 0)),
                pl.BlockSpec((9, 1, D), lambda bb: (0, 0, 0)),
                pl.BlockSpec((1, D), lambda bb: (0, 0)),
            ],
            out_specs=pl.BlockSpec((None, H, W, D), lambda bb: (bb, 0, 0, 0)),
        ),
        compiler_params=pltpu.CompilerParams(
            dimension_semantics=("parallel",),
            vmem_limit_bytes=_VMEM_LIMIT),
    )(xp, w, b)


# ----------------------- Kernel 3: fused SSM core (lane-dense, chunked scan) -----------------------
def _ssm_kernel(xs_ref, wd_ref, wbc_ref, dtb_ref, at_ref, ds_ref, y_ref,
                state_s, delta_s, *, n_state, t_chunk, reverse):
    N = n_state
    T = t_chunk
    Lt, D = xs_ref.shape

    # fresh SSM state at the first L-tile of each (batch, direction)
    @pl.when(pl.program_id(2) == 0)
    def _():
        state_s[...] = jnp.zeros_like(state_s)

    # dt_proj folded into x_proj: one lane-dense (Lt, D) x (D, D) matmul, then softplus.
    u_all = xs_ref[...]                                            # (Lt, D) bf16
    dpre = jnp.dot(u_all, wd_ref[...], preferred_element_type=jnp.float32)
    dpre = dpre + dtb_ref[...]                                     # (1, D) bias broadcast
    delta_s[...] = jnp.where(dpre > 20.0, dpre,
                             jnp.log1p(jnp.exp(jnp.minimum(dpre, 20.0))))

    a_t = at_ref[...]                                              # (N, D) = (-exp(A_log)).T
    d_skip = ds_ref[...]                                           # (1, D)
    wbc = wbc_ref[...]                                             # (2N, D) bf16
    nc = Lt // T

    def chunk_body(c, carry):
        r0 = pl.multiple_of(c * T, T)
        u_bf = xs_ref[pl.ds(r0, T), :]                             # (T, D) bf16
        u_c = u_bf.astype(jnp.float32)
        d_c = delta_s[pl.ds(r0, T), :]                             # (T, D) f32
        du_c = d_c * u_c                                           # (T, D)
        # B/C for the chunk with N in sublanes, time in lanes: (2N, T)
        bct = jnp.einsum('nd,td->nt', wbc, u_bf,
                         preferred_element_type=jnp.float32)
        st = state_s[...]                                          # (N, D) f32
        ys = [None] * T                                            # chunk rows, position order
        order = range(T - 1, -1, -1) if reverse else range(T)
        for t in order:                                            # static unrolled chunk
            d_t = d_c[t:t + 1, :]                                  # (1, D)
            du_t = du_c[t:t + 1, :]                                # (1, D)
            b_t = bct[:N, t:t + 1]                                 # (N, 1)
            c_t = bct[N:, t:t + 1]                                 # (N, 1)
            st = jnp.exp(d_t * a_t) * st + du_t * b_t              # (N, D)
            ys[t] = jnp.sum(st * c_t, axis=0, keepdims=True)       # (1, D)
        state_s[...] = st
        # one sublane-dense (T, D) store per chunk; skip term batched over the chunk
        y_chunk = jnp.concatenate(ys, axis=0) + u_c * d_skip
        y_ref[pl.ds(r0, T), :] = y_chunk.astype(y_ref.dtype)
        return carry

    if reverse:
        lax.fori_loop(0, nc, lambda i, c: chunk_body(nc - 1 - i, c), 0)
    else:
        lax.fori_loop(0, nc, chunk_body, 0)


def ssm_core(xs, wd, wbc, dtb, at, dsr, *, n_state, reverse,
             lt_target=512, out_dtype=jnp.bfloat16):
    # xs: (B, K, L, D) channels-last; wd: (K, D, D); wbc: (K, 2N, D);
    # dtb/at/dsr: (K, 1, D) / (K, N, D) / (K, 1, D).
    B, K, L, D = xs.shape
    N = n_state
    Lt = _row_tile(L, lt_target)          # L-tile (state carried across tiles in scratch)
    T = math.gcd(Lt, 8)                   # timestep chunk (sublane-aligned stores)
    nlt = L // Lt

    if reverse:
        # reverse directions: tiles, chunks and rows are walked back-to-front, and every
        # row's output is written at its own position -> no flip / flip-back in HBM.
        def io_map(b, k, lt):
            return (b, k, nlt - 1 - lt, 0)
    else:
        def io_map(b, k, lt):
            return (b, k, lt, 0)

    return pl.pallas_call(
        partial(_ssm_kernel, n_state=N, t_chunk=T, reverse=reverse),
        out_shape=jax.ShapeDtypeStruct((B, K, L, D), out_dtype),
        grid_spec=pltpu.PrefetchScalarGridSpec(
            num_scalar_prefetch=0,
            grid=(B, K, nlt),
            in_specs=[
                pl.BlockSpec((None, None, Lt, D), io_map),
                pl.BlockSpec((None, D, D), lambda b, k, lt: (k, 0, 0)),
                pl.BlockSpec((None, 2 * N, D), lambda b, k, lt: (k, 0, 0)),
                pl.BlockSpec((None, 1, D), lambda b, k, lt: (k, 0, 0)),
                pl.BlockSpec((None, N, D), lambda b, k, lt: (k, 0, 0)),
                pl.BlockSpec((None, 1, D), lambda b, k, lt: (k, 0, 0)),
            ],
            out_specs=pl.BlockSpec((None, None, Lt, D), io_map),
            scratch_shapes=[
                pltpu.VMEM((N, D), jnp.float32),    # SSM state (N in sublanes, D in lanes)
                pltpu.VMEM((Lt, D), jnp.float32),   # softplus(delta) for the current L-tile
            ],
        ),
        compiler_params=pltpu.CompilerParams(
            dimension_semantics=("parallel", "parallel", "arbitrary"),
            vmem_limit_bytes=_VMEM_LIMIT),
    )(xs, wd, wbc, dtb, at, dsr)


# ----------------------- Kernel 4: out_norm + SiLU gate + out_proj + residual -----------------------
def _out_stage_kernel(y_ref, z_ref, res_ref, g_ref, b_ref, w_ref, o_ref, *, eps):
    y = y_ref[...].astype(jnp.float32)
    mu = jnp.mean(y, axis=-1, keepdims=True)
    var = jnp.mean((y - mu) ** 2, axis=-1, keepdims=True)
    yn = (y - mu) * lax.rsqrt(var + eps)
    h = yn * g_ref[...] + b_ref[...]
    z = z_ref[...].astype(jnp.float32)
    h = (h * (z * jax.nn.sigmoid(z))).astype(jnp.bfloat16)          # y * SiLU(z), bf16 operand
    out = jnp.dot(h, w_ref[...], preferred_element_type=jnp.float32)
    o_ref[...] = (res_ref[...].astype(jnp.float32) + out).astype(o_ref.dtype)


def out_stage(y, z, res, gamma, beta, w, eps=1e-5, tm_target=256):
    M, D = y.shape
    C = w.shape[1]
    tm = _row_tile(M, tm_target)
    return pl.pallas_call(
        partial(_out_stage_kernel, eps=eps),
        out_shape=jax.ShapeDtypeStruct((M, C), res.dtype),
        grid_spec=pltpu.PrefetchScalarGridSpec(
            num_scalar_prefetch=0,
            grid=(M // tm,),
            in_specs=[
                pl.BlockSpec((tm, D), lambda i: (i, 0)),
                pl.BlockSpec((tm, D), lambda i: (i, 0)),
                pl.BlockSpec((tm, C), lambda i: (i, 0)),
                pl.BlockSpec((1, D), lambda i: (0, 0)),
                pl.BlockSpec((1, D), lambda i: (0, 0)),
                pl.BlockSpec((D, C), lambda i: (0, 0)),
            ],
            out_specs=pl.BlockSpec((tm, C), lambda i: (i, 0)),
        ),
        input_output_aliases={2: 0},      # residual buffer reused for the output
        compiler_params=pltpu.CompilerParams(
            dimension_semantics=("parallel",),
            vmem_limit_bytes=_VMEM_LIMIT),
    )(y, z, res, gamma.reshape(1, D), beta.reshape(1, D), w)


# ----------------------- Parameters & forward glue -----------------------
def init_vss_block_params(key, dim, d_state=16, expand=2):
    d_inner = expand * dim
    dt_rank = math.ceil(dim / 16)
    ks = jax.random.split(key, 6)
    s = 0.02
    p = {}
    p["ln1_g"] = jnp.ones((dim,), jnp.float32)
    p["ln1_b"] = jnp.zeros((dim,), jnp.float32)
    p["in_proj_w"] = jax.random.normal(ks[0], (dim, 2 * d_inner), jnp.float32) * s  # (in, out)
    p["conv_w"] = jax.random.normal(ks[1], (9, 1, d_inner), jnp.float32) * s        # 3x3 depthwise taps
    p["conv_b"] = jnp.zeros((1, d_inner), jnp.float32)
    p["x_proj_w"] = jax.random.normal(ks[2], (4, dt_rank + 2 * d_state, d_inner), jnp.float32) * s
    p["dt_w"] = jax.random.normal(ks[3], (4, d_inner, dt_rank), jnp.float32) * s
    p["dt_b"] = jax.random.uniform(ks[4], (4, d_inner, 1), jnp.float32, -4.0, -2.0)
    A = jnp.arange(1, d_state + 1, dtype=jnp.float32)
    p["A_logs"] = jnp.broadcast_to(jnp.log(A), (4, d_inner, d_state)) + 0.0          # S4D-real init
    p["Ds"] = jnp.ones((4, d_inner, 1), jnp.float32)
    p["outnorm_g"] = jnp.ones((d_inner,), jnp.float32)
    p["outnorm_b"] = jnp.zeros((d_inner,), jnp.float32)
    p["out_proj_w"] = jax.random.normal(ks[5], (d_inner, dim), jnp.float32) * s
    return p


def vss_block_forward(x, p, d_state, dt_rank):
    B, H, W, C = x.shape
    D = p["out_proj_w"].shape[0]          # d_inner
    M = B * H * W
    L = H * W
    N = d_state
    R = dt_rank

    res = x.reshape(M, C)
    # ln_1 + in_proj (bias=False)
    xz = ln_linear(res, p["ln1_g"], p["ln1_b"],
                   p["in_proj_w"].astype(jnp.bfloat16), eps=1e-5)          # (M, 2D) bf16
    x_part, z = xz[:, :D], xz[:, D:]

    # depthwise conv 3x3 + SiLU
    xc = dwconv_silu(x_part.reshape(B, H, W, D), p["conv_w"], p["conv_b"])  # (B,H,W,D) bf16

    # Scan inputs, channels-last (L, D): d0 row-major (l=h*W+w), d1 column-major (l=w*H+h).
    # Reverse directions (2/3) are run over the SAME tensors inside ssm_core.
    d0 = xc.reshape(B, L, D)
    d1 = jnp.transpose(xc, (0, 2, 1, 3)).reshape(B, L, D)
    xs2 = jnp.stack([d0, d1], axis=1)                                       # (B, 2, L, D)

    # Fold dt_proj into x_proj: delta = softplus(u @ (dt_w @ x_proj_w[:R]).T + dt_b)
    xw = p["x_proj_w"]                                                      # (4, R+2N, D)
    wd = jnp.swapaxes(jnp.einsum('kdr,krc->kdc', p["dt_w"], xw[:, :R, :]),
                      1, 2).astype(jnp.bfloat16)                            # (4, D, D)
    wbc = xw[:, R:, :].astype(jnp.bfloat16)                                 # (4, 2N, D)
    dtb = jnp.swapaxes(p["dt_b"], 1, 2)                                     # (4, 1, D)
    a_t = jnp.swapaxes(-jnp.exp(p["A_logs"]), 1, 2)                         # (4, N, D)
    dsr = jnp.swapaxes(p["Ds"], 1, 2)                                       # (4, 1, D)

    yf = ssm_core(xs2, wd[:2], wbc[:2], dtb[:2], a_t[:2], dsr[:2],
                  n_state=N, reverse=False)                                 # dirs 0,1
    yb = ssm_core(xs2, wd[2:], wbc[2:], dtb[2:], a_t[2:], dsr[2:],
                  n_state=N, reverse=True)                                  # dirs 2,3

    # merge the 4 directions (reverse-direction outputs already in original position order)
    y_row = yf[:, 0] + yb[:, 0]                                             # (B, L, D)
    y_col = yf[:, 1] + yb[:, 1]                                             # (B, L, D) col-major order
    y_col = jnp.transpose(y_col.reshape(B, W, H, D), (0, 2, 1, 3)).reshape(B, L, D)
    y = (y_row + y_col).reshape(M, D)

    # out_norm + gate + out_proj (+ residual); drop_path / dropout are identity (rate 0)
    out = out_stage(y, z, res, p["outnorm_g"], p["outnorm_b"],
                    p["out_proj_w"].astype(jnp.bfloat16), eps=1e-5)
    return out.reshape(B, H, W, C)


if __name__ == "__main__":
    B, H, W, dim = 2, 8, 8, 32
    depth, d_state = 2, 16
    dt_rank = math.ceil(dim / 16)

    key = jax.random.PRNGKey(0)
    kx, kp = jax.random.split(key)
    x = jax.random.normal(kx, (B, H, W, dim), jnp.float32)
    params = [init_vss_block_params(jax.random.fold_in(kp, i), dim, d_state)
              for i in range(depth)]

    @jax.jit
    def vss_layer(x):
        # VSSLayer.forward: sequentially apply `depth` VSSBlocks; downsample=None.
        for p in params:
            x = vss_block_forward(x, p, d_state, dt_rank)
        return x

    out = vss_layer(x)
    jax.block_until_ready(out)
    assert out.shape == (B, H, W, dim)
    assert bool(jnp.all(jnp.isfinite(out)))
    print("KERNEL_OK")
</pallas_src>

<mosaic_0001>
module attributes {stable_mosaic.version = 11 : i64} {
  func.func @_ln_linear_kernel(%arg0: i32, %arg1: memref<128x32xf32, #tpu.memory_space<vmem>>, %arg2: memref<1x32xf32, #tpu.memory_space<vmem>>, %arg3: memref<1x32xf32, #tpu.memory_space<vmem>>, %arg4: memref<32x128xbf16, #tpu.memory_space<vmem>>, %arg5: memref<128x128xbf16, #tpu.memory_space<vmem>>) attributes {dimension_semantics = [#tpu.dimension_semantics<parallel>], iteration_bounds = array<i64: 1>, scalar_prefetch = 0 : i64, scratch_operands = 0 : i64, tpu.core_type = #tpu.core_type<tc>, window_params = [{transform_indices = @transform_0, window_bounds = array<i64: 128, 32>}, {pipeline_mode = #tpu.pipeline_mode<synchronous>, transform_indices = @transform_1, window_bounds = array<i64: 1, 32>}, {pipeline_mode = #tpu.pipeline_mode<synchronous>, transform_indices = @transform_2, window_bounds = array<i64: 1, 32>}, {pipeline_mode = #tpu.pipeline_mode<synchronous>, transform_indices = @transform_3, window_bounds = array<i64: 32, 128>}, {transform_indices = @transform_4, window_bounds = array<i64: 128, 128>}]} {
    %c0 = arith.constant 0 : index
    %c0_0 = arith.constant 0 : index
    %0 = vector.load %arg1[%c0, %c0_0] : memref<128x32xf32, #tpu.memory_space<vmem>>, vector<128x32xf32>
    %cst = arith.constant dense<0.000000e+00> : vector<128xf32>
    %1 = vector.multi_reduction <add>, %0, %cst [1] : vector<128x32xf32> to vector<128xf32>
    %2 = vector.shape_cast %1 : vector<128xf32> to vector<128x1xf32>
    %cst_1 = arith.constant 3.200000e+01 : f32
    %3 = vector.broadcast %cst_1 : f32 to vector<128x1xf32>
    %4 = arith.divf %2, %3 : vector<128x1xf32>
    %5 = vector.broadcast %4 : vector<128x1xf32> to vector<128x32xf32>
    %6 = arith.subf %0, %5 : vector<128x32xf32>
    %7 = arith.mulf %6, %6 : vector<128x32xf32>
    %cst_2 = arith.constant dense<0.000000e+00> : vector<128xf32>
    %8 = vector.multi_reduction <add>, %7, %cst_2 [1] : vector<128x32xf32> to vector<128xf32>
    %9 = vector.shape_cast %8 : vector<128xf32> to vector<128x1xf32>
    %cst_3 = arith.constant 3.200000e+01 : f32
    %10 = vector.broadcast %cst_3 : f32 to vector<128x1xf32>
    %11 = arith.divf %9, %10 : vector<128x1xf32>
    %12 = vector.broadcast %4 : vector<128x1xf32> to vector<128x32xf32>
    %13 = arith.subf %0, %12 : vector<128x32xf32>
    %cst_4 = arith.constant 9.99999974E-6 : f32
    %14 = vector.broadcast %cst_4 : f32 to vector<128x1xf32>
    %15 = arith.addf %11, %14 : vector<128x1xf32>
    %16 = math.rsqrt %15 : vector<128x1xf32>
    %17 = vector.broadcast %16 : vector<128x1xf32> to vector<128x32xf32>
    %18 = arith.mulf %13, %17 : vector<128x32xf32>
    %c0_5 = arith.constant 0 : index
    %c0_6 = arith.constant 0 : index
    %19 = vector.load %arg2[%c0_5, %c0_6] : memref<1x32xf32, #tpu.memory_space<vmem>>, vector<1x32xf32>
    %20 = vector.broadcast %19 : vector<1x32xf32> to vector<128x32xf32>
    %21 = arith.mulf %18, %20 : vector<128x32xf32>
    %c0_7 = arith.constant 0 : index
    %c0_8 = arith.constant 0 : index
    %22 = vector.load %arg3[%c0_7, %c0_8] : memref<1x32xf32, #tpu.memory_space<vmem>>, vector<1x32xf32>
    %23 = vector.broadcast %22 : vector<1x32xf32> to vector<128x32xf32>
    %24 = arith.addf %21, %23 : vector<128x32xf32>
    %25 = arith.truncf %24 : vector<128x32xf32> to vector<128x32xbf16>
    %c0_9 = arith.constant 0 : index
    %c0_10 = arith.constant 0 : index
    %26 = vector.load %arg4[%c0_9, %c0_10] : memref<32x128xbf16, #tpu.memory_space<vmem>>, vector<32x128xbf16>
    %cst_11 = arith.constant dense<0.000000e+00> : vector<128x128xf32>
    %27 = tpu.matmul %25, %26, %cst_11 {dimension_numbers = #tpu.dot_dimension_numbers<[1], [0], [0], [1], [0, 0, 1, 1], [], []>} : vector<128x32xbf16>, vector<32x128xbf16>, vector<128x128xf32> -> vector<128x128xf32>
    %28 = arith.truncf %27 : vector<128x128xf32> to vector<128x128xbf16>
    %c0_12 = arith.constant 0 : index
    %c0_13 = arith.constant 0 : index
    %29 = vector.load %arg5[%c0_12, %c0_13] : memref<128x128xbf16, #tpu.memory_space<vmem>>, vector<128x128xbf16>
    tpu.vector_store %arg5[%c0_12, %c0_13], %28 {strides = array<i32>} : memref<128x128xbf16, #tpu.memory_space<vmem>>, vector<128x128xbf16>,
    return
  }
  func.func @transform_0(%arg0: i32) -> (i32, i32) {
    %c0_i32 = arith.constant 0 : i32
    %c0_i32_0 = arith.constant 0 : i32
    return %arg0, %c0_i32 : i32, i32
  }
  func.func @transform_1(%arg0: i32) -> (i32, i32) {
    %c0_i32 = arith.constant 0 : i32
    %c0_i32_0 = arith.constant 0 : i32
    %c0_i32_1 = arith.constant 0 : i32
    return %c0_i32, %c0_i32_0 : i32, i32
  }
  func.func @transform_2(%arg0: i32) -> (i32, i32) {
    %c0_i32 = arith.constant 0 : i32
    %c0_i32_0 = arith.constant 0 : i32
    %c0_i32_1 = arith.constant 0 : i32
    return %c0_i32, %c0_i32_0 : i32, i32
  }
  func.func @transform_3(%arg0: i32) -> (i32, i32) {
    %c0_i32 = arith.constant 0 : i32
    %c0_i32_0 = arith.constant 0 : i32
    %c0_i32_1 = arith.constant 0 : i32
    return %c0_i32, %c0_i32_0 : i32, i32
  }
  func.func @transform_4(%arg0: i32) -> (i32, i32) {
    %c0_i32 = arith.constant 0 : i32
    %c0_i32_0 = arith.constant 0 : i32
    return %arg0, %c0_i32 : i32, i32
  }
}

module attributes {stable_mosaic.version = 11 : i64} {
  func.func @_dwconv_silu_kernel(%arg0: i32, %arg1: memref<1x10x10x64xbf16, #tpu.memory_space<vmem>>, %arg2: memref<9x1x64xf32, #tpu.memory_space<vmem>>, %arg3: memref<1x64xf32, #tpu.memory_space<vmem>>, %arg4: memref<1x8x8x64xbf16, #tpu.memory_space<vmem>>) attributes {dimension_semantics = [#tpu.dimension_semantics<parallel>], iteration_bounds = array<i64: 2>, scalar_prefetch = 0 : i64, scratch_operands = 0 : i64, tpu.core_type = #tpu.core_type<tc>, window_params = [{transform_indices = @transform_0, window_bounds = array<i64: 1, 10, 10, 64>}, {pipeline_mode = #tpu.pipeline_mode<synchronous>, transform_indices = @transform_1, window_bounds = array<i64: 9, 1, 64>}, {pipeline_mode = #tpu.pipeline_mode<synchronous>, transform_indices = @transform_2, window_bounds = array<i64: 1, 64>}, {transform_indices = @transform_3, window_bounds = array<i64: 1, 8, 8, 64>}]} {
    %c0 = arith.constant 0 : index
    %c0_0 = arith.constant 0 : index
    %c0_1 = arith.constant 0 : index
    %0 = vector.load %arg2[%c0, %c0_0, %c0_1] : memref<9x1x64xf32, #tpu.memory_space<vmem>>, vector<9x1x64xf32>
    %c0_2 = arith.constant 0 : index
    %c0_3 = arith.constant 0 : index
    %1 = vector.load %arg3[%c0_2, %c0_3] : memref<1x64xf32, #tpu.memory_space<vmem>>, vector<1x64xf32>
    %cst = arith.constant 0.000000e+00 : f32
    %2 = vector.broadcast %cst : f32 to vector<8x8x64xf32>
    %c0_4 = arith.constant 0 : index
    %c0_5 = arith.constant 0 : index
    %c0_6 = arith.constant 0 : index
    %c0_7 = arith.constant 0 : index
    %3 = vector.load %arg1[%c0_4, %c0_5, %c0_6, %c0_7] : memref<1x10x10x64xbf16, #tpu.memory_space<vmem>>, vector<1x8x10x64xbf16>
    %4 = vector.shape_cast %3 : vector<1x8x10x64xbf16> to vector<8x10x64xbf16>
    %5 = arith.extf %4 : vector<8x10x64xbf16> to vector<8x10x64xf32>
    %6 = vector.extract_strided_slice %5 {offsets = [0, 0, 0], sizes = [8, 8, 64], strides = [1, 1, 1]} : vector<8x10x64xf32> to vector<8x8x64xf32>
    %7 = vector.extract_strided_slice %0 {offsets = [0, 0, 0], sizes = [1, 1, 64], strides = [1, 1, 1]} : vector<9x1x64xf32> to vector<1x1x64xf32>
    %8 = vector.shape_cast %7 : vector<1x1x64xf32> to vector<1x64xf32>
    %9 = vector.shape_cast %8 : vector<1x64xf32> to vector<1x1x64xf32>
    %10 = vector.broadcast %9 : vector<1x1x64xf32> to vector<8x8x64xf32>
    %11 = arith.mulf %6, %10 : vector<8x8x64xf32>
    %12 = arith.addf %2, %11 : vector<8x8x64xf32>
    %13 = vector.extract_strided_slice %5 {offsets = [0, 1, 0], sizes = [8, 8, 64], strides = [1, 1, 1]} : vector<8x10x64xf32> to vector<8x8x64xf32>
    %14 = vector.extract_strided_slice %0 {offsets = [1, 0, 0], sizes = [1, 1, 64], strides = [1, 1, 1]} : vector<9x1x64xf32> to vector<1x1x64xf32>
    %15 = vector.shape_cast %14 : vector<1x1x64xf32> to vector<1x64xf32>
    %16 = vector.shape_cast %15 : vector<1x64xf32> to vector<1x1x64xf32>
    %17 = vector.broadcast %16 : vector<1x1x64xf32> to vector<8x8x64xf32>
    %18 = arith.mulf %13, %17 : vector<8x8x64xf32>
    %19 = arith.addf %12, %18 : vector<8x8x64xf32>
    %20 = vector.extract_strided_slice %5 {offsets = [0, 2, 0], sizes = [8, 8, 64], strides = [1, 1, 1]} : vector<8x10x64xf32> to vector<8x8x64xf32>
    %21 = vector.extract_strided_slice %0 {offsets = [2, 0, 0], sizes = [1, 1, 64], strides = [1, 1, 1]} : vector<9x1x64xf32> to vector<1x1x64xf32>
    %22 = vector.shape_cast %21 : vector<1x1x64xf32> to vector<1x64xf32>
    %23 = vector.shape_cast %22 : vector<1x64xf32> to vector<1x1x64xf32>
    %24 = vector.broadcast %23 : vector<1x1x64xf32> to vector<8x8x64xf32>
    %25 = arith.mulf %20, %24 : vector<8x8x64xf32>
    %26 = arith.addf %19, %25 : vector<8x8x64xf32>
    %c0_8 = arith.constant 0 : index
    %c1 = arith.constant 1 : index
    %c0_9 = arith.constant 0 : index
    %c0_10 = arith.constant 0 : index
    %27 = vector.load %arg1[%c0_8, %c1, %c0_9, %c0_10] : memref<1x10x10x64xbf16, #tpu.memory_space<vmem>>, vector<1x8x10x64xbf16>
    %28 = vector.shape_cast %27 : vector<1x8x10x64xbf16> to vector<8x10x64xbf16>
    %29 = arith.extf %28 : vector<8x10x64xbf16> to vector<8x10x64xf32>
    %30 = vector.extract_strided_slice %29 {offsets = [0, 0, 0], sizes = [8, 8, 64], strides = [1, 1, 1]} : vector<8x10x64xf32> to vector<8x8x64xf32>
    %31 = vector.extract_strided_slice %0 {offsets = [3, 0, 0], sizes = [1, 1, 64], strides = [1, 1, 1]} : vector<9x1x64xf32> to vector<1x1x64xf32>
    %32 = vector.shape_cast %31 : vector<1x1x64xf32> to vector<1x64xf32>
    %33 = vector.shape_cast %32 : vector<1x64xf32> to vector<1x1x64xf32>
    %34 = vector.broadcast %33 : vector<1x1x64xf32> to vector<8x8x64xf32>
    %35 = arith.mulf %30, %34 : vector<8x8x64xf32>
    %36 = arith.addf %26, %35 : vector<8x8x64xf32>
    %37 = vector.extract_strided_slice %29 {offsets = [0, 1, 0], sizes = [8, 8, 64], strides = [1, 1, 1]} : vector<8x10x64xf32> to vector<8x8x64xf32>
    %38 = vector.extract_strided_slice %0 {offsets = [4, 0, 0], sizes = [1, 1, 64], strides = [1, 1, 1]} : vector<9x1x64xf32> to vector<1x1x64xf32>
    %39 = vector.shape_cast %38 : vector<1x1x64xf32> to vector<1x64xf32>
    %40 = vector.shape_cast %39 : vector<1x64xf32> to vector<1x1x64xf32>
    %41 = vector.broadcast %40 : vector<1x1x64xf32> to vector<8x8x64xf32>
    %42 = arith.mulf %37, %41 : vector<8x8x64xf32>
    %43 = arith.addf %36, %42 : vector<8x8x64xf32>
    %44 = vector.extract_strided_slice %29 {offsets = [0, 2, 0], sizes = [8, 8, 64], strides = [1, 1, 1]} : vector<8x10x64xf32> to vector<8x8x64xf32>
    %45 = vector.extract_strided_slice %0 {offsets = [5, 0, 0], sizes = [1, 1, 64], strides = [1, 1, 1]} : vector<9x1x64xf32> to vector<1x1x64xf32>
    %46 = vector.shape_cast %45 : vector<1x1x64xf32> to vector<1x64xf32>
    %47 = vector.shape_cast %46 : vector<1x64xf32> to vector<1x1x64xf32>
    %48 = vector.broadcast %47 : vector<1x1x64xf32> to vector<8x8x64xf32>
    %49 = arith.mulf %44, %48 : vector<8x8x64xf32>
    %50 = arith.addf %43, %49 : vector<8x8x64xf32>
    %c0_11 = arith.constant 0 : index
    %c2 = arith.constant 2 : index
    %c0_12 = arith.constant 0 : index
    %c0_13 = arith.constant 0 : index
    %51 = vector.load %arg1[%c0_11, %c2, %c0_12, %c0_13] : memref<1x10x10x64xbf16, #tpu.memory_space<vmem>>, vector<1x8x10x64xbf16>
    %52 = vector.shape_cast %51 : vector<1x8x10x64xbf16> to vector<8x10x64xbf16>
    %53 = arith.extf %52 : vector<8x10x64xbf16> to vector<8x10x64xf32>
    %54 = vector.extract_strided_slice %53 {offsets = [0, 0, 0], sizes = [8, 8, 64], strides = [1, 1, 1]} : vector<8x10x64xf32> to vector<8x8x64xf32>
    %55 = vector.extract_strided_slice %0 {offsets = [6, 0, 0], sizes = [1, 1, 64], strides = [1, 1, 1]} : vector<9x1x64xf32> to vector<1x1x64xf32>
    %56 = vector.shape_cast %55 : vector<1x1x64xf32> to vector<1x64xf32>
    %57 = vector.shape_cast %56 : vector<1x64xf32> to vector<1x1x64xf32>
    %58 = vector.broadcast %57 : vector<1x1x64xf32> to vector<8x8x64xf32>
    %59 = arith.mulf %54, %58 : vector<8x8x64xf32>
    %60 = arith.addf %50, %59 : vector<8x8x64xf32>
    %61 = vector.extract_strided_slice %53 {offsets = [0, 1, 0], sizes = [8, 8, 64], strides = [1, 1, 1]} : vector<8x10x64xf32> to vector<8x8x64xf32>
    %62 = vector.extract_strided_slice %0 {offsets = [7, 0, 0], sizes = [1, 1, 64], strides = [1, 1, 1]} : vector<9x1x64xf32> to vector<1x1x64xf32>
    %63 = vector.shape_cast %62 : vector<1x1x64xf32> to vector<1x64xf32>
    %64 = vector.shape_cast %63 : vector<1x64xf32> to vector<1x1x64xf32>
    %65 = vector.broadcast %64 : vector<1x1x64xf32> to vector<8x8x64xf32>
    %66 = arith.mulf %61, %65 : vector<8x8x64xf32>
    %67 = arith.addf %60, %66 : vector<8x8x64xf32>
    %68 = vector.extract_strided_slice %53 {offsets = [0, 2, 0], sizes = [8, 8, 64], strides = [1, 1, 1]} : vector<8x10x64xf32> to vector<8x8x64xf32>
    %69 = vector.extract_strided_slice %0 {offsets = [8, 0, 0], sizes = [1, 1, 64], strides = [1, 1, 1]} : vector<9x1x64xf32> to vector<1x1x64xf32>
    %70 = vector.shape_cast %69 : vector<1x1x64xf32> to vector<1x64xf32>
    %71 = vector.shape_cast %70 : vector<1x64xf32> to vector<1x1x64xf32>
    %72 = vector.broadcast %71 : vector<1x1x64xf32> to vector<8x8x64xf32>
    %73 = arith.mulf %68, %72 : vector<8x8x64xf32>
    %74 = arith.addf %67, %73 : vector<8x8x64xf32>
    %75 = vector.shape_cast %1 : vector<1x64xf32> to vector<1x1x64xf32>
    %76 = vector.broadcast %75 : vector<1x1x64xf32> to vector<8x8x64xf32>
    %77 = arith.addf %74, %76 : vector<8x8x64xf32>
    %78 = arith.negf %77 : vector<8x8x64xf32>
    %79 = math.exp %78 : vector<8x8x64xf32>
    %cst_14 = arith.constant 1.000000e+00 : f32
    %80 = vector.broadcast %cst_14 : f32 to vector<8x8x64xf32>
    %81 = arith.addf %80, %79 : vector<8x8x64xf32>
    %82 = arith.divf %80, %81 : vector<8x8x64xf32>
    %83 = arith.mulf %77, %82 : vector<8x8x64xf32>
    %84 = arith.truncf %83 : vector<8x8x64xf32> to vector<8x8x64xbf16>
    %c0_15 = arith.constant 0 : index
    %c0_16 = arith.constant 0 : index
    %c0_17 = arith.constant 0 : index
    %c0_18 = arith.constant 0 : index
    %85 = vector.load %arg4[%c0_15, %c0_16, %c0_17, %c0_18] : memref<1x8x8x64xbf16, #tpu.memory_space<vmem>>, vector<1x8x8x64xbf16>
    %86 = vector.shape_cast %85 : vector<1x8x8x64xbf16> to vector<8x8x64xbf16>
    %87 = vector.shape_cast %84 : vector<8x8x64xbf16> to vector<1x8x8x64xbf16>
    tpu.vector_store %arg4[%c0_15, %c0_16, %c0_17, %c0_18], %87 {strides = array<i32>} : memref<1x8x8x64xbf16, #tpu.memory_space<vmem>>, vector<1x8x8x64xbf16>,
    return
  }
  func.func @transform_0(%arg0: i32) -> (i32, i32, i32, i32) {
    %c0_i32 = arith.constant 0 : i32
    %c0_i32_0 = arith.constant 0 : i32
    %c0_i32_1 = arith.constant 0 : i32
    %c0_i32_2 = arith.constant 0 : i32
    return %arg0, %c0_i32, %c0_i32_0, %c0_i32_1 : i32, i32, i32, i32
  }
  func.func @transform_1(%arg0: i32) -> (i32, i32, i32) {
    %c0_i32 = arith.constant 0 : i32
    %c0_i32_0 = arith.constant 0 : i32
    %c0_i32_1 = arith.constant 0 : i32
    %c0_i32_2 = arith.constant 0 : i32
    return %c0_i32, %c0_i32_0, %c0_i32_1 : i32, i32, i32
  }
  func.func @transform_2(%arg0: i32) -> (i32, i32) {
    %c0_i32 = arith.constant 0 : i32
    %c0_i32_0 = arith.constant 0 : i32
    %c0_i32_1 = arith.constant 0 : i32
    return %c0_i32, %c0_i32_0 : i32, i32
  }
  func.func @transform_3(%arg0: i32) -> (i32, i32, i32, i32) {
    %c0_i32 = arith.constant 0 : i32
    %c0_i32_0 = arith.constant 0 : i32
    %c0_i32_1 = arith.constant 0 : i32
    %c0_i32_2 = arith.constant 0 : i32
    return %arg0, %c0_i32, %c0_i32_0, %c0_i32_1 : i32, i32, i32, i32
  }
}

module attributes {stable_mosaic.version = 11 : i64} {
  func.func @_ssm_kernel(%arg0: i32, %arg1: i32, %arg2: i32, %arg3: memref<1x1x64x64xbf16, #tpu.memory_space<vmem>>, %arg4: memref<1x64x64xbf16, #tpu.memory_space<vmem>>, %arg5: memref<1x32x64xbf16, #tpu.memory_space<vmem>>, %arg6: memref<1x1x64xf32, #tpu.memory_space<vmem>>, %arg7: memref<1x16x64xf32, #tpu.memory_space<vmem>>, %arg8: memref<1x1x64xf32, #tpu.memory_space<vmem>>, %arg9: memref<1x1x64x64xbf16, #tpu.memory_space<vmem>>, %arg10: memref<16x64xf32, #tpu.memory_space<vmem>>, %arg11: memref<64x64xf32, #tpu.memory_space<vmem>>) attributes {dimension_semantics = [#tpu.dimension_semantics<parallel>, #tpu.dimension_semantics<parallel>, #tpu.dimension_semantics<arbitrary>], iteration_bounds = array<i64: 2, 2, 1>, scalar_prefetch = 0 : i64, scratch_operands = 2 : i64, tpu.core_type = #tpu.core_type<tc>, window_params = [{transform_indices = @transform_0, window_bounds = array<i64: 1, 1, 64, 64>}, {transform_indices = @transform_1, window_bounds = array<i64: 1, 64, 64>}, {transform_indices = @transform_2, window_bounds = array<i64: 1, 32, 64>}, {transform_indices = @transform_3, window_bounds = array<i64: 1, 1, 64>}, {transform_indices = @transform_4, window_bounds = array<i64: 1, 16, 64>}, {transform_indices = @transform_5, window_bounds = array<i64: 1, 1, 64>}, {transform_indices = @transform_6, window_bounds = array<i64: 1, 1, 64, 64>}]} {
    %c0_i32 = arith.constant 0 : i32
    %0 = arith.cmpi eq, %arg2, %c0_i32 : i32
    %1 = arith.extui %0 : i1 to i32
    %c0_i32_0 = arith.constant 0 : i32
    %2 = arith.cmpi ne, %1, %c0_i32_0 : i32
    scf.if %2 {
      %cst_25 = arith.constant 0.000000e+00 : f32
      %27 = vector.broadcast %cst_25 : f32 to vector<16x64xf32>
      %c0_26 = arith.constant 0 : index
      %c0_27 = arith.constant 0 : index
      %28 = vector.load %arg10[%c0_26, %c0_27] : memref<16x64xf32, #tpu.memory_space<vmem>>, vector<16x64xf32>
      tpu.vector_store %arg10[%c0_26, %c0_27], %27 {strides = array<i32>} : memref<16x64xf32, #tpu.memory_space<vmem>>, vector<16x64xf32>,
    } else {
    }
    %c0 = arith.constant 0 : index
    %c0_1 = arith.constant 0 : index
    %c0_2 = arith.constant 0 : index
    %c0_3 = arith.constant 0 : index
    %3 = vector.load %arg3[%c0, %c0_1, %c0_2, %c0_3] : memref<1x1x64x64xbf16, #tpu.memory_space<vmem>>, vector<1x1x64x64xbf16>
    %4 = vector.shape_cast %3 : vector<1x1x64x64xbf16> to vector<64x64xbf16>
    %c0_4 = arith.constant 0 : index
    %c0_5 = arith.constant 0 : index
    %c0_6 = arith.constant 0 : index
    %5 = vector.load %arg4[%c0_4, %c0_5, %c0_6] : memref<1x64x64xbf16, #tpu.memory_space<vmem>>, vector<1x64x64xbf16>
    %6 = vector.shape_cast %5 : vector<1x64x64xbf16> to vector<64x64xbf16>
    %cst = arith.constant dense<0.000000e+00> : vector<64x64xf32>
    %7 = tpu.matmul %4, %6, %cst {dimension_numbers = #tpu.dot_dimension_numbers<[1], [0], [0], [1], [0, 0, 1, 1], [], []>} : vector<64x64xbf16>, vector<64x64xbf16>, vector<64x64xf32> -> vector<64x64xf32>
    %c0_7 = arith.constant 0 : index
    %c0_8 = arith.constant 0 : index
    %c0_9 = arith.constant 0 : index
    %8 = vector.load %arg6[%c0_7, %c0_8, %c0_9] : memref<1x1x64xf32, #tpu.memory_space<vmem>>, vector<1x1x64xf32>
    %9 = vector.shape_cast %8 : vector<1x1x64xf32> to vector<1x64xf32>
    %10 = vector.broadcast %9 : vector<1x64xf32> to vector<64x64xf32>
    %11 = arith.addf %7, %10 : vector<64x64xf32>
    %cst_10 = arith.constant 2.000000e+01 : f32
    %12 = vector.broadcast %cst_10 : f32 to vector<64x64xf32>
    %13 = arith.cmpf ogt, %11, %12 : vector<64x64xf32>
    %cst_11 = arith.constant 2.000000e+01 : f32
    %14 = vector.broadcast %cst_11 : f32 to vector<64x64xf32>
    %15 = arith.minimumf %11, %14 : vector<64x64xf32>
    %16 = math.exp %15 : vector<64x64xf32>
    %17 = math.log1p %16 : vector<64x64xf32>
    %18 = arith.select %13, %11, %17 : vector<64x64xi1>, vector<64x64xf32>
    %c0_12 = arith.constant 0 : index
    %c0_13 = arith.constant 0 : index
    %19 = vector.load %arg11[%c0_12, %c0_13] : memref<64x64xf32, #tpu.memory_space<vmem>>, vector<64x64xf32>
    tpu.vector_store %arg11[%c0_12, %c0_13], %18 {strides = array<i32>} : memref<64x64xf32, #tpu.memory_space<vmem>>, vector<64x64xf32>,
    %c0_14 = arith.constant 0 : index
    %c0_15 = arith.constant 0 : index
    %c0_16 = arith.constant 0 : index
    %20 = vector.load %arg7[%c0_14, %c0_15, %c0_16] : memref<1x16x64xf32, #tpu.memory_space<vmem>>, vector<1x16x64xf32>
    %21 = vector.shape_cast %20 : vector<1x16x64xf32> to vector<16x64xf32>
    %c0_17 = arith.constant 0 : index
    %c0_18 = arith.constant 0 : index
    %c0_19 = arith.constant 0 : index
    %22 = vector.load %arg8[%c0_17, %c0_18, %c0_19] : memref<1x1x64xf32, #tpu.memory_space<vmem>>, vector<1x1x64xf32>
    %23 = vector.shape_cast %22 : vector<1x1x64xf32> to vector<1x64xf32>
    %c0_20 = arith.constant 0 : index
    %c0_21 = arith.constant 0 : index
    %c0_22 = arith.constant 0 : index
    %24 = vector.load %arg5[%c0_20, %c0_21, %c0_22] : memref<1x32x64xbf16, #tpu.memory_space<vmem>>, vector<1x32x64xbf16>
    %25 = vector.shape_cast %24 : vector<1x32x64xbf16> to vector<32x64xbf16>
    %c0_i32_23 = arith.constant 0 : i32
    %c8_i32 = arith.constant 8 : i32
    %26 = arith.addi %c0_i32_23, %c8_i32 : i32
    %c1_i32 = arith.constant 1 : i32
    scf.for %arg12 = %c0_i32_23 to %26 step %c1_i32  : i32 {
      %c8_i32_25 = arith.constant 8 : i32
      %27 = arith.muli %arg12, %c8_i32_25 : i32
      %28 = tpu.assume_multiple %27, 8 : i32
      %c0_26 = arith.constant 0 : index
      %c0_27 = arith.constant 0 : index
      %29 = arith.index_cast %28 : i32 to index
      %c0_28 = arith.constant 0 : index
      %30 = vector.load %arg3[%c0_26, %c0_27, %29, %c0_28] : memref<1x1x64x64xbf16, #tpu.memory_space<vmem>>, vector<1x1x8x64xbf16>
      %31 = vector.shape_cast %30 : vector<1x1x8x64xbf16> to vector<8x64xbf16>
      %32 = arith.extf %31 : vector<8x64xbf16> to vector<8x64xf32>
      %33 = arith.index_cast %28 : i32 to index
      %c0_29 = arith.constant 0 : index
      %34 = vector.load %arg11[%33, %c0_29] : memref<64x64xf32, #tpu.memory_space<vmem>>, vector<8x64xf32>
      %35 = arith.mulf %34, %32 : vector<8x64xf32>
      "tpu.trace_start"() <{level = 10 : i32, message = "nd,td->nt"}> : () -> ()
      %cst_30 = arith.constant dense<0.000000e+00> : vector<32x8xf32>
      %36 = tpu.matmul %25, %31, %cst_30 {dimension_numbers = #tpu.dot_dimension_numbers<[1], [1], [0], [0], [0, 0, 1, 0], [], []>} : vector<32x64xbf16>, vector<8x64xbf16>, vector<32x8xf32> -> vector<32x8xf32>
      "tpu.trace_stop"() : () -> ()
      %c0_31 = arith.constant 0 : index
      %c0_32 = arith.constant 0 : index
      %37 = vector.load %arg10[%c0_31, %c0_32] : memref<16x64xf32, #tpu.memory_space<vmem>>, vector<16x64xf32>
      %38 = vector.extract_strided_slice %34 {offsets = [0, 0], sizes = [1, 64], strides = [1, 1]} : vector<8x64xf32> to vector<1x64xf32>
      %39 = vector.extract_strided_slice %35 {offsets = [0, 0], sizes = [1, 64], strides = [1, 1]} : vector<8x64xf32> to vector<1x64xf32>
      %40 = vector.extract_strided_slice %36 {offsets = [0, 0], sizes = [16, 1], strides = [1, 1]} : vector<32x8xf32> to vector<16x1xf32>
      %41 = vector.extract_strided_slice %36 {offsets = [16, 0], sizes = [16, 1], strides = [1, 1]} : vector<32x8xf32> to vector<16x1xf32>
      %42 = vector.broadcast %38 : vector<1x64xf32> to vector<16x64xf32>
      %43 = arith.mulf %42, %21 : vector<16x64xf32>
      %44 = math.exp %43 : vector<16x64xf32>
      %45 = arith.mulf %44, %37 : vector<16x64xf32>
      %46 = vector.broadcast %39 : vector<1x64xf32> to vector<16x64xf32>
      %47 = vector.broadcast %40 : vector<16x1xf32> to vector<16x64xf32>
      %48 = arith.mulf %46, %47 : vector<16x64xf32>
      %49 = arith.addf %45, %48 : vector<16x64xf32>
      %50 = vector.broadcast %41 : vector<16x1xf32> to vector<16x64xf32>
      %51 = arith.mulf %49, %50 : vector<16x64xf32>
      %cst_33 = arith.constant dense<0.000000e+00> : vector<64xf32>
      %52 = vector.multi_reduction <add>, %51, %cst_33 [0] : vector<16x64xf32> to vector<64xf32>
      %53 = vector.shape_cast %52 : vector<64xf32> to vector<1x64xf32>
      %54 = vector.extract_strided_slice %34 {offsets = [1, 0], sizes = [1, 64], strides = [1, 1]} : vector<8x64xf32> to vector<1x64xf32>
      %55 = vector.extract_strided_slice %35 {offsets = [1, 0], sizes = [1, 64], strides = [1, 1]} : vector<8x64xf32> to vector<1x64xf32>
      %56 = vector.extract_strided_slice %36 {offsets = [0, 1], sizes = [16, 1], strides = [1, 1]} : vector<32x8xf32> to vector<16x1xf32>
      %57 = vector.extract_strided_slice %36 {offsets = [16, 1], sizes = [16, 1], strides = [1, 1]} : vector<32x8xf32> to vector<16x1xf32>
      %58 = vector.broadcast %54 : vector<1x64xf32> to vector<16x64xf32>
      %59 = arith.mulf %58, %21 : vector<16x64xf32>
      %60 = math.exp %59 : vector<16x64xf32>
      %61 = arith.mulf %60, %49 : vector<16x64xf32>
      %62 = vector.broadcast %55 : vector<1x64xf32> to vector<16x64xf32>
      %63 = vector.broadcast %56 : vector<16x1xf32> to vector<16x64xf32>
      %64 = arith.mulf %62, %63 : vector<16x64xf32>
      %65 = arith.addf %61, %64 : vector<16x64xf32>
      %66 = vector.broadcast %57 : vector<16x1xf32> to vector<16x64xf32>
      %67 = arith.mulf %65, %66 : vector<16x64xf32>
      %cst_34 = arith.constant dense<0.000000e+00> : vector<64xf32>
      %68 = vector.multi_reduction <add>, %67, %cst_34 [0] : vector<16x64xf32> to vector<64xf32>
      %69 = vector.shape_cast %68 : vector<64xf32> to vector<1x64xf32>
      %70 = vector.extract_strided_slice %34 {offsets = [2, 0], sizes = [1, 64], strides = [1, 1]} : vector<8x64xf32> to vector<1x64xf32>
      %71 = vector.extract_strided_slice %35 {offsets = [2, 0], sizes = [1, 64], strides = [1, 1]} : vector<8x64xf32> to vector<1x64xf32>
      %72 = vector.extract_strided_slice %36 {offsets = [0, 2], sizes = [16, 1], strides = [1, 1]} : vector<32x8xf32> to vector<16x1xf32>
      %73 = vector.extract_strided_slice %36 {offsets = [16, 2], sizes = [16, 1], strides = [1, 1]} : vector<32x8xf32> to vector<16x1xf32>
      %74 = vector.broadcast %70 : vector<1x64xf32> to vector<16x64xf32>
      %75 = arith.mulf %74, %21 : vector<16x64xf32>
      %76 = math.exp %75 : vector<16x64xf32>
      %77 = arith.mulf %76, %65 : vector<16x64xf32>
      %78 = vector.broadcast %71 : vector<1x64xf32> to vector<16x64xf32>
      %79 = vector.broadcast %72 : vector<16x1xf32> to vector<16x64xf32>
      %80 = arith.mulf %78, %79 : vector<16x64xf32>
      %81 = arith.addf %77, %80 : vector<16x64xf32>
      %82 = vector.broadcast %73 : vector<16x1xf32> to vector<16x64xf32>
      %83 = arith.mulf %81, %82 : vector<16x64xf32>
      %cst_35 = arith.constant dense<0.000000e+00> : vector<64xf32>
      %84 = vector.multi_reduction <add>, %83, %cst_35 [0] : vector<16x64xf32> to vector<64xf32>
      %85 = vector.shape_cast %84 : vector<64xf32> to vector<1x64xf32>
      %86 = vector.extract_strided_slice %34 {offsets = [3, 0], sizes = [1, 64], strides = [1, 1]} : vector<8x64xf32> to vector<1x64xf32>
      %87 = vector.extract_strided_slice %35 {offsets = [3, 0], sizes = [1, 64], strides = [1, 1]} : vector<8x64xf32> to vector<1x64xf32>
      %88 = vector.extract_strided_slice %36 {offsets = [0, 3], sizes = [16, 1], strides = [1, 1]} : vector<32x8xf32> to vector<16x1xf32>
      %89 = vector.extract_strided_slice %36 {offsets = [16, 3], sizes = [16, 1], strides = [1, 1]} : vector<32x8xf32> to vector<16x1xf32>
      %90 = vector.broadcast %86 : vector<1x64xf32> to vector<16x64xf32>
      %91 = arith.mulf %90, %21 : vector<16x64xf32>
      %92 = math.exp %91 : vector<16x64xf32>
      %93 = arith.mulf %92, %81 : vector<16x64xf32>
      %94 = vector.broadcast %87 : vector<1x64xf32> to vector<16x64xf32>
      %95 = vector.broadcast %88 : vector<16x1xf32> to vector<16x64xf32>
      %96 = arith.mulf %94, %95 : vector<16x64xf32>
      %97 = arith.addf %93, %96 : vector<16x64xf32>
      %98 = vector.broadcast %89 : vector<16x1xf32> to vector<16x64xf32>
      %99 = arith.mulf %97, %98 : vector<16x64xf32>
      %cst_36 = arith.constant dense<0.000000e+00> : vector<64xf32>
      %100 = vector.multi_reduction <add>, %99, %cst_36 [0] : vector<16x64xf32> to vector<64xf32>
      %101 = vector.shape_cast %100 : vector<64xf32> to vector<1x64xf32>
      %102 = vector.extract_strided_slice %34 {offsets = [4, 0], sizes = [1, 64], strides = [1, 1]} : vector<8x64xf32> to vector<1x64xf32>
      %103 = vector.extract_strided_slice %35 {offsets = [4, 0], sizes = [1, 64], strides = [1, 1]} : vector<8x64xf32> to vector<1x64xf32>
      %104 = vector.extract_strided_slice %36 {offsets = [0, 4], sizes = [16, 1], strides = [1, 1]} : vector<32x8xf32> to vector<16x1xf32>
      %105 = vector.extract_strided_slice %36 {offsets = [16, 4], sizes = [16, 1], strides = [1, 1]} : vector<32x8xf32> to vector<16x1xf32>
      %106 = vector.broadcast %102 : vector<1x64xf32> to vector<16x64xf32>
      %107 = arith.mulf %106, %21 : vector<16x64xf32>
      %108 = math.exp %107 : vector<16x64xf32>
      %109 = arith.mulf %108, %97 : vector<16x64xf32>
      %110 = vector.broadcast %103 : vector<1x64xf32> to vector<16x64xf32>
      %111 = vector.broadcast %104 : vector<16x1xf32> to vector<16x64xf32>
      %112 = arith.mulf %110, %111 : vector<16x64xf32>
      %113 = arith.addf %109, %112 : vector<16x64xf32>
      %114 = vector.broadcast %105 : vector<16x1xf32> to vector<16x64xf32>
      %115 = arith.mulf %113, %114 : vector<16x64xf32>
      %cst_37 = arith.constant dense<0.000000e+00> : vector<64xf32>
      %116 = vector.multi_reduction <add>, %115, %cst_37 [0] : vector<16x64xf32> to vector<64xf32>
      %117 = vector.shape_cast %116 : vector<64xf32> to vector<1x64xf32>
      %118 = vector.extract_strided_slice %34 {offsets = [5, 0], sizes = [1, 64], strides = [1, 1]} : vector<8x64xf32> to vector<1x64xf32>
      %119 = vector.extract_strided_slice %35 {offsets = [5, 0], sizes = [1, 64], strides = [1, 1]} : vector<8x64xf32> to vector<1x64xf32>
      %120 = vector.extract_strided_slice %36 {offsets = [0, 5], sizes = [16, 1], strides = [1, 1]} : vector<32x8xf32> to vector<16x1xf32>
      %121 = vector.extract_strided_slice %36 {offsets = [16, 5], sizes = [16, 1], strides = [1, 1]} : vector<32x8xf32> to vector<16x1xf32>
      %122 = vector.broadcast %118 : vector<1x64xf32> to vector<16x64xf32>
      %123 = arith.mulf %122, %21 : vector<16x64xf32>
      %124 = math.exp %123 : vector<16x64xf32>
      %125 = arith.mulf %124, %113 : vector<16x64xf32>
      %126 = vector.broadcast %119 : vector<1x64xf32> to vector<16x64xf32>
      %127 = vector.broadcast %120 : vector<16x1xf32> to vector<16x64xf32>
      %128 = arith.mulf %126, %127 : vector<16x64xf32>
      %129 = arith.addf %125, %128 : vector<16x64xf32>
      %130 = vector.broadcast %121 : vector<16x1xf32> to vector<16x64xf32>
      %131 = arith.mulf %129, %130 : vector<16x64xf32>
      %cst_38 = arith.constant dense<0.000000e+00> : vector<64xf32>
      %132 = vector.multi_reduction <add>, %131, %cst_38 [0] : vector<16x64xf32> to vector<64xf32>
      %133 = vector.shape_cast %132 : vector<64xf32> to vector<1x64xf32>
      %134 = vector.extract_strided_slice %34 {offsets = [6, 0], sizes = [1, 64], strides = [1, 1]} : vector<8x64xf32> to vector<1x64xf32>
      %135 = vector.extract_strided_slice %35 {offsets = [6, 0], sizes = [1, 64], strides = [1, 1]} : vector<8x64xf32> to vector<1x64xf32>
      %136 = vector.extract_strided_slice %36 {offsets = [0, 6], sizes = [16, 1], strides = [1, 1]} : vector<32x8xf32> to vector<16x1xf32>
      %137 = vector.extract_strided_slice %36 {offsets = [16, 6], sizes = [16, 1], strides = [1, 1]} : vector<32x8xf32> to vector<16x1xf32>
      %138 = vector.broadcast %134 : vector<1x64xf32> to vector<16x64xf32>
      %139 = arith.mulf %138, %21 : vector<16x64xf32>
      %140 = math.exp %139 : vector<16x64xf32>
      %141 = arith.mulf %140, %129 : vector<16x64xf32>
      %142 = vector.broadcast %135 : vector<1x64xf32> to vector<16x64xf32>
      %143 = vector.broadcast %136 : vector<16x1xf32> to vector<16x64xf32>
      %144 = arith.mulf %142, %143 : vector<16x64xf32>
      %145 = arith.addf %141, %144 : vector<16x64xf32>
      %146 = vector.broadcast %137 : vector<16x1xf32> to vector<16x64xf32>
      %147 = arith.mulf %145, %146 : vector<16x64xf32>
      %cst_39 = arith.constant dense<0.000000e+00> : vector<64xf32>
      %148 = vector.multi_reduction <add>, %147, %cst_39 [0] : vector<16x64xf32> to vector<64xf32>
      %149 = vector.shape_cast %148 : vector<64xf32> to vector<1x64xf32>
      %150 = vector.extract_strided_slice %34 {offsets = [7, 0], sizes = [1, 64], strides = [1, 1]} : vector<8x64xf32> to vector<1x64xf32>
      %151 = vector.extract_strided_slice %35 {offsets = [7, 0], sizes = [1, 64], strides = [1, 1]} : vector<8x64xf32> to vector<1x64xf32>
      %152 = vector.extract_strided_slice %36 {offsets = [0, 7], sizes = [16, 1], strides = [1, 1]} : vector<32x8xf32> to vector<16x1xf32>
      %153 = vector.extract_strided_slice %36 {offsets = [16, 7], sizes = [16, 1], strides = [1, 1]} : vector<32x8xf32> to vector<16x1xf32>
      %154 = vector.broadcast %150 : vector<1x64xf32> to vector<16x64xf32>
      %155 = arith.mulf %154, %21 : vector<16x64xf32>
      %156 = math.exp %155 : vector<16x64xf32>
      %157 = arith.mulf %156, %145 : vector<16x64xf32>
      %158 = vector.broadcast %151 : vector<1x64xf32> to vector<16x64xf32>
      %159 = vector.broadcast %152 : vector<16x1xf32> to vector<16x64xf32>
      %160 = arith.mulf %158, %159 : vector<16x64xf32>
      %161 = arith.addf %157, %160 : vector<16x64xf32>
      %162 = vector.broadcast %153 : vector<16x1xf32> to vector<16x64xf32>
      %163 = arith.mulf %161, %162 : vector<16x64xf32>
      %cst_40 = arith.constant dense<0.000000e+00> : vector<64xf32>
      %164 = vector.multi_reduction <add>, %163, %cst_40 [0] : vector<16x64xf32> to vector<64xf32>
      %165 = vector.shape_cast %164 : vector<64xf32> to vector<1x64xf32>
      %c0_41 = arith.constant 0 : index
      %c0_42 = arith.constant 0 : index
      %166 = vector.load %arg10[%c0_41, %c0_42] : memref<16x64xf32, #tpu.memory_space<vmem>>, vector<16x64xf32>
      tpu.vector_store %arg10[%c0_41, %c0_42], %161 {strides = array<i32>} : memref<16x64xf32, #tpu.memory_space<vmem>>, vector<16x64xf32>,
      %167 = tpu.concatenate %53, %69, %85, %101, %117, %133, %149, %165 in 0 : vector<1x64xf32>, vector<1x64xf32>, vector<1x64xf32>, vector<1x64xf32>, vector<1x64xf32>, vector<1x64xf32>, vector<1x64xf32>, vector<1x64xf32> -> vector<8x64xf32>
      %168 = vector.broadcast %23 : vector<1x64xf32> to vector<8x64xf32>
      %169 = arith.mulf %32, %168 : vector<8x64xf32>
      %170 = arith.addf %167, %169 : vector<8x64xf32>
      %171 = arith.truncf %170 : vector<8x64xf32> to vector<8x64xbf16>
      %c0_43 = arith.constant 0 : index
      %c0_44 = arith.constant 0 : index
      %172 = arith.index_cast %28 : i32 to index
      %c0_45 = arith.constant 0 : index
      %173 = vector.load %arg9[%c0_43, %c0_44, %172, %c0_45] : memref<1x1x64x64xbf16, #tpu.memory_space<vmem>>, vector<1x1x8x64xbf16>
      %174 = vector.shape_cast %173 : vector<1x1x8x64xbf16> to vector<8x64xbf16>
      %175 = vector.shape_cast %171 : vector<8x64xbf16> to vector<1x1x8x64xbf16>
      tpu.vector_store %arg9[%c0_43, %c0_44, %172, %c0_45], %175 {strides = array<i32>} : memref<1x1x64x64xbf16, #tpu.memory_space<vmem>>, vector<1x1x8x64xbf16>,
    }
    %c8_i32_24 = arith.constant 8 : i32
    return
  }
  func.func @transform_0(%arg0: i32, %arg1: i32, %arg2: i32) -> (i32, i32, i32, i32) {
    %c0_i32 = arith.constant 0 : i32
    %c0_i32_0 = arith.constant 0 : i32
    return %arg0, %arg1, %arg2, %c0_i32 : i32, i32, i32, i32
  }
  func.func @transform_1(%arg0: i32, %arg1: i32, %arg2: i32) -> (i32, i32, i32) {
    %c0_i32 = arith.constant 0 : i32
    %c0_i32_0 = arith.constant 0 : i32
    %c0_i32_1 = arith.constant 0 : i32
    return %arg1, %c0_i32, %c0_i32_0 : i32, i32, i32
  }
  func.func @transform_2(%arg0: i32, %arg1: i32, %arg2: i32) -> (i32, i32, i32) {
    %c0_i32 = arith.constant 0 : i32
    %c0_i32_0 = arith.constant 0 : i32
    %c0_i32_1 = arith.constant 0 : i32
    return %arg1, %c0_i32, %c0_i32_0 : i32, i32, i32
  }
  func.func @transform_3(%arg0: i32, %arg1: i32, %arg2: i32) -> (i32, i32, i32) {
    %c0_i32 = arith.constant 0 : i32
    %c0_i32_0 = arith.constant 0 : i32
    %c0_i32_1 = arith.constant 0 : i32
    return %arg1, %c0_i32, %c0_i32_0 : i32, i32, i32
  }
  func.func @transform_4(%arg0: i32, %arg1: i32, %arg2: i32) -> (i32, i32, i32) {
    %c0_i32 = arith.constant 0 : i32
    %c0_i32_0 = arith.constant 0 : i32
    %c0_i32_1 = arith.constant 0 : i32
    return %arg1, %c0_i32, %c0_i32_0 : i32, i32, i32
  }
  func.func @transform_5(%arg0: i32, %arg1: i32, %arg2: i32) -> (i32, i32, i32) {
    %c0_i32 = arith.constant 0 : i32
    %c0_i32_0 = arith.constant 0 : i32
    %c0_i32_1 = arith.constant 0 : i32
    return %arg1, %c0_i32, %c0_i32_0 : i32, i32, i32
  }
  func.func @transform_6(%arg0: i32, %arg1: i32, %arg2: i32) -> (i32, i32, i32, i32) {
    %c0_i32 = arith.constant 0 : i32
    %c0_i32_0 = arith.constant 0 : i32
    return %arg0, %arg1, %arg2, %c0_i32 : i32, i32, i32, i32
  }
}

module attributes {stable_mosaic.version = 11 : i64} {
  func.func @_ssm_kernel(%arg0: i32, %arg1: i32, %arg2: i32, %arg3: memref<1x1x64x64xbf16, #tpu.memory_space<vmem>>, %arg4: memref<1x64x64xbf16, #tpu.memory_space<vmem>>, %arg5: memref<1x32x64xbf16, #tpu.memory_space<vmem>>, %arg6: memref<1x1x64xf32, #tpu.memory_space<vmem>>, %arg7: memref<1x16x64xf32, #tpu.memory_space<vmem>>, %arg8: memref<1x1x64xf32, #tpu.memory_space<vmem>>, %arg9: memref<1x1x64x64xbf16, #tpu.memory_space<vmem>>, %arg10: memref<16x64xf32, #tpu.memory_space<vmem>>, %arg11: memref<64x64xf32, #tpu.memory_space<vmem>>) attributes {dimension_semantics = [#tpu.dimension_semantics<parallel>, #tpu.dimension_semantics<parallel>, #tpu.dimension_semantics<arbitrary>], iteration_bounds = array<i64: 2, 2, 1>, scalar_prefetch = 0 : i64, scratch_operands = 2 : i64, tpu.core_type = #tpu.core_type<tc>, window_params = [{transform_indices = @transform_0, window_bounds = array<i64: 1, 1, 64, 64>}, {transform_indices = @transform_1, window_bounds = array<i64: 1, 64, 64>}, {transform_indices = @transform_2, window_bounds = array<i64: 1, 32, 64>}, {transform_indices = @transform_3, window_bounds = array<i64: 1, 1, 64>}, {transform_indices = @transform_4, window_bounds = array<i64: 1, 16, 64>}, {transform_indices = @transform_5, window_bounds = array<i64: 1, 1, 64>}, {transform_indices = @transform_6, window_bounds = array<i64: 1, 1, 64, 64>}]} {
    %c0_i32 = arith.constant 0 : i32
    %0 = arith.cmpi eq, %arg2, %c0_i32 : i32
    %1 = arith.extui %0 : i1 to i32
    %c0_i32_0 = arith.constant 0 : i32
    %2 = arith.cmpi ne, %1, %c0_i32_0 : i32
    scf.if %2 {
      %cst_25 = arith.constant 0.000000e+00 : f32
      %27 = vector.broadcast %cst_25 : f32 to vector<16x64xf32>
      %c0_26 = arith.constant 0 : index
      %c0_27 = arith.constant 0 : index
      %28 = vector.load %arg10[%c0_26, %c0_27] : memref<16x64xf32, #tpu.memory_space<vmem>>, vector<16x64xf32>
      tpu.vector_store %arg10[%c0_26, %c0_27], %27 {strides = array<i32>} : memref<16x64xf32, #tpu.memory_space<vmem>>, vector<16x64xf32>,
    } else {
    }
    %c0 = arith.constant 0 : index
    %c0_1 = arith.constant 0 : index
    %c0_2 = arith.constant 0 : index
    %c0_3 = arith.constant 0 : index
    %3 = vector.load %arg3[%c0, %c0_1, %c0_2, %c0_3] : memref<1x1x64x64xbf16, #tpu.memory_space<vmem>>, vector<1x1x64x64xbf16>
    %4 = vector.shape_cast %3 : vector<1x1x64x64xbf16> to vector<64x64xbf16>
    %c0_4 = arith.constant 0 : index
    %c0_5 = arith.constant 0 : index
    %c0_6 = arith.constant 0 : index
    %5 = vector.load %arg4[%c0_4, %c0_5, %c0_6] : memref<1x64x64xbf16, #tpu.memory_space<vmem>>, vector<1x64x64xbf16>
    %6 = vector.shape_cast %5 : vector<1x64x64xbf16> to vector<64x64xbf16>
    %cst = arith.constant dense<0.000000e+00> : vector<64x64xf32>
    %7 = tpu.matmul %4, %6, %cst {dimension_numbers = #tpu.dot_dimension_numbers<[1], [0], [0], [1], [0, 0, 1, 1], [], []>} : vector<64x64xbf16>, vector<64x64xbf16>, vector<64x64xf32> -> vector<64x64xf32>
    %c0_7 = arith.constant 0 : index
    %c0_8 = arith.constant 0 : index
    %c0_9 = arith.constant 0 : index
    %8 = vector.load %arg6[%c0_7, %c0_8, %c0_9] : memref<1x1x64xf32, #tpu.memory_space<vmem>>, vector<1x1x64xf32>
    %9 = vector.shape_cast %8 : vector<1x1x64xf32> to vector<1x64xf32>
    %10 = vector.broadcast %9 : vector<1x64xf32> to vector<64x64xf32>
    %11 = arith.addf %7, %10 : vector<64x64xf32>
    %cst_10 = arith.constant 2.000000e+01 : f32
    %12 = vector.broadcast %cst_10 : f32 to vector<64x64xf32>
    %13 = arith.cmpf ogt, %11, %12 : vector<64x64xf32>
    %cst_11 = arith.constant 2.000000e+01 : f32
    %14 = vector.broadcast %cst_11 : f32 to vector<64x64xf32>
    %15 = arith.minimumf %11, %14 : vector<64x64xf32>
    %16 = math.exp %15 : vector<64x64xf32>
    %17 = math.log1p %16 : vector<64x64xf32>
    %18 = arith.select %13, %11, %17 : vector<64x64xi1>, vector<64x64xf32>
    %c0_12 = arith.constant 0 : index
    %c0_13 = arith.constant 0 : index
    %19 = vector.load %arg11[%c0_12, %c0_13] : memref<64x64xf32, #tpu.memory_space<vmem>>, vector<64x64xf32>
    tpu.vector_store %arg11[%c0_12, %c0_13], %18 {strides = array<i32>} : memref<64x64xf32, #tpu.memory_space<vmem>>, vector<64x64xf32>,
    %c0_14 = arith.constant 0 : index
    %c0_15 = arith.constant 0 : index
    %c0_16 = arith.constant 0 : index
    %20 = vector.load %arg7[%c0_14, %c0_15, %c0_16] : memref<1x16x64xf32, #tpu.memory_space<vmem>>, vector<1x16x64xf32>
    %21 = vector.shape_cast %20 : vector<1x16x64xf32> to vector<16x64xf32>
    %c0_17 = arith.constant 0 : index
    %c0_18 = arith.constant 0 : index
    %c0_19 = arith.constant 0 : index
    %22 = vector.load %arg8[%c0_17, %c0_18, %c0_19] : memref<1x1x64xf32, #tpu.memory_space<vmem>>, vector<1x1x64xf32>
    %23 = vector.shape_cast %22 : vector<1x1x64xf32> to vector<1x64xf32>
    %c0_20 = arith.constant 0 : index
    %c0_21 = arith.constant 0 : index
    %c0_22 = arith.constant 0 : index
    %24 = vector.load %arg5[%c0_20, %c0_21, %c0_22] : memref<1x32x64xbf16, #tpu.memory_space<vmem>>, vector<1x32x64xbf16>
    %25 = vector.shape_cast %24 : vector<1x32x64xbf16> to vector<32x64xbf16>
    %c0_i32_23 = arith.constant 0 : i32
    %c8_i32 = arith.constant 8 : i32
    %26 = arith.addi %c0_i32_23, %c8_i32 : i32
    %c1_i32 = arith.constant 1 : i32
    scf.for %arg12 = %c0_i32_23 to %26 step %c1_i32  : i32 {
      %c7_i32 = arith.constant 7 : i32
      %27 = arith.subi %c7_i32, %arg12 : i32
      %c8_i32_25 = arith.constant 8 : i32
      %28 = arith.muli %27, %c8_i32_25 : i32
      %29 = tpu.assume_multiple %28, 8 : i32
      %c0_26 = arith.constant 0 : index
      %c0_27 = arith.constant 0 : index
      %30 = arith.index_cast %29 : i32 to index
      %c0_28 = arith.constant 0 : index
      %31 = vector.load %arg3[%c0_26, %c0_27, %30, %c0_28] : memref<1x1x64x64xbf16, #tpu.memory_space<vmem>>, vector<1x1x8x64xbf16>
      %32 = vector.shape_cast %31 : vector<1x1x8x64xbf16> to vector<8x64xbf16>
      %33 = arith.extf %32 : vector<8x64xbf16> to vector<8x64xf32>
      %34 = arith.index_cast %29 : i32 to index
      %c0_29 = arith.constant 0 : index
      %35 = vector.load %arg11[%34, %c0_29] : memref<64x64xf32, #tpu.memory_space<vmem>>, vector<8x64xf32>
      %36 = arith.mulf %35, %33 : vector<8x64xf32>
      "tpu.trace_start"() <{level = 10 : i32, message = "nd,td->nt"}> : () -> ()
      %cst_30 = arith.constant dense<0.000000e+00> : vector<32x8xf32>
      %37 = tpu.matmul %25, %32, %cst_30 {dimension_numbers = #tpu.dot_dimension_numbers<[1], [1], [0], [0], [0, 0, 1, 0], [], []>} : vector<32x64xbf16>, vector<8x64xbf16>, vector<32x8xf32> -> vector<32x8xf32>
      "tpu.trace_stop"() : () -> ()
      %c0_31 = arith.constant 0 : index
      %c0_32 = arith.constant 0 : index
      %38 = vector.load %arg10[%c0_31, %c0_32] : memref<16x64xf32, #tpu.memory_space<vmem>>, vector<16x64xf32>
      %39 = vector.extract_strided_slice %35 {offsets = [7, 0], sizes = [1, 64], strides = [1, 1]} : vector<8x64xf32> to vector<1x64xf32>
      %40 = vector.extract_strided_slice %36 {offsets = [7, 0], sizes = [1, 64], strides = [1, 1]} : vector<8x64xf32> to vector<1x64xf32>
      %41 = vector.extract_strided_slice %37 {offsets = [0, 7], sizes = [16, 1], strides = [1, 1]} : vector<32x8xf32> to vector<16x1xf32>
      %42 = vector.extract_strided_slice %37 {offsets = [16, 7], sizes = [16, 1], strides = [1, 1]} : vector<32x8xf32> to vector<16x1xf32>
      %43 = vector.broadcast %39 : vector<1x64xf32> to vector<16x64xf32>
      %44 = arith.mulf %43, %21 : vector<16x64xf32>
      %45 = math.exp %44 : vector<16x64xf32>
      %46 = arith.mulf %45, %38 : vector<16x64xf32>
      %47 = vector.broadcast %40 : vector<1x64xf32> to vector<16x64xf32>
      %48 = vector.broadcast %41 : vector<16x1xf32> to vector<16x64xf32>
      %49 = arith.mulf %47, %48 : vector<16x64xf32>
      %50 = arith.addf %46, %49 : vector<16x64xf32>
      %51 = vector.broadcast %42 : vector<16x1xf32> to vector<16x64xf32>
      %52 = arith.mulf %50, %51 : vector<16x64xf32>
      %cst_33 = arith.constant dense<0.000000e+00> : vector<64xf32>
      %53 = vector.multi_reduction <add>, %52, %cst_33 [0] : vector<16x64xf32> to vector<64xf32>
      %54 = vector.shape_cast %53 : vector<64xf32> to vector<1x64xf32>
      %55 = vector.extract_strided_slice %35 {offsets = [6, 0], sizes = [1, 64], strides = [1, 1]} : vector<8x64xf32> to vector<1x64xf32>
      %56 = vector.extract_strided_slice %36 {offsets = [6, 0], sizes = [1, 64], strides = [1, 1]} : vector<8x64xf32> to vector<1x64xf32>
      %57 = vector.extract_strided_slice %37 {offsets = [0, 6], sizes = [16, 1], strides = [1, 1]} : vector<32x8xf32> to vector<16x1xf32>
      %58 = vector.extract_strided_slice %37 {offsets = [16, 6], sizes = [16, 1], strides = [1, 1]} : vector<32x8xf32> to vector<16x1xf32>
      %59 = vector.broadcast %55 : vector<1x64xf32> to vector<16x64xf32>
      %60 = arith.mulf %59, %21 : vector<16x64xf32>
      %61 = math.exp %60 : vector<16x64xf32>
      %62 = arith.mulf %61, %50 : vector<16x64xf32>
      %63 = vector.broadcast %56 : vector<1x64xf32> to vector<16x64xf32>
      %64 = vector.broadcast %57 : vector<16x1xf32> to vector<16x64xf32>
      %65 = arith.mulf %63, %64 : vector<16x64xf32>
      %66 = arith.addf %62, %65 : vector<16x64xf32>
      %67 = vector.broadcast %58 : vector<16x1xf32> to vector<16x64xf32>
      %68 = arith.mulf %66, %67 : vector<16x64xf32>
      %cst_34 = arith.constant dense<0.000000e+00> : vector<64xf32>
      %69 = vector.multi_reduction <add>, %68, %cst_34 [0] : vector<16x64xf32> to vector<64xf32>
      %70 = vector.shape_cast %69 : vector<64xf32> to vector<1x64xf32>
      %71 = vector.extract_strided_slice %35 {offsets = [5, 0], sizes = [1, 64], strides = [1, 1]} : vector<8x64xf32> to vector<1x64xf32>
      %72 = vector.extract_strided_slice %36 {offsets = [5, 0], sizes = [1, 64], strides = [1, 1]} : vector<8x64xf32> to vector<1x64xf32>
      %73 = vector.extract_strided_slice %37 {offsets = [0, 5], sizes = [16, 1], strides = [1, 1]} : vector<32x8xf32> to vector<16x1xf32>
      %74 = vector.extract_strided_slice %37 {offsets = [16, 5], sizes = [16, 1], strides = [1, 1]} : vector<32x8xf32> to vector<16x1xf32>
      %75 = vector.broadcast %71 : vector<1x64xf32> to vector<16x64xf32>
      %76 = arith.mulf %75, %21 : vector<16x64xf32>
      %77 = math.exp %76 : vector<16x64xf32>
      %78 = arith.mulf %77, %66 : vector<16x64xf32>
      %79 = vector.broadcast %72 : vector<1x64xf32> to vector<16x64xf32>
      %80 = vector.broadcast %73 : vector<16x1xf32> to vector<16x64xf32>
      %81 = arith.mulf %79, %80 : vector<16x64xf32>
      %82 = arith.addf %78, %81 : vector<16x64xf32>
      %83 = vector.broadcast %74 : vector<16x1xf32> to vector<16x64xf32>
      %84 = arith.mulf %82, %83 : vector<16x64xf32>
      %cst_35 = arith.constant dense<0.000000e+00> : vector<64xf32>
      %85 = vector.multi_reduction <add>, %84, %cst_35 [0] : vector<16x64xf32> to vector<64xf32>
      %86 = vector.shape_cast %85 : vector<64xf32> to vector<1x64xf32>
      %87 = vector.extract_strided_slice %35 {offsets = [4, 0], sizes = [1, 64], strides = [1, 1]} : vector<8x64xf32> to vector<1x64xf32>
      %88 = vector.extract_strided_slice %36 {offsets = [4, 0], sizes = [1, 64], strides = [1, 1]} : vector<8x64xf32> to vector<1x64xf32>
      %89 = vector.extract_strided_slice %37 {offsets = [0, 4], sizes = [16, 1], strides = [1, 1]} : vector<32x8xf32> to vector<16x1xf32>
      %90 = vector.extract_strided_slice %37 {offsets = [16, 4], sizes = [16, 1], strides = [1, 1]} : vector<32x8xf32> to vector<16x1xf32>
      %91 = vector.broadcast %87 : vector<1x64xf32> to vector<16x64xf32>
      %92 = arith.mulf %91, %21 : vector<16x64xf32>
      %93 = math.exp %92 : vector<16x64xf32>
      %94 = arith.mulf %93, %82 : vector<16x64xf32>
      %95 = vector.broadcast %88 : vector<1x64xf32> to vector<16x64xf32>
      %96 = vector.broadcast %89 : vector<16x1xf32> to vector<16x64xf32>
      %97 = arith.mulf %95, %96 : vector<16x64xf32>
      %98 = arith.addf %94, %97 : vector<16x64xf32>
      %99 = vector.broadcast %90 : vector<16x1xf32> to vector<16x64xf32>
      %100 = arith.mulf %98, %99 : vector<16x64xf32>
      %cst_36 = arith.constant dense<0.000000e+00> : vector<64xf32>
      %101 = vector.multi_reduction <add>, %100, %cst_36 [0] : vector<16x64xf32> to vector<64xf32>
      %102 = vector.shape_cast %101 : vector<64xf32> to vector<1x64xf32>
      %103 = vector.extract_strided_slice %35 {offsets = [3, 0], sizes = [1, 64], strides = [1, 1]} : vector<8x64xf32> to vector<1x64xf32>
      %104 = vector.extract_strided_slice %36 {offsets = [3, 0], sizes = [1, 64], strides = [1, 1]} : vector<8x64xf32> to vector<1x64xf32>
      %105 = vector.extract_strided_slice %37 {offsets = [0, 3], sizes = [16, 1], strides = [1, 1]} : vector<32x8xf32> to vector<16x1xf32>
      %106 = vector.extract_strided_slice %37 {offsets = [16, 3], sizes = [16, 1], strides = [1, 1]} : vector<32x8xf32> to vector<16x1xf32>
      %107 = vector.broadcast %103 : vector<1x64xf32> to vector<16x64xf32>
      %108 = arith.mulf %107, %21 : vector<16x64xf32>
      %109 = math.exp %108 : vector<16x64xf32>
      %110 = arith.mulf %109, %98 : vector<16x64xf32>
      %111 = vector.broadcast %104 : vector<1x64xf32> to vector<16x64xf32>
      %112 = vector.broadcast %105 : vector<16x1xf32> to vector<16x64xf32>
      %113 = arith.mulf %111, %112 : vector<16x64xf32>
      %114 = arith.addf %110, %113 : vector<16x64xf32>
      %115 = vector.broadcast %106 : vector<16x1xf32> to vector<16x64xf32>
      %116 = arith.mulf %114, %115 : vector<16x64xf32>
      %cst_37 = arith.constant dense<0.000000e+00> : vector<64xf32>
      %117 = vector.multi_reduction <add>, %116, %cst_37 [0] : vector<16x64xf32> to vector<64xf32>
      %118 = vector.shape_cast %117 : vector<64xf32> to vector<1x64xf32>
      %119 = vector.extract_strided_slice %35 {offsets = [2, 0], sizes = [1, 64], strides = [1, 1]} : vector<8x64xf32> to vector<1x64xf32>
      %120 = vector.extract_strided_slice %36 {offsets = [2, 0], sizes = [1, 64], strides = [1, 1]} : vector<8x64xf32> to vector<1x64xf32>
      %121 = vector.extract_strided_slice %37 {offsets = [0, 2], sizes = [16, 1], strides = [1, 1]} : vector<32x8xf32> to vector<16x1xf32>
      %122 = vector.extract_strided_slice %37 {offsets = [16, 2], sizes = [16, 1], strides = [1, 1]} : vector<32x8xf32> to vector<16x1xf32>
      %123 = vector.broadcast %119 : vector<1x64xf32> to vector<16x64xf32>
      %124 = arith.mulf %123, %21 : vector<16x64xf32>
      %125 = math.exp %124 : vector<16x64xf32>
      %126 = arith.mulf %125, %114 : vector<16x64xf32>
      %127 = vector.broadcast %120 : vector<1x64xf32> to vector<16x64xf32>
      %128 = vector.broadcast %121 : vector<16x1xf32> to vector<16x64xf32>
      %129 = arith.mulf %127, %128 : vector<16x64xf32>
      %130 = arith.addf %126, %129 : vector<16x64xf32>
      %131 = vector.broadcast %122 : vector<16x1xf32> to vector<16x64xf32>
      %132 = arith.mulf %130, %131 : vector<16x64xf32>
      %cst_38 = arith.constant dense<0.000000e+00> : vector<64xf32>
      %133 = vector.multi_reduction <add>, %132, %cst_38 [0] : vector<16x64xf32> to vector<64xf32>
      %134 = vector.shape_cast %133 : vector<64xf32> to vector<1x64xf32>
      %135 = vector.extract_strided_slice %35 {offsets = [1, 0], sizes = [1, 64], strides = [1, 1]} : vector<8x64xf32> to vector<1x64xf32>
      %136 = vector.extract_strided_slice %36 {offsets = [1, 0], sizes = [1, 64], strides = [1, 1]} : vector<8x64xf32> to vector<1x64xf32>
      %137 = vector.extract_strided_slice %37 {offsets = [0, 1], sizes = [16, 1], strides = [1, 1]} : vector<32x8xf32> to vector<16x1xf32>
      %138 = vector.extract_strided_slice %37 {offsets = [16, 1], sizes = [16, 1], strides = [1, 1]} : vector<32x8xf32> to vector<16x1xf32>
      %139 = vector.broadcast %135 : vector<1x64xf32> to vector<16x64xf32>
      %140 = arith.mulf %139, %21 : vector<16x64xf32>
      %141 = math.exp %140 : vector<16x64xf32>
      %142 = arith.mulf %141, %130 : vector<16x64xf32>
      %143 = vector.broadcast %136 : vector<1x64xf32> to vector<16x64xf32>
      %144 = vector.broadcast %137 : vector<16x1xf32> to vector<16x64xf32>
      %145 = arith.mulf %143, %144 : vector<16x64xf32>
      %146 = arith.addf %142, %145 : vector<16x64xf32>
      %147 = vector.broadcast %138 : vector<16x1xf32> to vector<16x64xf32>
      %148 = arith.mulf %146, %147 : vector<16x64xf32>
      %cst_39 = arith.constant dense<0.000000e+00> : vector<64xf32>
      %149 = vector.multi_reduction <add>, %148, %cst_39 [0] : vector<16x64xf32> to vector<64xf32>
      %150 = vector.shape_cast %149 : vector<64xf32> to vector<1x64xf32>
      %151 = vector.extract_strided_slice %35 {offsets = [0, 0], sizes = [1, 64], strides = [1, 1]} : vector<8x64xf32> to vector<1x64xf32>
      %152 = vector.extract_strided_slice %36 {offsets = [0, 0], sizes = [1, 64], strides = [1, 1]} : vector<8x64xf32> to vector<1x64xf32>
      %153 = vector.extract_strided_slice %37 {offsets = [0, 0], sizes = [16, 1], strides = [1, 1]} : vector<32x8xf32> to vector<16x1xf32>
      %154 = vector.extract_strided_slice %37 {offsets = [16, 0], sizes = [16, 1], strides = [1, 1]} : vector<32x8xf32> to vector<16x1xf32>
      %155 = vector.broadcast %151 : vector<1x64xf32> to vector<16x64xf32>
      %156 = arith.mulf %155, %21 : vector<16x64xf32>
      %157 = math.exp %156 : vector<16x64xf32>
      %158 = arith.mulf %157, %146 : vector<16x64xf32>
      %159 = vector.broadcast %152 : vector<1x64xf32> to vector<16x64xf32>
      %160 = vector.broadcast %153 : vector<16x1xf32> to vector<16x64xf32>
      %161 = arith.mulf %159, %160 : vector<16x64xf32>
      %162 = arith.addf %158, %161 : vector<16x64xf32>
      %163 = vector.broadcast %154 : vector<16x1xf32> to vector<16x64xf32>
      %164 = arith.mulf %162, %163 : vector<16x64xf32>
      %cst_40 = arith.constant dense<0.000000e+00> : vector<64xf32>
      %165 = vector.multi_reduction <add>, %164, %cst_40 [0] : vector<16x64xf32> to vector<64xf32>
      %166 = vector.shape_cast %165 : vector<64xf32> to vector<1x64xf32>
      %c0_41 = arith.constant 0 : index
      %c0_42 = arith.constant 0 : index
      %167 = vector.load %arg10[%c0_41, %c0_42] : memref<16x64xf32, #tpu.memory_space<vmem>>, vector<16x64xf32>
      tpu.vector_store %arg10[%c0_41, %c0_42], %162 {strides = array<i32>} : memref<16x64xf32, #tpu.memory_space<vmem>>, vector<16x64xf32>,
      %168 = tpu.concatenate %166, %150, %134, %118, %102, %86, %70, %54 in 0 : vector<1x64xf32>, vector<1x64xf32>, vector<1x64xf32>, vector<1x64xf32>, vector<1x64xf32>, vector<1x64xf32>, vector<1x64xf32>, vector<1x64xf32> -> vector<8x64xf32>
      %169 = vector.broadcast %23 : vector<1x64xf32> to vector<8x64xf32>
      %170 = arith.mulf %33, %169 : vector<8x64xf32>
      %171 = arith.addf %168, %170 : vector<8x64xf32>
      %172 = arith.truncf %171 : vector<8x64xf32> to vector<8x64xbf16>
      %c0_43 = arith.constant 0 : index
      %c0_44 = arith.constant 0 : index
      %173 = arith.index_cast %29 : i32 to index
      %c0_45 = arith.constant 0 : index
      %174 = vector.load %arg9[%c0_43, %c0_44, %173, %c0_45] : memref<1x1x64x64xbf16, #tpu.memory_space<vmem>>, vector<1x1x8x64xbf16>
      %175 = vector.shape_cast %174 : vector<1x1x8x64xbf16> to vector<8x64xbf16>
      %176 = vector.shape_cast %172 : vector<8x64xbf16> to vector<1x1x8x64xbf16>
      tpu.vector_store %arg9[%c0_43, %c0_44, %173, %c0_45], %176 {strides = array<i32>} : memref<1x1x64x64xbf16, #tpu.memory_space<vmem>>, vector<1x1x8x64xbf16>,
    }
    %c8_i32_24 = arith.constant 8 : i32
    return
  }
  func.func @transform_0(%arg0: i32, %arg1: i32, %arg2: i32) -> (i32, i32, i32, i32) {
    %c0_i32 = arith.constant 0 : i32
    %0 = arith.subi %c0_i32, %arg2 : i32
    %c0_i32_0 = arith.constant 0 : i32
    %c0_i32_1 = arith.constant 0 : i32
    return %arg0, %arg1, %0, %c0_i32_0 : i32, i32, i32, i32
  }
  func.func @transform_1(%arg0: i32, %arg1: i32, %arg2: i32) -> (i32, i32, i32) {
    %c0_i32 = arith.constant 0 : i32
    %c0_i32_0 = arith.constant 0 : i32
    %c0_i32_1 = arith.constant 0 : i32
    return %arg1, %c0_i32, %c0_i32_0 : i32, i32, i32
  }
  func.func @transform_2(%arg0: i32, %arg1: i32, %arg2: i32) -> (i32, i32, i32) {
    %c0_i32 = arith.constant 0 : i32
    %c0_i32_0 = arith.constant 0 : i32
    %c0_i32_1 = arith.constant 0 : i32
    return %arg1, %c0_i32, %c0_i32_0 : i32, i32, i32
  }
  func.func @transform_3(%arg0: i32, %arg1: i32, %arg2: i32) -> (i32, i32, i32) {
    %c0_i32 = arith.constant 0 : i32
    %c0_i32_0 = arith.constant 0 : i32
    %c0_i32_1 = arith.constant 0 : i32
    return %arg1, %c0_i32, %c0_i32_0 : i32, i32, i32
  }
  func.func @transform_4(%arg0: i32, %arg1: i32, %arg2: i32) -> (i32, i32, i32) {
    %c0_i32 = arith.constant 0 : i32
    %c0_i32_0 = arith.constant 0 : i32
    %c0_i32_1 = arith.constant 0 : i32
    return %arg1, %c0_i32, %c0_i32_0 : i32, i32, i32
  }
  func.func @transform_5(%arg0: i32, %arg1: i32, %arg2: i32) -> (i32, i32, i32) {
    %c0_i32 = arith.constant 0 : i32
    %c0_i32_0 = arith.constant 0 : i32
    %c0_i32_1 = arith.constant 0 : i32
    return %arg1, %c0_i32, %c0_i32_0 : i32, i32, i32
  }
  func.func @transform_6(%arg0: i32, %arg1: i32, %arg2: i32) -> (i32, i32, i32, i32) {
    %c0_i32 = arith.constant 0 : i32
    %0 = arith.subi %c0_i32, %arg2 : i32
    %c0_i32_0 = arith.constant 0 : i32
    %c0_i32_1 = arith.constant 0 : i32
    return %arg0, %arg1, %0, %c0_i32_0 : i32, i32, i32, i32
  }
}

module attributes {stable_mosaic.version = 11 : i64} {
  func.func @_out_stage_kernel(%arg0: i32, %arg1: memref<128x64xbf16, #tpu.memory_space<vmem>>, %arg2: memref<128x64xbf16, #tpu.memory_space<vmem>>, %arg3: memref<128x32xf32, #tpu.memory_space<vmem>>, %arg4: memref<1x64xf32, #tpu.memory_space<vmem>>, %arg5: memref<1x64xf32, #tpu.memory_space<vmem>>, %arg6: memref<64x32xbf16, #tpu.memory_space<vmem>>, %arg7: memref<128x32xf32, #tpu.memory_space<vmem>>) attributes {dimension_semantics = [#tpu.dimension_semantics<parallel>], iteration_bounds = array<i64: 1>, scalar_prefetch = 0 : i64, scratch_operands = 0 : i64, tpu.core_type = #tpu.core_type<tc>, window_params = [{transform_indices = @transform_0, window_bounds = array<i64: 128, 64>}, {transform_indices = @transform_1, window_bounds = array<i64: 128, 64>}, {transform_indices = @transform_2, window_bounds = array<i64: 128, 32>}, {pipeline_mode = #tpu.pipeline_mode<synchronous>, transform_indices = @transform_3, window_bounds = array<i64: 1, 64>}, {pipeline_mode = #tpu.pipeline_mode<synchronous>, transform_indices = @transform_4, window_bounds = array<i64: 1, 64>}, {pipeline_mode = #tpu.pipeline_mode<synchronous>, transform_indices = @transform_5, window_bounds = array<i64: 64, 32>}, {transform_indices = @transform_6, window_bounds = array<i64: 128, 32>}]} {
    %c0 = arith.constant 0 : index
    %c0_0 = arith.constant 0 : index
    %0 = vector.load %arg1[%c0, %c0_0] : memref<128x64xbf16, #tpu.memory_space<vmem>>, vector<128x64xbf16>
    %1 = arith.extf %0 : vector<128x64xbf16> to vector<128x64xf32>
    %cst = arith.constant dense<0.000000e+00> : vector<128xf32>
    %2 = vector.multi_reduction <add>, %1, %cst [1] : vector<128x64xf32> to vector<128xf32>
    %3 = vector.shape_cast %2 : vector<128xf32> to vector<128x1xf32>
    %cst_1 = arith.constant 6.400000e+01 : f32
    %4 = vector.broadcast %cst_1 : f32 to vector<128x1xf32>
    %5 = arith.divf %3, %4 : vector<128x1xf32>
    %6 = vector.broadcast %5 : vector<128x1xf32> to vector<128x64xf32>
    %7 = arith.subf %1, %6 : vector<128x64xf32>
    %8 = arith.mulf %7, %7 : vector<128x64xf32>
    %cst_2 = arith.constant dense<0.000000e+00> : vector<128xf32>
    %9 = vector.multi_reduction <add>, %8, %cst_2 [1] : vector<128x64xf32> to vector<128xf32>
    %10 = vector.shape_cast %9 : vector<128xf32> to vector<128x1xf32>
    %cst_3 = arith.constant 6.400000e+01 : f32
    %11 = vector.broadcast %cst_3 : f32 to vector<128x1xf32>
    %12 = arith.divf %10, %11 : vector<128x1xf32>
    %13 = vector.broadcast %5 : vector<128x1xf32> to vector<128x64xf32>
    %14 = arith.subf %1, %13 : vector<128x64xf32>
    %cst_4 = arith.constant 9.99999974E-6 : f32
    %15 = vector.broadcast %cst_4 : f32 to vector<128x1xf32>
    %16 = arith.addf %12, %15 : vector<128x1xf32>
    %17 = math.rsqrt %16 : vector<128x1xf32>
    %18 = vector.broadcast %17 : vector<128x1xf32> to vector<128x64xf32>
    %19 = arith.mulf %14, %18 : vector<128x64xf32>
    %c0_5 = arith.constant 0 : index
    %c0_6 = arith.constant 0 : index
    %20 = vector.load %arg4[%c0_5, %c0_6] : memref<1x64xf32, #tpu.memory_space<vmem>>, vector<1x64xf32>
    %21 = vector.broadcast %20 : vector<1x64xf32> to vector<128x64xf32>
    %22 = arith.mulf %19, %21 : vector<128x64xf32>
    %c0_7 = arith.constant 0 : index
    %c0_8 = arith.constant 0 : index
    %23 = vector.load %arg5[%c0_7, %c0_8] : memref<1x64xf32, #tpu.memory_space<vmem>>, vector<1x64xf32>
    %24 = vector.broadcast %23 : vector<1x64xf32> to vector<128x64xf32>
    %25 = arith.addf %22, %24 : vector<128x64xf32>
    %c0_9 = arith.constant 0 : index
    %c0_10 = arith.constant 0 : index
    %26 = vector.load %arg2[%c0_9, %c0_10] : memref<128x64xbf16, #tpu.memory_space<vmem>>, vector<128x64xbf16>
    %27 = arith.extf %26 : vector<128x64xbf16> to vector<128x64xf32>
    %28 = arith.negf %27 : vector<128x64xf32>
    %29 = math.exp %28 : vector<128x64xf32>
    %cst_11 = arith.constant 1.000000e+00 : f32
    %30 = vector.broadcast %cst_11 : f32 to vector<128x64xf32>
    %31 = arith.addf %30, %29 : vector<128x64xf32>
    %32 = arith.divf %30, %31 : vector<128x64xf32>
    %33 = arith.mulf %27, %32 : vector<128x64xf32>
    %34 = arith.mulf %25, %33 : vector<128x64xf32>
    %35 = arith.truncf %34 : vector<128x64xf32> to vector<128x64xbf16>
    %c0_12 = arith.constant 0 : index
    %c0_13 = arith.constant 0 : index
    %36 = vector.load %arg6[%c0_12, %c0_13] : memref<64x32xbf16, #tpu.memory_space<vmem>>, vector<64x32xbf16>
    %cst_14 = arith.constant dense<0.000000e+00> : vector<128x32xf32>
    %37 = tpu.matmul %35, %36, %cst_14 {dimension_numbers = #tpu.dot_dimension_numbers<[1], [0], [0], [1], [0, 0, 1, 1], [], []>} : vector<128x64xbf16>, vector<64x32xbf16>, vector<128x32xf32> -> vector<128x32xf32>
    %c0_15 = arith.constant 0 : index
    %c0_16 = arith.constant 0 : index
    %38 = vector.load %arg3[%c0_15, %c0_16] : memref<128x32xf32, #tpu.memory_space<vmem>>, vector<128x32xf32>
    %39 = arith.addf %38, %37 : vector<128x32xf32>
    %c0_17 = arith.constant 0 : index
    %c0_18 = arith.constant 0 : index
    %40 = vector.load %arg7[%c0_17, %c0_18] : memref<128x32xf32, #tpu.memory_space<vmem>>, vector<128x32xf32>
    tpu.vector_store %arg7[%c0_17, %c0_18], %39 {strides = array<i32>} : memref<128x32xf32, #tpu.memory_space<vmem>>, vector<128x32xf32>,
    return
  }
  func.func @transform_0(%arg0: i32) -> (i32, i32) {
    %c0_i32 = arith.constant 0 : i32
    %c0_i32_0 = arith.constant 0 : i32
    return %arg0, %c0_i32 : i32, i32
  }
  func.func @transform_1(%arg0: i32) -> (i32, i32) {
    %c0_i32 = arith.constant 0 : i32
    %c0_i32_0 = arith.constant 0 : i32
    return %arg0, %c0_i32 : i32, i32
  }
  func.func @transform_2(%arg0: i32) -> (i32, i32) {
    %c0_i32 = arith.constant 0 : i32
    %c0_i32_0 = arith.constant 0 : i32
    return %arg0, %c0_i32 : i32, i32
  }
  func.func @transform_3(%arg0: i32) -> (i32, i32) {
    %c0_i32 = arith.constant 0 : i32
    %c0_i32_0 = arith.constant 0 : i32
    %c0_i32_1 = arith.constant 0 : i32
    return %c0_i32, %c0_i32_0 : i32, i32
  }
  func.func @transform_4(%arg0: i32) -> (i32, i32) {
    %c0_i32 = arith.constant 0 : i32
    %c0_i32_0 = arith.constant 0 : i32
    %c0_i32_1 = arith.constant 0 : i32
    return %c0_i32, %c0_i32_0 : i32, i32
  }
  func.func @transform_5(%arg0: i32) -> (i32, i32) {
    %c0_i32 = arith.constant 0 : i32
    %c0_i32_0 = arith.constant 0 : i32
    %c0_i32_1 = arith.constant 0 : i32
    return %c0_i32, %c0_i32_0 : i32, i32
  }
  func.func @transform_6(%arg0: i32) -> (i32, i32) {
    %c0_i32 = arith.constant 0 : i32
    %c0_i32_0 = arith.constant 0 : i32
    return %arg0, %c0_i32 : i32, i32
  }
}

</mosaic_0001>

<llo_original>
// kernel: vss_layer.10
$region0: #{vss_layer.10}
  #allocation0 [shape = 'u32[]', space=smem, size = 0x4, offset = 0x4, fixed_abs, tag = 'smem constant byte address 0x4 - core index']
  #allocation1 [shape = 'u32[144,128]{1,0:T(1,128)}', space=vmem, size = 0x12000, scoped, tag = 'internal scratch']
  %s0 = inlined_call_operand.vmem [shape: f32[128,32], index: 0, kind: input, shape index: {}]
  %s1 = inlined_call_operand.vmem [shape: f32[1,32], index: 1, kind: input, shape index: {}]
  %s2 = inlined_call_operand.vmem [shape: f32[1,32], index: 2, kind: input, shape index: {}]
  %s3 = inlined_call_operand.vmem [shape: bf16[32,128], index: 3, kind: input, shape index: {}]
  %s4 = inlined_call_operand.vmem [shape: bf16[128,128], index: 4, kind: output, shape index: {}]
  %s5 = sld [smem:[#allocation0]]
  $region26: #{vss_layer.10} parent=0
    _
  %s7 = ssub.s32 1, %s5
  %s8 = scalar_select 0, %s7, %s5
  // Predicated region
  $region2: #{vss_layer.10} parent=0 // pred_check
    _
  $region3: #{vss_layer.10} parent=0 // pred_check_branch
    %10 = sbr.rel (0) target = $region5
  $region4: #{vss_layer.10} parent=0 // pred_region
    _
  $region5: #{vss_layer.10} parent=0 // pred_fallthru
    _
  // Predicated region
  $region6: #{vss_layer.10} parent=0 // pred_check
    _
  $region7: #{vss_layer.10} parent=0 // pred_check_branch
    %12 = sbr.rel (0) target = $region9
  $region8: #{vss_layer.10} parent=0 // pred_region
    _
  $region9: #{vss_layer.10} parent=0 // pred_fallthru
    _
  // Predicated region
  $region10: #{vss_layer.10} parent=0 // pred_check
    _
  $region11: #{vss_layer.10} parent=0 // pred_check_branch
    %14 = sbr.rel (0) target = $region13
  $region12: #{vss_layer.10} parent=0 // pred_region
    _
  $region13: #{vss_layer.10} parent=0 // pred_fallthru
    _
  // Predicated region
  $region14: #{vss_layer.10} parent=0 // pred_check
    _
  $region15: #{vss_layer.10} parent=0 // pred_check_branch
    %16 = sbr.rel (0) target = $region17
  $region16: #{vss_layer.10} parent=0 // pred_region
    _
  $region17: #{vss_layer.10} parent=0 // pred_fallthru
    _
  %v18 = vld [vmem:[%s0] sm:$0xff]
  %v19 = vld [vmem:[%s0 + $0x8] sm:$0xff]
  %v20 = vld [vmem:[%s0 + $0x10] sm:$0xff]
  %v21 = vld [vmem:[%s0 + $0x18] sm:$0xff]
  %v22 = vld [vmem:[%s0 + $0x20] sm:$0xff]
  %v23 = vld [vmem:[%s0 + $0x28] sm:$0xff]
  %v24 = vld [vmem:[%s0 + $0x30] sm:$0xff]
  %v25 = vld [vmem:[%s0 + $0x38] sm:$0xff]
  %v26 = vld [vmem:[%s0 + $0x40] sm:$0xff]
  %v27 = vld [vmem:[%s0 + $0x48] sm:$0xff]
  %v28 = vld [vmem:[%s0 + $0x50] sm:$0xff]
  %v29 = vld [vmem:[%s0 + $0x58] sm:$0xff]
  %v30 = vld [vmem:[%s0 + $0x60] sm:$0xff]
  %v31 = vld [vmem:[%s0 + $0x68] sm:$0xff]
  %v32 = vld [vmem:[%s0 + $0x70] sm:$0xff]
  %v33 = vld [vmem:[%s0 + $0x78] sm:$0xff]
  %vm34 = vcmask 261120
  %v35 = vsel %vm34, %v18, 0.0
  %36 = vadd.xlane.f32.xlu0 %v35
  %v37 = vpop.xlane.xlu0 %36
  %v38 = vsel %vm34, %v19, 0.0
  %39 = vadd.xlane.f32.xlu0 %v38
  %v40 = vpop.xlane.xlu0 %39
  %v41 = vsel %vm34, %v20, 0.0
  %42 = vadd.xlane.f32.xlu0 %v41
  %v43 = vpop.xlane.xlu0 %42
  %v44 = vsel %vm34, %v21, 0.0
  %45 = vadd.xlane.f32.xlu0 %v44
  %v46 = vpop.xlane.xlu0 %45
  %v47 = vsel %vm34, %v22, 0.0
  %48 = vadd.xlane.f32.xlu0 %v47
  %v49 = vpop.xlane.xlu0 %48
  %v50 = vsel %vm34, %v23, 0.0
  %51 = vadd.xlane.f32.xlu0 %v50
  %v52 = vpop.xlane.xlu0 %51
  %v53 = vsel %vm34, %v24, 0.0
  %54 = vadd.xlane.f32.xlu0 %v53
  %v55 = vpop.xlane.xlu0 %54
  %v56 = vsel %vm34, %v25, 0.0
  %57 = vadd.xlane.f32.xlu0 %v56
  %v58 = vpop.xlane.xlu0 %57
  %v59 = vsel %vm34, %v26, 0.0
  %60 = vadd.xlane.f32.xlu0 %v59
  %v61 = vpop.xlane.xlu0 %60
  %v62 = vsel %vm34, %v27, 0.0
  %63 = vadd.xlane.f32.xlu0 %v62
  %v64 = vpop.xlane.xlu0 %63
  %v65 = vsel %vm34, %v28, 0.0
  %66 = vadd.xlane.f32.xlu0 %v65
  %v67 = vpop.xlane.xlu0 %66
  %v68 = vsel %vm34, %v29, 0.0
  %69 = vadd.xlane.f32.xlu0 %v68
  %v70 = vpop.xlane.xlu0 %69
  %v71 = vsel %vm34, %v30, 0.0
  %72 = vadd.xlane.f32.xlu0 %v71
  %v73 = vpop.xlane.xlu0 %72
  %v74 = vsel %vm34, %v31, 0.0
  %75 = vadd.xlane.f32.xlu0 %v74
  %v76 = vpop.xlane.xlu0 %75
  %v77 = vsel %vm34, %v32, 0.0
  %78 = vadd.xlane.f32.xlu0 %v77
  %v79 = vpop.xlane.xlu0 %78
  %v80 = vsel %vm34, %v33, 0.0
  %81 = vadd.xlane.f32.xlu0 %v80
  %v82 = vpop.xlane.xlu0 %81
  %v83 = vrcp.pop 32.0
  %v84 = vmul.f32 %v37, %v83
  %v85 = vmul.f32 %v40, %v83
  %v86 = vmul.f32 %v43, %v83
  %v87 = vmul.f32 %v46, %v83
  %v88 = vmul.f32 %v49, %v83
  %v89 = vmul.f32 %v52, %v83
  %v90 = vmul.f32 %v55, %v83
  %v91 = vmul.f32 %v58, %v83
  %v92 = vmul.f32 %v61, %v83
  %v93 = vmul.f32 %v64, %v83
  %v94 = vmul.f32 %v67, %v83
  %v95 = vmul.f32 %v70, %v83
  %v96 = vmul.f32 %v73, %v83
  %v97 = vmul.f32 %v76, %v83
  %v98 = vmul.f32 %v79, %v83
  %v99 = vmul.f32 %v82, %v83
  %v100 = vsub.f32 %v18, %v84
  %v101 = vsub.f32 %v19, %v85
  %v102 = vsub.f32 %v20, %v86
  %v103 = vsub.f32 %v21, %v87
  %v104 = vsub.f32 %v22, %v88
  %v105 = vsub.f32 %v23, %v89
  %v106 = vsub.f32 %v24, %v90
  %v107 = vsub.f32 %v25, %v91
  %v108 = vsub.f32 %v26, %v92
  %v109 = vsub.f32 %v27, %v93
  %v110 = vsub.f32 %v28, %v94
  %v111 = vsub.f32 %v29, %v95
  %v112 = vsub.f32 %v30, %v96
  %v113 = vsub.f32 %v31, %v97
  %v114 = vsub.f32 %v32, %v98
  %v115 = vsub.f32 %v33, %v99
  %v116 = vmul.f32 %v100, %v100
  %v117 = vmul.f32 %v101, %v101
  %v118 = vmul.f32 %v102, %v102
  %v119 = vmul.f32 %v103, %v103
  %v120 = vmul.f32 %v104, %v104
  %v121 = vmul.f32 %v105, %v105
  %v122 = vmul.f32 %v106, %v106
  %v123 = vmul.f32 %v107, %v107
  %v124 = vmul.f32 %v108, %v108
  %v125 = vmul.f32 %v109, %v109
  %v126 = vmul.f32 %v110, %v110
  %v127 = vmul.f32 %v111, %v111
  %v128 = vmul.f32 %v112, %v112
  %v129 = vmul.f32 %v113, %v113
  %v130 = vmul.f32 %v114, %v114
  %v131 = vmul.f32 %v115, %v115
  %v132 = vsel %vm34, %v116, 0.0
  %133 = vadd.xlane.f32.xlu0 %v132
  %v134 = vpop.xlane.xlu0 %133
  %v135 = vsel %vm34, %v117, 0.0
  %136 = vadd.xlane.f32.xlu0 %v135
  %v137 = vpop.xlane.xlu0 %136
  %v138 = vsel %vm34, %v118, 0.0
  %139 = vadd.xlane.f32.xlu0 %v138
  %v140 = vpop.xlane.xlu0 %139
  %v141 = vsel %vm34, %v119, 0.0
  %142 = vadd.xlane.f32.xlu0 %v141
  %v143 = vpop.xlane.xlu0 %142
  %v144 = vsel %vm34, %v120, 0.0
  %145 = vadd.xlane.f32.xlu0 %v144
  %v146 = vpop.xlane.xlu0 %145
  %v147 = vsel %vm34, %v121, 0.0
  %148 = vadd.xlane.f32.xlu0 %v147
  %v149 = vpop.xlane.xlu0 %148
  %v150 = vsel %vm34, %v122, 0.0
  %151 = vadd.xlane.f32.xlu0 %v150
  %v152 = vpop.xlane.xlu0 %151
  %v153 = vsel %vm34, %v123, 0.0
  %154 = vadd.xlane.f32.xlu0 %v153
  %v155 = vpop.xlane.xlu0 %154
  %v156 = vsel %vm34, %v124, 0.0
  %157 = vadd.xlane.f32.xlu0 %v156
  %v158 = vpop.xlane.xlu0 %157
  %v159 = vsel %vm34, %v125, 0.0
  %160 = vadd.xlane.f32.xlu0 %v159
  %v161 = vpop.xlane.xlu0 %160
  %v162 = vsel %vm34, %v126, 0.0
  %163 = vadd.xlane.f32.xlu0 %v162
  %v164 = vpop.xlane.xlu0 %163
  %v165 = vsel %vm34, %v127, 0.0
  %166 = vadd.xlane.f32.xlu0 %v165
  %v167 = vpop.xlane.xlu0 %166
  %v168 = vsel %vm34, %v128, 0.0
  %169 = vadd.xlane.f32.xlu0 %v168
  %v170 = vpop.xlane.xlu0 %169
  %v171 = vsel %vm34, %v129, 0.0
  %172 = vadd.xlane.f32.xlu0 %v171
  %v173 = vpop.xlane.xlu0 %172
  %v174 = vsel %vm34, %v130, 0.0
  %175 = vadd.xlane.f32.xlu0 %v174
  %v176 = vpop.xlane.xlu0 %175
  %v177 = vsel %vm34, %v131, 0.0
  %178 = vadd.xlane.f32.xlu0 %v177
  %v179 = vpop.xlane.xlu0 %178
  %v180 = vmul.f32 %v134, %v83
  %v181 = vmul.f32 %v137, %v83
  %v182 = vmul.f32 %v140, %v83
  %v183 = vmul.f32 %v143, %v83
  %v184 = vmul.f32 %v146, %v83
  %v185 = vmul.f32 %v149, %v83
  %v186 = vmul.f32 %v152, %v83
  %v187 = vmul.f32 %v155, %v83
  %v188 = vmul.f32 %v158, %v83
  %v189 = vmul.f32 %v161, %v83
  %v190 = vmul.f32 %v164, %v83
  %v191 = vmul.f32 %v167, %v83
  %v192 = vmul.f32 %v170, %v83
  %v193 = vmul.f32 %v173, %v83
  %v194 = vmul.f32 %v176, %v83
  %v195 = vmul.f32 %v179, %v83
  %v196 = vadd.f32 %v180, 1e-05
  %v197 = vadd.f32 %v181, 1e-05
  %v198 = vadd.f32 %v182, 1e-05
  %v199 = vadd.f32 %v183, 1e-05
  %v200 = vadd.f32 %v184, 1e-05
  %v201 = vadd.f32 %v185, 1e-05
  %v202 = vadd.f32 %v186, 1e-05
  %v203 = vadd.f32 %v187, 1e-05
  %v204 = vadd.f32 %v188, 1e-05
  %v205 = vadd.f32 %v189, 1e-05
  %v206 = vadd.f32 %v190, 1e-05
  %v207 = vadd.f32 %v191, 1e-05
  %v208 = vadd.f32 %v192, 1e-05
  %v209 = vadd.f32 %v193, 1e-05
  %v210 = vadd.f32 %v194, 1e-05
  %v211 = vadd.f32 %v195, 1e-05
  %v212 = vrsqrt.pop %v196
  %v213 = vrsqrt.pop %v197
  %v214 = vrsqrt.pop %v198
  %v215 = vrsqrt.pop %v199
  %v216 = vrsqrt.pop %v200
  %v217 = vrsqrt.pop %v201
  %v218 = vrsqrt.pop %v202
  %v219 = vrsqrt.pop %v203
  %v220 = vrsqrt.pop %v204
  %v221 = vrsqrt.pop %v205
  %v222 = vrsqrt.pop %v206
  %v223 = vrsqrt.pop %v207
  %v224 = vrsqrt.pop %v208
  %v225 = vrsqrt.pop %v209
  %v226 = vrsqrt.pop %v210
  %v227 = vrsqrt.pop %v211
  %v228 = vmul.f32 %v100, %v212
  %v229 = vmul.f32 %v101, %v213
  %v230 = vmul.f32 %v102, %v214
  %v231 = vmul.f32 %v103, %v215
  %v232 = vmul.f32 %v104, %v216
  %v233 = vmul.f32 %v105, %v217
  %v234 = vmul.f32 %v106, %v218
  %v235 = vmul.f32 %v107, %v219
  %v236 = vmul.f32 %v108, %v220
  %v237 = vmul.f32 %v109, %v221
  %v238 = vmul.f32 %v110, %v222
  %v239 = vmul.f32 %v111, %v223
  %v240 = vmul.f32 %v112, %v224
  %v241 = vmul.f32 %v113, %v225
  %v242 = vmul.f32 %v114, %v226
  %v243 = vmul.f32 %v115, %v227
  %v244 = vld [vmem:[%s1] sm:$0x1]
  %v246 = vlaneseq
  %v247 = vshrl.u32 %v246, 7
  %v248 = vsub.s32 0, %v247
  %v249 = vrot.slane %v244, %v248
  %v251 = vmul.f32 %v228, %v249
  %v252 = vmul.f32 %v229, %v249
  %v253 = vmul.f32 %v230, %v249
  %v254 = vmul.f32 %v231, %v249
  %v255 = vmul.f32 %v232, %v249
  %v256 = vmul.f32 %v233, %v249
  %v257 = vmul.f32 %v234, %v249
  %v258 = vmul.f32 %v235, %v249
  %v259 = vmul.f32 %v236, %v249
  %v260 = vmul.f32 %v237, %v249
  %v261 = vmul.f32 %v238, %v249
  %v262 = vmul.f32 %v239, %v249
  %v263 = vmul.f32 %v240, %v249
  %v264 = vmul.f32 %v241, %v249
  %v265 = vmul.f32 %v242, %v249
  %v266 = vmul.f32 %v243, %v249
  %v267 = vld [vmem:[%s2] sm:$0x1]
  %v269 = vlaneseq
  %v270 = vshrl.u32 %v269, 7
  %v271 = vsub.s32 0, %v270
  %v272 = vrot.slane %v267, %v271
  %v274 = vadd.f32 %v251, %v272
  %v275 = vadd.f32 %v252, %v272
  %v276 = vadd.f32 %v253, %v272
  %v277 = vadd.f32 %v254, %v272
  %v278 = vadd.f32 %v255, %v272
  %v279 = vadd.f32 %v256, %v272
  %v280 = vadd.f32 %v257, %v272
  %v281 = vadd.f32 %v258, %v272
  %v282 = vadd.f32 %v259, %v272
  %v283 = vadd.f32 %v260, %v272
  %v284 = vadd.f32 %v261, %v272
  %v285 = vadd.f32 %v262, %v272
  %v286 = vadd.f32 %v263, %v272
  %v287 = vadd.f32 %v264, %v272
  %v288 = vadd.f32 %v265, %v272
  %v289 = vadd.f32 %v266, %v272
  %v290 = vpack.c.bf16 %v275, %v274
  %v291 = vpack.c.bf16 %v277, %v276
  %v292 = vpack.c.bf16 %v279, %v278
  %v293 = vpack.c.bf16 %v281, %v280
  %v294 = vpack.c.bf16 %v283, %v282
  %v295 = vpack.c.bf16 %v285, %v284
  %v296 = vpack.c.bf16 %v287, %v286
  %v297 = vpack.c.bf16 %v289, %v288
  %v298 = vld [vmem:[%s3] sm:$0xf]
  %v299 = vld [vmem:[%s3 + $0x4] sm:$0xf]
  %v300 = vld [vmem:[%s3 + $0x8] sm:$0xf]
  %v301 = vld [vmem:[%s3 + $0xc] sm:$0xf]
  %v306 = vunpack.c.l.b16 %v298
  %v307 = vunpack.c.l.b16 %v299
  %v308 = vunpack.c.l.b16 %v300
  %v309 = vunpack.c.l.b16 %v301
  %v310 = vpack.c.b16 %v307, %v306
  %v311 = vpack.c.b16 %v309, %v308
  %v315 = vsel %vm34, %v290, 0
  %v318 = vsel %vm34, %v291, 0
  %v321 = vsel %vm34, %v292, 0
  %v324 = vsel %vm34, %v293, 0
  %v327 = vsel %vm34, %v294, 0
  %v330 = vsel %vm34, %v295, 0
  %v333 = vsel %vm34, %v296, 0
  %v336 = vsel %vm34, %v297, 0
  %338 = vmatprep.subr.bf16.mxu0 0
  %339 = vmatpush1.bf16.msra.mxu0 0
  %340 = vmatprep.subr.bf16.mxu0 0
  %341 = vmatpush1.bf16.msra.mxu0 0
  %342 = vmatprep.subr.bf16.mxu0 0
  %343 = vmatpush1.bf16.msra.mxu0 0
  %344 = vmatprep.subr.bf16.mxu0 0
  %345 = vmatpush1.bf16.msra.mxu0 0
  %346 = vmatprep.subr.bf16.mxu0 0
  %347 = vmatpush1.bf16.msra.mxu0 0
  %348 = vmatprep.subr.bf16.mxu0 0
  %349 = vmatpush1.bf16.msra.mxu0 0
  %350 = vmatprep.subr.bf16.mxu0 0
  %351 = vmatpush1.bf16.msra.mxu0 %v311
  %352 = vmatprep.subr.bf16.mxu0 0
  %353 = vmatpush1.bf16.msra.mxu0 %v310
  %354 = vmatprep.subr.bf16.mxu0 0
  %355 = vmatpush2.bf16.msra.mxu0 0
  %356 = vmatprep.subr.bf16.mxu0 0
  %357 = vmatpush2.bf16.msra.mxu0 0
  %358 = vmatprep.subr.bf16.mxu0 0
  %359 = vmatpush2.bf16.msra.mxu0 0
  %360 = vmatprep.subr.bf16.mxu0 0
  %361 = vmatpush2.bf16.msra.mxu0 0
  %362 = vmatprep.subr.bf16.mxu0 0
  %363 = vmatpush2.bf16.msra.mxu0 0
  %364 = vmatprep.subr.bf16.mxu0 0
  %365 = vmatpush2.bf16.msra.mxu0 0
  %366 = vmatprep.subr.bf16.mxu0 0
  %367 = vmatpush2.bf16.msra.mxu0 0
  %368 = vmatprep.subr.bf16.mxu0 0
  %369 = vmatpush2.bf16.msra.mxu0 0
  %370 = vmatprep.mubr.bf16.mxu0 0
  %371 = vmatmul.mubr.bf16.gmra.mxu0 %v315
  %v372 = vpop.f32.mrf.mxu0
  %v373 = vadd.f32 0.0, %v372
  %v374 = vpop.f32.mrf.mxu0
  %v375 = vpop.f32.mrf.mxu0
  %v376 = vadd.f32 0.0, %v375
  %v377 = vpop.f32.mrf.mxu0
  %378 = vmatprep.mubr.bf16.mxu0 0
  %379 = vmatmul.mubr.bf16.gmra.mxu0 %v318
  %v380 = vpop.f32.mrf.mxu0
  %v381 = vadd.f32 0.0, %v380
  %v382 = vpop.f32.mrf.mxu0
  %v383 = vpop.f32.mrf.mxu0
  %v384 = vadd.f32 0.0, %v383
  %v385 = vpop.f32.mrf.mxu0
  %386 = vmatprep.mubr.bf16.mxu0 0
  %387 = vmatmul.mubr.bf16.gmra.mxu0 %v321
  %v388 = vpop.f32.mrf.mxu0
  %v389 = vadd.f32 0.0, %v388
  %v390 = vpop.f32.mrf.mxu0
  %v391 = vpop.f32.mrf.mxu0
  %v392 = vadd.f32 0.0, %v391
  %v393 = vpop.f32.mrf.mxu0
  %394 = vmatprep.mubr.bf16.mxu0 0
  %395 = vmatmul.mubr.bf16.gmra.mxu0 %v324
  %v396 = vpop.f32.mrf.mxu0
  %v397 = vadd.f32 0.0, %v396
  %v398 = vpop.f32.mrf.mxu0
  %v399 = vpop.f32.mrf.mxu0
  %v400 = vadd.f32 0.0, %v399
  %v401 = vpop.f32.mrf.mxu0
  %402 = vmatprep.mubr.bf16.mxu0 0
  %403 = vmatmul.mubr.bf16.gmra.mxu0 %v327
  %v404 = vpop.f32.mrf.mxu0
  %v405 = vadd.f32 0.0, %v404
  %v406 = vpop.f32.mrf.mxu0
  %v407 = vpop.f32.mrf.mxu0
  %v408 = vadd.f32 0.0, %v407
  %v409 = vpop.f32.mrf.mxu0
  %410 = vmatprep.mubr.bf16.mxu0 0
  %411 = vmatmul.mubr.bf16.gmra.mxu0 %v330
  %v412 = vpop.f32.mrf.mxu0
  %v413 = vadd.f32 0.0, %v412
  %v414 = vpop.f32.mrf.mxu0
  %v415 = vpop.f32.mrf.mxu0
  %v416 = vadd.f32 0.0, %v415
  %v417 = vpop.f32.mrf.mxu0
  %418 = vmatprep.mubr.bf16.mxu0 0
  %419 = vmatmul.mubr.bf16.gmra.mxu0 %v333
  %v420 = vpop.f32.mrf.mxu0
  %v421 = vadd.f32 0.0, %v420
  %v422 = vpop.f32.mrf.mxu0
  %v423 = vpop.f32.mrf.mxu0
  %v424 = vadd.f32 0.0, %v423
  %v425 = vpop.f32.mrf.mxu0
  %426 = vmatprep.mubr.bf16.mxu0 0
  %427 = vmatmul.mubr.bf16.gmra.mxu0 %v336
  %v428 = vpop.f32.mrf.mxu0
  %v429 = vadd.f32 0.0, %v428
  %v430 = vpop.f32.mrf.mxu0
  %v431 = vpop.f32.mrf.mxu0
  %v432 = vadd.f32 0.0, %v431
  %v433 = vpop.f32.mrf.mxu0
  %434 = vdwg.mxu0
  %v435 = vpack.c.bf16 %v376, %v373
  %v436 = vpack.c.bf16 %v384, %v381
  %v437 = vpack.c.bf16 %v392, %v389
  %v438 = vpack.c.bf16 %v400, %v397
  %v439 = vpack.c.bf16 %v408, %v405
  %v440 = vpack.c.bf16 %v416, %v413
  %v441 = vpack.c.bf16 %v424, %v421
  %v442 = vpack.c.bf16 %v432, %v429
  %v451 = vunpack.c.l.b16 %v435
  %v452 = vunpack.c.h.b16 %v435
  %v453 = vunpack.c.l.b16 %v436
  %v454 = vunpack.c.h.b16 %v436
  %v455 = vunpack.c.l.b16 %v437
  %v456 = vunpack.c.h.b16 %v437
  %v457 = vunpack.c.l.b16 %v438
  %v458 = vunpack.c.h.b16 %v438
  %v459 = vunpack.c.l.b16 %v439
  %v460 = vunpack.c.h.b16 %v439
  %v461 = vunpack.c.l.b16 %v440
  %v462 = vunpack.c.h.b16 %v440
  %v463 = vunpack.c.l.b16 %v441
  %v464 = vunpack.c.h.b16 %v441
  %v465 = vunpack.c.l.b16 %v442
  %v466 = vunpack.c.h.b16 %v442
  %v467 = vpack.c.b16 %v451, %v451
  %v468 = vpack.c.b16 %v452, %v452
  %v469 = vpack.c.b16 %v453, %v453
  %v470 = vpack.c.b16 %v454, %v454
  %v471 = vpack.c.b16 %v455, %v455
  %v472 = vpack.c.b16 %v456, %v456
  %v473 = vpack.c.b16 %v457, %v457
  %v474 = vpack.c.b16 %v458, %v458
  %v475 = vpack.c.b16 %v459, %v459
  %v476 = vpack.c.b16 %v460, %v460
  %v477 = vpack.c.b16 %v461, %v461
  %v478 = vpack.c.b16 %v462, %v462
  %v479 = vpack.c.b16 %v463, %v463
  %v480 = vpack.c.b16 %v464, %v464
  %v481 = vpack.c.b16 %v465, %v465
  %v482 = vpack.c.b16 %v466, %v466
  %499 = vst [vmem:[%s4] sm:$0xf] %v467
  %500 = vst [vmem:[%s4 + $0x4] sm:$0xf] %v468
  %501 = vst [vmem:[%s4 + $0x8] sm:$0xf] %v469
  %502 = vst [vmem:[%s4 + $0xc] sm:$0xf] %v470
  %503 = vst [vmem:[%s4 + $0x10] sm:$0xf] %v471
  %504 = vst [vmem:[%s4 + $0x14] sm:$0xf] %v472
  %505 = vst [vmem:[%s4 + $0x18] sm:$0xf] %v473
  %506 = vst [vmem:[%s4 + $0x1c] sm:$0xf] %v474
  %507 = vst [vmem:[%s4 + $0x20] sm:$0xf] %v475
  %508 = vst [vmem:[%s4 + $0x24] sm:$0xf] %v476
  %509 = vst [vmem:[%s4 + $0x28] sm:$0xf] %v477
  %510 = vst [vmem:[%s4 + $0x2c] sm:$0xf] %v478
  %511 = vst [vmem:[%s4 + $0x30] sm:$0xf] %v479
  %512 = vst [vmem:[%s4 + $0x34] sm:$0xf] %v480
  %513 = vst [vmem:[%s4 + $0x38] sm:$0xf] %v481
  %514 = vst [vmem:[%s4 + $0x3c] sm:$0xf] %v482
  // Predicated region
  $region18: #{vss_layer.10} parent=0 // pred_check
    _
  $region19: #{vss_layer.10} parent=0 // pred_check_branch
    %516 = sbr.rel (0) target = $region21
  $region20: #{vss_layer.10} parent=0 // pred_region
    _
  $region21: #{vss_layer.10} parent=0 // pred_fallthru
    _
  // Predicated region
  $region22: #{vss_layer.10} parent=0 // pred_check
    _
  $region23: #{vss_layer.10} parent=0 // pred_check_branch
    %518 = sbr.rel (0) target = $region25
  $region24: #{vss_layer.10} parent=0 // pred_region
    _
  $region25: #{vss_layer.10} parent=0 // pred_fallthru
    _

// kernel: vss_layer.11
$region0: #{vss_layer.11}
  #allocation0 [shape = 'u32[]', space=smem, size = 0x4, offset = 0x4, fixed_abs, tag = 'smem constant byte address 0x4 - core index']
  #allocation1 [shape = 'u32[144,128]{1,0:T(1,128)}', space=vmem, size = 0x12000, scoped, tag = 'internal scratch']
  %s0 = inlined_call_operand.vmem [shape: bf16[2,10,10,64], index: 0, kind: input, shape index: {}]
  %s1 = inlined_call_operand.vmem [shape: f32[9,1,64], index: 1, kind: input, shape index: {}]
  %s2 = inlined_call_operand.vmem [shape: f32[1,64], index: 2, kind: input, shape index: {}]
  %s3 = inlined_call_operand.vmem [shape: bf16[2,8,8,64], index: 3, kind: output, shape index: {}]
  %s4 = sld [smem:[#allocation0]]
  $region45: #{vss_layer.11} parent=0
    _
  %s6 = ssub.s32 1, %s4
  %s7 = scalar_select 0, %s6, %s4
  loop: start=0, step=1, limit=4
  $region2: #{vss_layer.11} parent=0 // loop_pre_header
    _
  $region3: #{vss_layer.11} parent=0 // loop_header
    %s9 = sphi 0, %s13
    %p10 = scmp.ge.s32.totalorder %s9, 4
    %s19 = sphi 0, %s21
    %s22 = sphi 0, %s19
    %s23 = sphi 0, %s22
    %s39 = sphi 0, %s23
    %s43 = sphi 0, %s43
    %s45 = sphi 0, %s43
    %s46 = sphi 0, %s45
    %s60 = sphi 0, %s46
    %s64 = sphi 0, %s64
    %s66 = sphi 0, %s64
    %s67 = sphi 0, %s66
    %s81 = sphi 0, %s67
    %s87 = sphi 0, %s89
    %s90 = sphi 0, %s87
    %s91 = sphi 0, %s90
    %s107 = sphi 0, %s91
  $region4: #{vss_layer.11} parent=0 // loop_header_branch
    %12 = sbr.rel (%p10) target = $region8
  $region5: #{vss_layer.11} parent=0 // loop_body
    %s14 = ssub.s32 %s9, 1
    %s15 = ssub.s32 %s9, 2
    %s16 = sadd.s32 %s9, 1
    %s17 = ssub.s32 %s9, %s16
    %p18 = scmp.eq.s32.totalorder %s17, 0
    %s20 = sadd.s32 %s19, 1
    %s21 = scalar_select %p18, %s19, %s20
    %p24 = pneg %p18
    %p25 = scmp.eq.s32.totalorder %s9, 1
    %p26 = por %p24, %p25
    %p27 = scmp.ne.s32.totalorder %s19, %s22
    %p28 = scmp.eq.s32.totalorder %s9, 0
    %p29 = por %p27, %p28
    %p30 = scmp.ne.s32.totalorder %s19, %s22
    %p31 = scmp.eq.s32.totalorder %s14, 1
    %p32 = por %p30, %p31
    %p33 = scmp.ne.s32.totalorder %s22, %s23
    %p34 = scmp.eq.s32.totalorder %s14, 0
    %p35 = por %p33, %p34
    %p36 = scmp.ne.s32.totalorder %s22, %s23
    %p37 = scmp.eq.s32.totalorder %s15, 1
    %p38 = por %p36, %p37
    %p40 = scmp.ne.s32.totalorder %s23, %s39
    %p41 = scmp.eq.s32.totalorder %s15, 0
    %p42 = por %p40, %p41
    %s44 = sadd.s32 %s43, 1
    %p47 = scmp.eq.s32.totalorder %s9, 1
    %p48 = scmp.ne.s32.totalorder %s43, %s45
    %p49 = scmp.eq.s32.totalorder %s9, 0
    %p50 = por %p48, %p49
    %p51 = scmp.ne.s32.totalorder %s43, %s45
    %p52 = scmp.eq.s32.totalorder %s14, 1
    %p53 = por %p51, %p52
    %p54 = scmp.ne.s32.totalorder %s45, %s46
    %p55 = scmp.eq.s32.totalorder %s14, 0
    %p56 = por %p54, %p55
    %p57 = scmp.ne.s32.totalorder %s45, %s46
    %p58 = scmp.eq.s32.totalorder %s15, 1
    %p59 = por %p57, %p58
    %p61 = scmp.ne.s32.totalorder %s46, %s60
    %p62 = scmp.eq.s32.totalorder %s15, 0
    %p63 = por %p61, %p62
    %s65 = sadd.s32 %s64, 1
    %p68 = scmp.eq.s32.totalorder %s9, 1
    %p69 = scmp.ne.s32.totalorder %s64, %s66
    %p70 = scmp.eq.s32.totalorder %s9, 0
    %p71 = por %p69, %p70
    %p72 = scmp.ne.s32.totalorder %s64, %s66
    %p73 = scmp.eq.s32.totalorder %s14, 1
    %p74 = por %p72, %p73
    %p75 = scmp.ne.s32.totalorder %s66, %s67
    %p76 = scmp.eq.s32.totalorder %s14, 0
    %p77 = por %p75, %p76
    %p78 = scmp.ne.s32.totalorder %s66, %s67
    %p79 = scmp.eq.s32.totalorder %s15, 1
    %p80 = por %p78, %p79
    %p82 = scmp.ne.s32.totalorder %s67, %s81
    %p83 = scmp.eq.s32.totalorder %s15, 0
    %p84 = por %p82, %p83
    %s85 = ssub.s32 %s9, %s16
    %p86 = scmp.eq.s32.totalorder %s85, 0
    %s88 = sadd.s32 %s87, 1
    %s89 = scalar_select %p86, %s87, %s88
    %p92 = pneg %p86
    %p93 = scmp.eq.s32.totalorder %s9, 1
    %p94 = por %p92, %p93
    %p95 = scmp.ne.s32.totalorder %s87, %s90
    %p96 = scmp.eq.s32.totalorder %s9, 0
    %p97 = por %p95, %p96
    %p98 = scmp.ne.s32.totalorder %s87, %s90
    %p99 = scmp.eq.s32.totalorder %s14, 1
    %p100 = por %p98, %p99
    %p101 = scmp.ne.s32.totalorder %s90, %s91
    %p102 = scmp.eq.s32.totalorder %s14, 0
    %p103 = por %p101, %p102
    %p104 = scmp.ne.s32.totalorder %s90, %s91
    %p105 = scmp.eq.s32.totalorder %s15, 1
    %p106 = por %p104, %p105
    %p108 = scmp.ne.s32.totalorder %s91, %s107
    %p109 = scmp.eq.s32.totalorder %s15, 0
    %p110 = por %p108, %p109
    %p111 = scmp.le.s32.totalorder 1, %s9
    %p112 = scmp.lt.s32.totalorder %s9, 3
    %p113 = pnand %p111, %p112
    %p114 = pneg %p113
    // Predicated region
    $region9: #{vss_layer.11} parent=5 // pred_check
      _
    $region10: #{vss_layer.11} parent=5 // pred_check_branch
      %116 = sbr.rel (%p113) target = $region12
    $region11: #{vss_layer.11} parent=5 // pred_region
      %s117 = ssub.s32 %s9, 1
      // Predicated region
      $region13: #{vss_layer.11} parent=11 // pred_check
        %p118 = pneg %p56
      $region14: #{vss_layer.11} parent=11 // pred_check_branch
        %120 = sbr.rel (%p118) target = $region16
      $region15: #{vss_layer.11} parent=11 // pred_region
        _
      $region16: #{vss_layer.11} parent=11 // pred_fallthru
        _
      // Predicated region
      $region17: #{vss_layer.11} parent=11 // pred_check
        %p121 = pneg %p77
      $region18: #{vss_layer.11} parent=11 // pred_check_branch
        %123 = sbr.rel (%p121) target = $region20
      $region19: #{vss_layer.11} parent=11 // pred_region
        _
      $region20: #{vss_layer.11} parent=11 // pred_fallthru
        _
    $region12: #{vss_layer.11} parent=5 // pred_fallthru
      _
    %p124 = scmp.lt.s32.totalorder %s9, 2
    // Predicated region
    $region21: #{vss_layer.11} parent=5 // pred_check
      %p125 = pneg %p124
    $region22: #{vss_layer.11} parent=5 // pred_check_branch
      %127 = sbr.rel (%p125) target = $region24
    $region23: #{vss_layer.11} parent=5 // pred_region
      // Predicated region
      $region25: #{vss_layer.11} parent=23 // pred_check
        %p128 = pneg %p29
      $region26: #{vss_layer.11} parent=23 // pred_check_branch
        %130 = sbr.rel (%p128) target = $region28
      $region27: #{vss_layer.11} parent=23 // pred_region
        %p131 = scmp.lt.s32.totalorder %s9, 1
        %s132 = scalar_select %p131, %s9, 1
        %s133 = smul.addr %s132, 20
        %s134 = smul.addr %s133, 4
        %s135 = scalar_lea.vmem %s0, %s134
      $region28: #{vss_layer.11} parent=23 // pred_fallthru
        _
    $region24: #{vss_layer.11} parent=5 // pred_fallthru
      _
    %p136 = scmp.le.s32.totalorder 1, %s9
    %p137 = scmp.lt.s32.totalorder %s9, 3
    %p138 = pnand %p136, %p137
    %p139 = pneg %p138
    // Predicated region
    $region29: #{vss_layer.11} parent=5 // pred_check
      _
    $region30: #{vss_layer.11} parent=5 // pred_check_branch
      %141 = sbr.rel (%p138) target = $region32
    $region31: #{vss_layer.11} parent=5 // pred_region
      %s142 = ssub.s32 %s9, 1
      %p143 = scmp.lt.s32.totalorder %s14, 1
      %s144 = scalar_select %p143, %s14, 1
      %s145 = smul.addr %s144, 20
      %s146 = smul.addr %s145, 4
      %s147 = scalar_lea.vmem %s0, %s146
      %p148 = pneg %p35
      %p149 = pneg %p32
      %p150 = pneg %p56
      %p151 = pneg %p53
      %p152 = pneg %p77
      %p153 = pneg %p74
      %p154 = pneg %p103
      %p155 = pneg %p100
      %p156 = scmp.lt.s32.totalorder %s14, 1
      %s157 = scalar_select %p156, %s14, 1
      %s158 = smul.addr %s157, 8
      %s159 = smul.addr %s158, 4
      %s160 = scalar_lea.vmem %s3, %s159
      %p161 = scmp.lt.s32.totalorder %s14, 1
      %s162 = scalar_select %p161, %s14, 1
      %s163 = smul.addr %s162, 20
      %s164 = smul.addr %s163, 4
      %s165 = scalar_lea.vmem %s0, %s164
      %p166 = scmp.lt.s32.totalorder %s14, 1
      %s167 = scalar_select %p166, %s14, 1
      %s168 = smul.addr %s167, 8
      %s169 = smul.addr %s168, 4
      %s170 = scalar_lea.vmem %s3, %s169
      %v171 = vld [vmem:[%s1] sm:$0x1]
      %v172 = vld [vmem:[%s1 + $0x1] sm:$0x1]
      %v173 = vld [vmem:[%s1 + $0x2] sm:$0x1]
      %v174 = vld [vmem:[%s1 + $0x3] sm:$0x1]
      %v175 = vld [vmem:[%s1 + $0x4] sm:$0x1]
      %v176 = vld [vmem:[%s1 + $0x5] sm:$0x1]
      %v177 = vld [vmem:[%s1 + $0x6] sm:$0x1]
      %v178 = vld [vmem:[%s1 + $0x7] sm:$0x1]
      %v179 = vld [vmem:[%s1 + $0x8] sm:$0x1]
      %v180 = vld [vmem:[%s2] sm:$0x1]
      %v181 = vld [vmem:[%s165] sm:$0xf]
      %v182 = vld [vmem:[%s165 + $0x4] sm:$0x1]
      %v183 = vld [vmem:[%s165 + $0x8] sm:$0xf]
      %v184 = vld [vmem:[%s165 + $0xc] sm:$0x1]
      %v185 = vld [vmem:[%s165 + $0x10] sm:$0xf]
      %v186 = vld [vmem:[%s165 + $0x14] sm:$0x1]
      %v187 = vld [vmem:[%s165 + $0x18] sm:$0xf]
      %v188 = vld [vmem:[%s165 + $0x1c] sm:$0x1]
      %v189 = vld [vmem:[%s165 + $0x20] sm:$0xf]
      %v190 = vld [vmem:[%s165 + $0x24] sm:$0x1]
      %v191 = vld [vmem:[%s165 + $0x28] sm:$0xf]
      %v192 = vld [vmem:[%s165 + $0x2c] sm:$0x1]
      %v193 = vld [vmem:[%s165 + $0x30] sm:$0xf]
      %v194 = vld [vmem:[%s165 + $0x34] sm:$0x1]
      %v195 = vld [vmem:[%s165 + $0x38] sm:$0xf]
      %v196 = vld [vmem:[%s165 + $0x3c] sm:$0x1]
      %v197 = vunpack.c.l.bf16 %v181
      %v198 = vunpack.c.l.bf16 %v182
      %v199 = vunpack.c.l.bf16 %v183
      %v200 = vunpack.c.l.bf16 %v184
      %v201 = vunpack.c.l.bf16 %v185
      %v202 = vunpack.c.l.bf16 %v186
      %v203 = vunpack.c.l.bf16 %v187
      %v204 = vunpack.c.l.bf16 %v188
      %v205 = vunpack.c.l.bf16 %v189
      %v206 = vunpack.c.l.bf16 %v190
      %v207 = vunpack.c.l.bf16 %v191
      %v208 = vunpack.c.l.bf16 %v192
      %v209 = vunpack.c.l.bf16 %v193
      %v210 = vunpack.c.l.bf16 %v194
      %v211 = vunpack.c.l.bf16 %v195
      %v212 = vunpack.c.l.bf16 %v196
      %v214 = vlaneseq
      %v215 = vshrl.u32 %v214, 7
      %v216 = vsub.s32 0, %v215
      %v217 = vrot.slane %v171, %v216
      %v219 = vmul.f32 %v197, %v217
      %v220 = vmul.f32 %v199, %v217
      %v221 = vmul.f32 %v201, %v217
      %v222 = vmul.f32 %v203, %v217
      %v223 = vmul.f32 %v205, %v217
      %v224 = vmul.f32 %v207, %v217
      %v225 = vmul.f32 %v209, %v217
      %v226 = vmul.f32 %v211, %v217
      %v227 = vadd.f32 %v219, 0.0
      %v228 = vadd.f32 %v220, 0.0
      %v229 = vadd.f32 %v221, 0.0
      %v230 = vadd.f32 %v222, 0.0
      %v231 = vadd.f32 %v223, 0.0
      %v232 = vadd.f32 %v224, 0.0
      %v233 = vadd.f32 %v225, 0.0
      %v234 = vadd.f32 %v226, 0.0
      %v236 = vlaneseq
      %v237 = vshrl.u32 %v236, 7
      %v238 = vsub.s32 0, %v237
      %v239 = vrot.slane %v172, %v238
      %v241 = vmul.f32 %v197, %v239
      %v242 = vmul.f32 %v198, %v239
      %v243 = vmul.f32 %v199, %v239
      %v244 = vmul.f32 %v200, %v239
      %v245 = vmul.f32 %v201, %v239
      %v246 = vmul.f32 %v202, %v239
      %v247 = vmul.f32 %v203, %v239
      %v248 = vmul.f32 %v204, %v239
      %v249 = vmul.f32 %v205, %v239
      %v250 = vmul.f32 %v206, %v239
      %v251 = vmul.f32 %v207, %v239
      %v252 = vmul.f32 %v208, %v239
      %v253 = vmul.f32 %v209, %v239
      %v254 = vmul.f32 %v210, %v239
      %v255 = vmul.f32 %v211, %v239
      %v256 = vmul.f32 %v212, %v239
      %vm273 = vcmask 1046528
      %v274 = vrot.slane %v241, 1
      %v275 = vrot.slane %v242, 1
      %v276 = vsel %vm273, %v274, %v275
      %v277 = vrot.slane %v243, 1
      %v278 = vrot.slane %v244, 1
      %v279 = vsel %vm273, %v277, %v278
      %v280 = vrot.slane %v245, 1
      %v281 = vrot.slane %v246, 1
      %v282 = vsel %vm273, %v280, %v281
      %v283 = vrot.slane %v247, 1
      %v284 = vrot.slane %v248, 1
      %v285 = vsel %vm273, %v283, %v284
      %v286 = vrot.slane %v249, 1
      %v287 = vrot.slane %v250, 1
      %v288 = vsel %vm273, %v286, %v287
      %v289 = vrot.slane %v251, 1
      %v290 = vrot.slane %v252, 1
      %v291 = vsel %vm273, %v289, %v290
      %v292 = vrot.slane %v253, 1
      %v293 = vrot.slane %v254, 1
      %v294 = vsel %vm273, %v292, %v293
      %v295 = vrot.slane %v255, 1
      %v296 = vrot.slane %v256, 1
      %v297 = vsel %vm273, %v295, %v296
      %v306 = vadd.f32 %v227, %v276
      %v307 = vadd.f32 %v228, %v279
      %v308 = vadd.f32 %v229, %v282
      %v309 = vadd.f32 %v230, %v285
      %v310 = vadd.f32 %v231, %v288
      %v311 = vadd.f32 %v232, %v291
      %v312 = vadd.f32 %v233, %v294
      %v313 = vadd.f32 %v234, %v297
      %v315 = vlaneseq
      %v316 = vshrl.u32 %v315, 7
      %v317 = vsub.s32 0, %v316
      %v318 = vrot.slane %v173, %v317
      %v320 = vmul.f32 %v197, %v318
      %v321 = vmul.f32 %v198, %v318
      %v322 = vmul.f32 %v199, %v318
      %v323 = vmul.f32 %v200, %v318
      %v324 = vmul.f32 %v201, %v318
      %v325 = vmul.f32 %v202, %v318
      %v326 = vmul.f32 %v203, %v318
      %v327 = vmul.f32 %v204, %v318
      %v328 = vmul.f32 %v205, %v318
      %v329 = vmul.f32 %v206, %v318
      %v330 = vmul.f32 %v207, %v318
      %v331 = vmul.f32 %v208, %v318
      %v332 = vmul.f32 %v209, %v318
      %v333 = vmul.f32 %v210, %v318
      %v334 = vmul.f32 %v211, %v318
      %v335 = vmul.f32 %v212, %v318
      %vm352 = vcmask 1045504
      %v353 = vrot.slane %v320, 2
      %v354 = vrot.slane %v321, 2
      %v355 = vsel %vm352, %v353, %v354
      %v356 = vrot.slane %v322, 2
      %v357 = vrot.slane %v323, 2
      %v358 = vsel %vm352, %v356, %v357
      %v359 = vrot.slane %v324, 2
      %v360 = vrot.slane %v325, 2
      %v361 = vsel %vm352, %v359, %v360
      %v362 = vrot.slane %v326, 2
      %v363 = vrot.slane %v327, 2
      %v364 = vsel %vm352, %v362, %v363
      %v365 = vrot.slane %v328, 2
      %v366 = vrot.slane %v329, 2
      %v367 = vsel %vm352, %v365, %v366
      %v368 = vrot.slane %v330, 2
      %v369 = vrot.slane %v331, 2
      %v370 = vsel %vm352, %v368, %v369
      %v371 = vrot.slane %v332, 2
      %v372 = vrot.slane %v333, 2
      %v373 = vsel %vm352, %v371, %v372
      %v374 = vrot.slane %v334, 2
      %v375 = vrot.slane %v335, 2
      %v376 = vsel %vm352, %v374, %v375
      %v385 = vadd.f32 %v306, %v355
      %v386 = vadd.f32 %v307, %v358
      %v387 = vadd.f32 %v308, %v361
      %v388 = vadd.f32 %v309, %v364
      %v389 = vadd.f32 %v310, %v367
      %v390 = vadd.f32 %v311, %v370
      %v391 = vadd.f32 %v312, %v373
      %v392 = vadd.f32 %v313, %v376
      %s393 = scalar_lea.vmem %s165, 8
      %v394 = vld [vmem:[%s393] sm:$0xf]
      %v395 = vld [vmem:[%s393 + $0x4] sm:$0x1]
      %v396 = vld [vmem:[%s393 + $0x8] sm:$0xf]
      %v397 = vld [vmem:[%s393 + $0xc] sm:$0x1]
      %v398 = vld [vmem:[%s393 + $0x10] sm:$0xf]
      %v399 = vld [vmem:[%s393 + $0x14] sm:$0x1]
      %v400 = vld [vmem:[%s393 + $0x18] sm:$0xf]
      %v401 = vld [vmem:[%s393 + $0x1c] sm:$0x1]
      %v402 = vld [vmem:[%s393 + $0x20] sm:$0xf]
      %v403 = vld [vmem:[%s393 + $0x24] sm:$0x1]
      %v404 = vld [vmem:[%s393 + $0x28] sm:$0xf]
      %v405 = vld [vmem:[%s393 + $0x2c] sm:$0x1]
      %v406 = vld [vmem:[%s393 + $0x30] sm:$0xf]
      %v407 = vld [vmem:[%s393 + $0x34] sm:$0x1]
      %v408 = vld [vmem:[%s393 + $0x38] sm:$0xf]
      %v409 = vld [vmem:[%s393 + $0x3c] sm:$0x1]
      %v410 = vunpack.c.l.bf16 %v394
      %v411 = vunpack.c.l.bf16 %v395
      %v412 = vunpack.c.l.bf16 %v396
      %v413 = vunpack.c.l.bf16 %v397
      %v414 = vunpack.c.l.bf16 %v398
      %v415 = vunpack.c.l.bf16 %v399
      %v416 = vunpack.c.l.bf16 %v400
      %v417 = vunpack.c.l.bf16 %v401
      %v418 = vunpack.c.l.bf16 %v402
      %v419 = vunpack.c.l.bf16 %v403
      %v420 = vunpack.c.l.bf16 %v404
      %v421 = vunpack.c.l.bf16 %v405
      %v422 = vunpack.c.l.bf16 %v406
      %v423 = vunpack.c.l.bf16 %v407
      %v424 = vunpack.c.l.bf16 %v408
      %v425 = vunpack.c.l.bf16 %v409
      %v427 = vlaneseq
      %v428 = vshrl.u32 %v427, 7
      %v429 = vsub.s32 0, %v428
      %v430 = vrot.slane %v174, %v429
      %v432 = vmul.f32 %v410, %v430
      %v433 = vmul.f32 %v412, %v430
      %v434 = vmul.f32 %v414, %v430
      %v435 = vmul.f32 %v416, %v430
      %v436 = vmul.f32 %v418, %v430
      %v437 = vmul.f32 %v420, %v430
      %v438 = vmul.f32 %v422, %v430
      %v439 = vmul.f32 %v424, %v430
      %v440 = vadd.f32 %v385, %v432
      %v441 = vadd.f32 %v386, %v433
      %v442 = vadd.f32 %v387, %v434
      %v443 = vadd.f32 %v388, %v435
      %v444 = vadd.f32 %v389, %v436
      %v445 = vadd.f32 %v390, %v437
      %v446 = vadd.f32 %v391, %v438
      %v447 = vadd.f32 %v392, %v439
      %v449 = vlaneseq
      %v450 = vshrl.u32 %v449, 7
      %v451 = vsub.s32 0, %v450
      %v452 = vrot.slane %v175, %v451
      %v454 = vmul.f32 %v410, %v452
      %v455 = vmul.f32 %v411, %v452
      %v456 = vmul.f32 %v412, %v452
      %v457 = vmul.f32 %v413, %v452
      %v458 = vmul.f32 %v414, %v452
      %v459 = vmul.f32 %v415, %v452
      %v460 = vmul.f32 %v416, %v452
      %v461 = vmul.f32 %v417, %v452
      %v462 = vmul.f32 %v418, %v452
      %v463 = vmul.f32 %v419, %v452
      %v464 = vmul.f32 %v420, %v452
      %v465 = vmul.f32 %v421, %v452
      %v466 = vmul.f32 %v422, %v452
      %v467 = vmul.f32 %v423, %v452
      %v468 = vmul.f32 %v424, %v452
      %v469 = vmul.f32 %v425, %v452
      %v486 = vrot.slane %v454, 1
      %v487 = vrot.slane %v455, 1
      %v488 = vsel %vm273, %v486, %v487
      %v489 = vrot.slane %v456, 1
      %v490 = vrot.slane %v457, 1
      %v491 = vsel %vm273, %v489, %v490
      %v492 = vrot.slane %v458, 1
      %v493 = vrot.slane %v459, 1
      %v494 = vsel %vm273, %v492, %v493
      %v495 = vrot.slane %v460, 1
      %v496 = vrot.slane %v461, 1
      %v497 = vsel %vm273, %v495, %v496
      %v498 = vrot.slane %v462, 1
      %v499 = vrot.slane %v463, 1
      %v500 = vsel %vm273, %v498, %v499
      %v501 = vrot.slane %v464, 1
      %v502 = vrot.slane %v465, 1
      %v503 = vsel %vm273, %v501, %v502
      %v504 = vrot.slane %v466, 1
      %v505 = vrot.slane %v467, 1
      %v506 = vsel %vm273, %v504, %v505
      %v507 = vrot.slane %v468, 1
      %v508 = vrot.slane %v469, 1
      %v509 = vsel %vm273, %v507, %v508
      %v518 = vadd.f32 %v440, %v488
      %v519 = vadd.f32 %v441, %v491
      %v520 = vadd.f32 %v442, %v494
      %v521 = vadd.f32 %v443, %v497
      %v522 = vadd.f32 %v444, %v500
      %v523 = vadd.f32 %v445, %v503
      %v524 = vadd.f32 %v446, %v506
      %v525 = vadd.f32 %v447, %v509
      %v527 = vlaneseq
      %v528 = vshrl.u32 %v527, 7
      %v529 = vsub.s32 0, %v528
      %v530 = vrot.slane %v176, %v529
      %v532 = vmul.f32 %v410, %v530
      %v533 = vmul.f32 %v411, %v530
      %v534 = vmul.f32 %v412, %v530
      %v535 = vmul.f32 %v413, %v530
      %v536 = vmul.f32 %v414, %v530
      %v537 = vmul.f32 %v415, %v530
      %v538 = vmul.f32 %v416, %v530
      %v539 = vmul.f32 %v417, %v530
      %v540 = vmul.f32 %v418, %v530
      %v541 = vmul.f32 %v419, %v530
      %v542 = vmul.f32 %v420, %v530
      %v543 = vmul.f32 %v421, %v530
      %v544 = vmul.f32 %v422, %v530
      %v545 = vmul.f32 %v423, %v530
      %v546 = vmul.f32 %v424, %v530
      %v547 = vmul.f32 %v425, %v530
      %v564 = vrot.slane %v532, 2
      %v565 = vrot.slane %v533, 2
      %v566 = vsel %vm352, %v564, %v565
      %v567 = vrot.slane %v534, 2
      %v568 = vrot.slane %v535, 2
      %v569 = vsel %vm352, %v567, %v568
      %v570 = vrot.slane %v536, 2
      %v571 = vrot.slane %v537, 2
      %v572 = vsel %vm352, %v570, %v571
      %v573 = vrot.slane %v538, 2
      %v574 = vrot.slane %v539, 2
      %v575 = vsel %vm352, %v573, %v574
      %v576 = vrot.slane %v540, 2
      %v577 = vrot.slane %v541, 2
      %v578 = vsel %vm352, %v576, %v577
      %v579 = vrot.slane %v542, 2
      %v580 = vrot.slane %v543, 2
      %v581 = vsel %vm352, %v579, %v580
      %v582 = vrot.slane %v544, 2
      %v583 = vrot.slane %v545, 2
      %v584 = vsel %vm352, %v582, %v583
      %v585 = vrot.slane %v546, 2
      %v586 = vrot.slane %v547, 2
      %v587 = vsel %vm352, %v585, %v586
      %v596 = vadd.f32 %v518, %v566
      %v597 = vadd.f32 %v519, %v569
      %v598 = vadd.f32 %v520, %v572
      %v599 = vadd.f32 %v521, %v575
      %v600 = vadd.f32 %v522, %v578
      %v601 = vadd.f32 %v523, %v581
      %v602 = vadd.f32 %v524, %v584
      %v603 = vadd.f32 %v525, %v587
      %s604 = scalar_lea.vmem %s165, 16
      %v605 = vld [vmem:[%s604] sm:$0xf]
      %v606 = vld [vmem:[%s604 + $0x4] sm:$0x1]
      %v607 = vld [vmem:[%s604 + $0x8] sm:$0xf]
      %v608 = vld [vmem:[%s604 + $0xc] sm:$0x1]
      %v609 = vld [vmem:[%s604 + $0x10] sm:$0xf]
      %v610 = vld [vmem:[%s604 + $0x14] sm:$0x1]
      %v611 = vld [vmem:[%s604 + $0x18] sm:$0xf]
      %v612 = vld [vmem:[%s604 + $0x1c] sm:$0x1]
      %v613 = vld [vmem:[%s604 + $0x20] sm:$0xf]
      %v614 = vld [vmem:[%s604 + $0x24] sm:$0x1]
      %v615 = vld [vmem:[%s604 + $0x28] sm:$0xf]
      %v616 = vld [vmem:[%s604 + $0x2c] sm:$0x1]
      %v617 = vld [vmem:[%s604 + $0x30] sm:$0xf]
      %v618 = vld [vmem:[%s604 + $0x34] sm:$0x1]
      %v619 = vld [vmem:[%s604 + $0x38] sm:$0xf]
      %v620 = vld [vmem:[%s604 + $0x3c] sm:$0x1]
      %v621 = vunpack.c.l.bf16 %v605
      %v622 = vunpack.c.l.bf16 %v606
      %v623 = vunpack.c.l.bf16 %v607
      %v624 = vunpack.c.l.bf16 %v608
      %v625 = vunpack.c.l.bf16 %v609
      %v626 = vunpack.c.l.bf16 %v610
      %v627 = vunpack.c.l.bf16 %v611
      %v628 = vunpack.c.l.bf16 %v612
      %v629 = vunpack.c.l.bf16 %v613
      %v630 = vunpack.c.l.bf16 %v614
      %v631 = vunpack.c.l.bf16 %v615
      %v632 = vunpack.c.l.bf16 %v616
      %v633 = vunpack.c.l.bf16 %v617
      %v634 = vunpack.c.l.bf16 %v618
      %v635 = vunpack.c.l.bf16 %v619
      %v636 = vunpack.c.l.bf16 %v620
      %v638 = vlaneseq
      %v639 = vshrl.u32 %v638, 7
      %v640 = vsub.s32 0, %v639
      %v641 = vrot.slane %v177, %v640
      %v643 = vmul.f32 %v621, %v641
      %v644 = vmul.f32 %v623, %v641
      %v645 = vmul.f32 %v625, %v641
      %v646 = vmul.f32 %v627, %v641
      %v647 = vmul.f32 %v629, %v641
      %v648 = vmul.f32 %v631, %v641
      %v649 = vmul.f32 %v633, %v641
      %v650 = vmul.f32 %v635, %v641
      %v651 = vadd.f32 %v596, %v643
      %v652 = vadd.f32 %v597, %v644
      %v653 = vadd.f32 %v598, %v645
      %v654 = vadd.f32 %v599, %v646
      %v655 = vadd.f32 %v600, %v647
      %v656 = vadd.f32 %v601, %v648
      %v657 = vadd.f32 %v602, %v649
      %v658 = vadd.f32 %v603, %v650
      %v660 = vlaneseq
      %v661 = vshrl.u32 %v660, 7
      %v662 = vsub.s32 0, %v661
      %v663 = vrot.slane %v178, %v662
      %v665 = vmul.f32 %v621, %v663
      %v666 = vmul.f32 %v622, %v663
      %v667 = vmul.f32 %v623, %v663
      %v668 = vmul.f32 %v624, %v663
      %v669 = vmul.f32 %v625, %v663
      %v670 = vmul.f32 %v626, %v663
      %v671 = vmul.f32 %v627, %v663
      %v672 = vmul.f32 %v628, %v663
      %v673 = vmul.f32 %v629, %v663
      %v674 = vmul.f32 %v630, %v663
      %v675 = vmul.f32 %v631, %v663
      %v676 = vmul.f32 %v632, %v663
      %v677 = vmul.f32 %v633, %v663
      %v678 = vmul.f32 %v634, %v663
      %v679 = vmul.f32 %v635, %v663
      %v680 = vmul.f32 %v636, %v663
      %v697 = vrot.slane %v665, 1
      %v698 = vrot.slane %v666, 1
      %v699 = vsel %vm273, %v697, %v698
      %v700 = vrot.slane %v667, 1
      %v701 = vrot.slane %v668, 1
      %v702 = vsel %vm273, %v700, %v701
      %v703 = vrot.slane %v669, 1
      %v704 = vrot.slane %v670, 1
      %v705 = vsel %vm273, %v703, %v704
      %v706 = vrot.slane %v671, 1
      %v707 = vrot.slane %v672, 1
      %v708 = vsel %vm273, %v706, %v707
      %v709 = vrot.slane %v673, 1
      %v710 = vrot.slane %v674, 1
      %v711 = vsel %vm273, %v709, %v710
      %v712 = vrot.slane %v675, 1
      %v713 = vrot.slane %v676, 1
      %v714 = vsel %vm273, %v712, %v713
      %v715 = vrot.slane %v677, 1
      %v716 = vrot.slane %v678, 1
      %v717 = vsel %vm273, %v715, %v716
      %v718 = vrot.slane %v679, 1
      %v719 = vrot.slane %v680, 1
      %v720 = vsel %vm273, %v718, %v719
      %v729 = vadd.f32 %v651, %v699
      %v730 = vadd.f32 %v652, %v702
      %v731 = vadd.f32 %v653, %v705
      %v732 = vadd.f32 %v654, %v708
      %v733 = vadd.f32 %v655, %v711
      %v734 = vadd.f32 %v656, %v714
      %v735 = vadd.f32 %v657, %v717
      %v736 = vadd.f32 %v658, %v720
      %v738 = vlaneseq
      %v739 = vshrl.u32 %v738, 7
      %v740 = vsub.s32 0, %v739
      %v741 = vrot.slane %v179, %v740
      %v743 = vmul.f32 %v621, %v741
      %v744 = vmul.f32 %v622, %v741
      %v745 = vmul.f32 %v623, %v741
      %v746 = vmul.f32 %v624, %v741
      %v747 = vmul.f32 %v625, %v741
      %v748 = vmul.f32 %v626, %v741
      %v749 = vmul.f32 %v627, %v741
      %v750 = vmul.f32 %v628, %v741
      %v751 = vmul.f32 %v629, %v741
      %v752 = vmul.f32 %v630, %v741
      %v753 = vmul.f32 %v631, %v741
      %v754 = vmul.f32 %v632, %v741
      %v755 = vmul.f32 %v633, %v741
      %v756 = vmul.f32 %v634, %v741
      %v757 = vmul.f32 %v635, %v741
      %v758 = vmul.f32 %v636, %v741
      %v775 = vrot.slane %v743, 2
      %v776 = vrot.slane %v744, 2
      %v777 = vsel %vm352, %v775, %v776
      %v778 = vrot.slane %v745, 2
      %v779 = vrot.slane %v746, 2
      %v780 = vsel %vm352, %v778, %v779
      %v781 = vrot.slane %v747, 2
      %v782 = vrot.slane %v748, 2
      %v783 = vsel %vm352, %v781, %v782
      %v784 = vrot.slane %v749, 2
      %v785 = vrot.slane %v750, 2
      %v786 = vsel %vm352, %v784, %v785
      %v787 = vrot.slane %v751, 2
      %v788 = vrot.slane %v752, 2
      %v789 = vsel %vm352, %v787, %v788
      %v790 = vrot.slane %v753, 2
      %v791 = vrot.slane %v754, 2
      %v792 = vsel %vm352, %v790, %v791
      %v793 = vrot.slane %v755, 2
      %v794 = vrot.slane %v756, 2
      %v795 = vsel %vm352, %v793, %v794
      %v796 = vrot.slane %v757, 2
      %v797 = vrot.slane %v758, 2
      %v798 = vsel %vm352, %v796, %v797
      %v807 = vadd.f32 %v729, %v777
      %v808 = vadd.f32 %v730, %v780
      %v809 = vadd.f32 %v731, %v783
      %v810 = vadd.f32 %v732, %v786
      %v811 = vadd.f32 %v733, %v789
      %v812 = vadd.f32 %v734, %v792
      %v813 = vadd.f32 %v735, %v795
      %v814 = vadd.f32 %v736, %v798
      %v816 = vlaneseq
      %v817 = vshrl.u32 %v816, 7
      %v818 = vsub.s32 0, %v817
      %v819 = vrot.slane %v180, %v818
      %v821 = vadd.f32 %v807, %v819
      %v822 = vadd.f32 %v808, %v819
      %v823 = vadd.f32 %v809, %v819
      %v824 = vadd.f32 %v810, %v819
      %v825 = vadd.f32 %v811, %v819
      %v826 = vadd.f32 %v812, %v819
      %v827 = vadd.f32 %v813, %v819
      %v828 = vadd.f32 %v814, %v819
      %v829 = vxor.u32 %v821, 2147483648
      %v830 = vxor.u32 %v822, 2147483648
      %v831 = vxor.u32 %v823, 2147483648
      %v832 = vxor.u32 %v824, 2147483648
      %v833 = vxor.u32 %v825, 2147483648
      %v834 = vxor.u32 %v826, 2147483648
      %v835 = vxor.u32 %v827, 2147483648
      %v836 = vxor.u32 %v828, 2147483648
      %v837 = vmul.f32 %v829, 1.442695
      %v838 = vpow.pop %v837
      %v839 = vmul.f32 %v830, 1.442695
      %v840 = vpow.pop %v839
      %v841 = vmul.f32 %v831, 1.442695
      %v842 = vpow.pop %v841
      %v843 = vmul.f32 %v832, 1.442695
      %v844 = vpow.pop %v843
      %v845 = vmul.f32 %v833, 1.442695
      %v846 = vpow.pop %v845
      %v847 = vmul.f32 %v834, 1.442695
      %v848 = vpow.pop %v847
      %v849 = vmul.f32 %v835, 1.442695
      %v850 = vpow.pop %v849
      %v851 = vmul.f32 %v836, 1.442695
      %v852 = vpow.pop %v851
      %v853 = vadd.f32 %v838, 1.0
      %v854 = vadd.f32 %v840, 1.0
      %v855 = vadd.f32 %v842, 1.0
      %v856 = vadd.f32 %v844, 1.0
      %v857 = vadd.f32 %v846, 1.0
      %v858 = vadd.f32 %v848, 1.0
      %v859 = vadd.f32 %v850, 1.0
      %v860 = vadd.f32 %v852, 1.0
      %v861 = vrcp.pop %v853
      %v862 = vmul.f32 1.0, %v861
      %v863 = vrcp.pop %v854
      %v864 = vmul.f32 1.0, %v863
      %v865 = vrcp.pop %v855
      %v866 = vmul.f32 1.0, %v865
      %v867 = vrcp.pop %v856
      %v868 = vmul.f32 1.0, %v867
      %v869 = vrcp.pop %v857
      %v870 = vmul.f32 1.0, %v869
      %v871 = vrcp.pop %v858
      %v872 = vmul.f32 1.0, %v871
      %v873 = vrcp.pop %v859
      %v874 = vmul.f32 1.0, %v873
      %v875 = vrcp.pop %v860
      %v876 = vmul.f32 1.0, %v875
      %v877 = vmul.f32 %v821, %v862
      %v878 = vmul.f32 %v822, %v864
      %v879 = vmul.f32 %v823, %v866
      %v880 = vmul.f32 %v824, %v868
      %v881 = vmul.f32 %v825, %v870
      %v882 = vmul.f32 %v826, %v872
      %v883 = vmul.f32 %v827, %v874
      %v884 = vmul.f32 %v828, %v876
      %v885 = vpack.c.bf16 %v877, %v877
      %v886 = vpack.c.bf16 %v878, %v878
      %v887 = vpack.c.bf16 %v879, %v879
      %v888 = vpack.c.bf16 %v880, %v880
      %v889 = vpack.c.bf16 %v881, %v881
      %v890 = vpack.c.bf16 %v882, %v882
      %v891 = vpack.c.bf16 %v883, %v883
      %v892 = vpack.c.bf16 %v884, %v884
      %vm893 = vcmask 519168
      %894 = vst.msk [vmem:[%s170] sm:$0xf] %vm893, %v885
      %895 = vst.msk [vmem:[%s170 + $0x4] sm:$0xf] %vm893, %v886
      %896 = vst.msk [vmem:[%s170 + $0x8] sm:$0xf] %vm893, %v887
      %897 = vst.msk [vmem:[%s170 + $0xc] sm:$0xf] %vm893, %v888
      %898 = vst.msk [vmem:[%s170 + $0x10] sm:$0xf] %vm893, %v889
      %899 = vst.msk [vmem:[%s170 + $0x14] sm:$0xf] %vm893, %v890
      %900 = vst.msk [vmem:[%s170 + $0x18] sm:$0xf] %vm893, %v891
      %901 = vst.msk [vmem:[%s170 + $0x1c] sm:$0xf] %vm893, %v892
      %p902 = scmp.lt.s32.totalorder %s14, 1
      %s903 = scalar_select %p902, %s14, 1
      %s904 = smul.addr %s903, 8
      %s905 = smul.addr %s904, 4
      %s906 = scalar_lea.vmem %s3, %s905
      // Predicated region
      $region33: #{vss_layer.11} parent=31 // pred_check
        %p907 = pneg %p100
      $region34: #{vss_layer.11} parent=31 // pred_check_branch
        %909 = sbr.rel (%p907) target = $region36
      $region35: #{vss_layer.11} parent=31 // pred_region
        _
      $region36: #{vss_layer.11} parent=31 // pred_fallthru
        _
    $region32: #{vss_layer.11} parent=5 // pred_fallthru
      _
    %p910 = scmp.le.s32.totalorder 2, %s9
    // Predicated region
    $region37: #{vss_layer.11} parent=5 // pred_check
      %p911 = pneg %p910
    $region38: #{vss_layer.11} parent=5 // pred_check_branch
      %913 = sbr.rel (%p911) target = $region40
    $region39: #{vss_layer.11} parent=5 // pred_region
      %s914 = ssub.s32 %s9, 2
      // Predicated region
      $region41: #{vss_layer.11} parent=39 // pred_check
        %p915 = pneg %p106
      $region42: #{vss_layer.11} parent=39 // pred_check_branch
        %917 = sbr.rel (%p915) target = $region44
      $region43: #{vss_layer.11} parent=39 // pred_region
        %p918 = scmp.lt.s32.totalorder %s15, 1
        %s919 = scalar_select %p918, %s15, 1
        %s920 = smul.addr %s919, 8
        %s921 = smul.addr %s920, 4
        %s922 = scalar_lea.vmem %s3, %s921
      $region44: #{vss_layer.11} parent=39 // pred_fallthru
        _
    $region40: #{vss_layer.11} parent=5 // pred_fallthru
      _
  $region6: #{vss_layer.11} parent=0 // loop_footer
    %s13 = sadd.s32 1, %s9
  $region7: #{vss_layer.11} parent=0 // loop_footer_branch
    %8 = sbr.rel target = $region3
  $region8: #{vss_layer.11} parent=0 // loop_exit
    _

// kernel: vss_layer.12
$region0: #{vss_layer.12}
  #allocation0 [shape = 'u32[]', space=smem, size = 0x4, offset = 0x4, fixed_abs, tag = 'smem constant byte address 0x4 - core index']
  #allocation1 [shape = 'u32[144,128]{1,0:T(1,128)}', space=vmem, size = 0x12000, scoped, tag = 'internal scratch']
  #allocation2 [shape = 'f32[16,64]{1,0:T(8,128)}', space=vmem, size = 0x2000, scoped, tag = 'scratch operand']
  #allocation3 [shape = 'f32[64,64]{1,0:T(8,128)}', space=vmem, size = 0x8000, scoped, tag = 'scratch operand']
  %s0 = inlined_call_operand.vmem [shape: bf16[2,2,64,64], index: 0, kind: input, shape index: {}]
  %s1 = inlined_call_operand.vmem [shape: bf16[2,64,64], index: 1, kind: input, shape index: {}]
  %s2 = inlined_call_operand.vmem [shape: bf16[2,32,64], index: 2, kind: input, shape index: {}]
  %s3 = inlined_call_operand.vmem [shape: f32[2,1,64], index: 3, kind: input, shape index: {}]
  %s4 = inlined_call_operand.vmem [shape: f32[2,16,64], index: 4, kind: input, shape index: {}]
  %s5 = inlined_call_operand.vmem [shape: f32[2,1,64], index: 5, kind: input, shape index: {}]
  %s6 = inlined_call_operand.vmem [shape: bf16[2,2,64,64], index: 6, kind: output, shape index: {}]
  %s7 = sld [smem:[#allocation0]]
  $region68: #{vss_layer.12} parent=0
    _
  %s9 = ssub.s32 1, %s7
  %s10 = scalar_select 0, %s9, %s7
  loop: start=0, step=1, limit=6
  $region2: #{vss_layer.12} parent=0 // loop_pre_header
    _
  $region3: #{vss_layer.12} parent=0 // loop_header
    %s12 = sphi 0, %s16
    %p13 = scmp.ge.s32.totalorder %s12, 6
    %s19 = sphi 0, %s38
    %s20 = sphi 0, %s34
    %s21 = sphi 0, %s30
    %s22 = sphi 0, %s19
    %s23 = sphi 0, %s20
    %s24 = sphi 0, %s21
    %s25 = sphi 0, %s22
    %s26 = sphi 0, %s23
    %s27 = sphi 0, %s24
    %s45 = sphi 0, %s47
    %s48 = sphi 0, %s45
    %s49 = sphi 0, %s48
    %s65 = sphi 0, %s49
    %s71 = sphi 0, %s73
    %s74 = sphi 0, %s71
    %s75 = sphi 0, %s74
    %s91 = sphi 0, %s75
    %s97 = sphi 0, %s99
    %s100 = sphi 0, %s97
    %s101 = sphi 0, %s100
    %s117 = sphi 0, %s101
    %s123 = sphi 0, %s125
    %s126 = sphi 0, %s123
    %s127 = sphi 0, %s126
    %s143 = sphi 0, %s127
    %s149 = sphi 0, %s151
    %s152 = sphi 0, %s149
    %s153 = sphi 0, %s152
    %s169 = sphi 0, %s153
    %s175 = sphi 0, %s177
    %s178 = sphi 0, %s175
    %s179 = sphi 0, %s178
    %s195 = sphi 0, %s179
    %s205 = sphi 0, %s207
    %s208 = sphi 0, %s205
    %s209 = sphi 0, %s208
    %s225 = sphi 0, %s209
  $region4: #{vss_layer.12} parent=0 // loop_header_branch
    %15 = sbr.rel (%p13) target = $region8
  $region5: #{vss_layer.12} parent=0 // loop_body
    %s17 = ssub.s32 %s12, 1
    %s18 = ssub.s32 %s12, 2
    %s28 = sadd.s32 1, %s21
    %p29 = scmp.ge.s32.totalorder %s28, 1
    %s30 = scalar_select %p29, 0, %s28
    %s31 = sadd.s32 1, %s20
    %s32 = scalar_select %p29, %s31, %s20
    %p33 = scmp.ge.s32.totalorder %s32, 2
    %s34 = scalar_select %p33, 0, %s32
    %s35 = sadd.s32 1, %s19
    %s36 = scalar_select %p33, %s35, %s19
    %p37 = scmp.ge.s32.totalorder %s36, 2
    %s38 = scalar_select %p37, 0, %s36
    %s39 = ssub.s32 %s19, %s38
    %s40 = ssub.s32 %s20, %s34
    %s41 = sor.u32 %s39, %s40
    %s42 = ssub.s32 %s21, %s30
    %s43 = sor.u32 %s41, %s42
    %p44 = scmp.eq.s32.totalorder %s43, 0
    %s46 = sadd.s32 %s45, 1
    %s47 = scalar_select %p44, %s45, %s46
    %p50 = pneg %p44
    %p51 = scmp.eq.s32.totalorder %s12, 3
    %p52 = por %p50, %p51
    %p53 = scmp.ne.s32.totalorder %s45, %s48
    %p54 = scmp.eq.s32.totalorder %s12, 0
    %p55 = por %p53, %p54
    %p56 = scmp.ne.s32.totalorder %s45, %s48
    %p57 = scmp.eq.s32.totalorder %s17, 3
    %p58 = por %p56, %p57
    %p59 = scmp.ne.s32.totalorder %s48, %s49
    %p60 = scmp.eq.s32.totalorder %s17, 0
    %p61 = por %p59, %p60
    %p62 = scmp.ne.s32.totalorder %s48, %s49
    %p63 = scmp.eq.s32.totalorder %s18, 3
    %p64 = por %p62, %p63
    %p66 = scmp.ne.s32.totalorder %s49, %s65
    %p67 = scmp.eq.s32.totalorder %s18, 0
    %p68 = por %p66, %p67
    %s69 = ssub.s32 %s20, %s34
    %p70 = scmp.eq.s32.totalorder %s69, 0
    %s72 = sadd.s32 %s71, 1
    %s73 = scalar_select %p70, %s71, %s72
    %p76 = pneg %p70
    %p77 = scmp.eq.s32.totalorder %s12, 3
    %p78 = por %p76, %p77
    %p79 = scmp.ne.s32.totalorder %s71, %s74
    %p80 = scmp.eq.s32.totalorder %s12, 0
    %p81 = por %p79, %p80
    %p82 = scmp.ne.s32.totalorder %s71, %s74
    %p83 = scmp.eq.s32.totalorder %s17, 3
    %p84 = por %p82, %p83
    %p85 = scmp.ne.s32.totalorder %s74, %s75
    %p86 = scmp.eq.s32.totalorder %s17, 0
    %p87 = por %p85, %p86
    %p88 = scmp.ne.s32.totalorder %s74, %s75
    %p89 = scmp.eq.s32.totalorder %s18, 3
    %p90 = por %p88, %p89
    %p92 = scmp.ne.s32.totalorder %s75, %s91
    %p93 = scmp.eq.s32.totalorder %s18, 0
    %p94 = por %p92, %p93
    %s95 = ssub.s32 %s20, %s34
    %p96 = scmp.eq.s32.totalorder %s95, 0
    %s98 = sadd.s32 %s97, 1
    %s99 = scalar_select %p96, %s97, %s98
    %p102 = pneg %p96
    %p103 = scmp.eq.s32.totalorder %s12, 3
    %p104 = por %p102, %p103
    %p105 = scmp.ne.s32.totalorder %s97, %s100
    %p106 = scmp.eq.s32.totalorder %s12, 0
    %p107 = por %p105, %p106
    %p108 = scmp.ne.s32.totalorder %s97, %s100
    %p109 = scmp.eq.s32.totalorder %s17, 3
    %p110 = por %p108, %p109
    %p111 = scmp.ne.s32.totalorder %s100, %s101
    %p112 = scmp.eq.s32.totalorder %s17, 0
    %p113 = por %p111, %p112
    %p114 = scmp.ne.s32.totalorder %s100, %s101
    %p115 = scmp.eq.s32.totalorder %s18, 3
    %p116 = por %p114, %p115
    %p118 = scmp.ne.s32.totalorder %s101, %s117
    %p119 = scmp.eq.s32.totalorder %s18, 0
    %p120 = por %p118, %p119
    %s121 = ssub.s32 %s20, %s34
    %p122 = scmp.eq.s32.totalorder %s121, 0
    %s124 = sadd.s32 %s123, 1
    %s125 = scalar_select %p122, %s123, %s124
    %p128 = pneg %p122
    %p129 = scmp.eq.s32.totalorder %s12, 3
    %p130 = por %p128, %p129
    %p131 = scmp.ne.s32.totalorder %s123, %s126
    %p132 = scmp.eq.s32.totalorder %s12, 0
    %p133 = por %p131, %p132
    %p134 = scmp.ne.s32.totalorder %s123, %s126
    %p135 = scmp.eq.s32.totalorder %s17, 3
    %p136 = por %p134, %p135
    %p137 = scmp.ne.s32.totalorder %s126, %s127
    %p138 = scmp.eq.s32.totalorder %s17, 0
    %p139 = por %p137, %p138
    %p140 = scmp.ne.s32.totalorder %s126, %s127
    %p141 = scmp.eq.s32.totalorder %s18, 3
    %p142 = por %p140, %p141
    %p144 = scmp.ne.s32.totalorder %s127, %s143
    %p145 = scmp.eq.s32.totalorder %s18, 0
    %p146 = por %p144, %p145
    %s147 = ssub.s32 %s20, %s34
    %p148 = scmp.eq.s32.totalorder %s147, 0
    %s150 = sadd.s32 %s149, 1
    %s151 = scalar_select %p148, %s149, %s150
    %p154 = pneg %p148
    %p155 = scmp.eq.s32.totalorder %s12, 3
    %p156 = por %p154, %p155
    %p157 = scmp.ne.s32.totalorder %s149, %s152
    %p158 = scmp.eq.s32.totalorder %s12, 0
    %p159 = por %p157, %p158
    %p160 = scmp.ne.s32.totalorder %s149, %s152
    %p161 = scmp.eq.s32.totalorder %s17, 3
    %p162 = por %p160, %p161
    %p163 = scmp.ne.s32.totalorder %s152, %s153
    %p164 = scmp.eq.s32.totalorder %s17, 0
    %p165 = por %p163, %p164
    %p166 = scmp.ne.s32.totalorder %s152, %s153
    %p167 = scmp.eq.s32.totalorder %s18, 3
    %p168 = por %p166, %p167
    %p170 = scmp.ne.s32.totalorder %s153, %s169
    %p171 = scmp.eq.s32.totalorder %s18, 0
    %p172 = por %p170, %p171
    %s173 = ssub.s32 %s20, %s34
    %p174 = scmp.eq.s32.totalorder %s173, 0
    %s176 = sadd.s32 %s175, 1
    %s177 = scalar_select %p174, %s175, %s176
    %p180 = pneg %p174
    %p181 = scmp.eq.s32.totalorder %s12, 3
    %p182 = por %p180, %p181
    %p183 = scmp.ne.s32.totalorder %s175, %s178
    %p184 = scmp.eq.s32.totalorder %s12, 0
    %p185 = por %p183, %p184
    %p186 = scmp.ne.s32.totalorder %s175, %s178
    %p187 = scmp.eq.s32.totalorder %s17, 3
    %p188 = por %p186, %p187
    %p189 = scmp.ne.s32.totalorder %s178, %s179
    %p190 = scmp.eq.s32.totalorder %s17, 0
    %p191 = por %p189, %p190
    %p192 = scmp.ne.s32.totalorder %s178, %s179
    %p193 = scmp.eq.s32.totalorder %s18, 3
    %p194 = por %p192, %p193
    %p196 = scmp.ne.s32.totalorder %s179, %s195
    %p197 = scmp.eq.s32.totalorder %s18, 0
    %p198 = por %p196, %p197
    %s199 = ssub.s32 %s19, %s38
    %s200 = ssub.s32 %s20, %s34
    %s201 = sor.u32 %s199, %s200
    %s202 = ssub.s32 %s21, %s30
    %s203 = sor.u32 %s201, %s202
    %p204 = scmp.eq.s32.totalorder %s203, 0
    %s206 = sadd.s32 %s205, 1
    %s207 = scalar_select %p204, %s205, %s206
    %p210 = pneg %p204
    %p211 = scmp.eq.s32.totalorder %s12, 3
    %p212 = por %p210, %p211
    %p213 = scmp.ne.s32.totalorder %s205, %s208
    %p214 = scmp.eq.s32.totalorder %s12, 0
    %p215 = por %p213, %p214
    %p216 = scmp.ne.s32.totalorder %s205, %s208
    %p217 = scmp.eq.s32.totalorder %s17, 3
    %p218 = por %p216, %p217
    %p219 = scmp.ne.s32.totalorder %s208, %s209
    %p220 = scmp.eq.s32.totalorder %s17, 0
    %p221 = por %p219, %p220
    %p222 = scmp.ne.s32.totalorder %s208, %s209
    %p223 = scmp.eq.s32.totalorder %s18, 3
    %p224 = por %p222, %p223
    %p226 = scmp.ne.s32.totalorder %s209, %s225
    %p227 = scmp.eq.s32.totalorder %s18, 0
    %p228 = por %p226, %p227
    %p229 = scmp.le.s32.totalorder 1, %s12
    %p230 = scmp.lt.s32.totalorder %s12, 5
    %p231 = pnand %p229, %p230
    %p232 = pneg %p231
    // Predicated region
    $region9: #{vss_layer.12} parent=5 // pred_check
      _
    $region10: #{vss_layer.12} parent=5 // pred_check_branch
      %234 = sbr.rel (%p231) target = $region12
    $region11: #{vss_layer.12} parent=5 // pred_region
      %s235 = ssub.s32 %s12, 1
    $region12: #{vss_layer.12} parent=5 // pred_fallthru
      _
    %p236 = scmp.lt.s32.totalorder %s12, 4
    // Predicated region
    $region13: #{vss_layer.12} parent=5 // pred_check
      %p237 = pneg %p236
    $region14: #{vss_layer.12} parent=5 // pred_check_branch
      %239 = sbr.rel (%p237) target = $region16
    $region15: #{vss_layer.12} parent=5 // pred_region
      // Predicated region
      $region17: #{vss_layer.12} parent=15 // pred_check
        %p240 = pneg %p55
      $region18: #{vss_layer.12} parent=15 // pred_check_branch
        %242 = sbr.rel (%p240) target = $region20
      $region19: #{vss_layer.12} parent=15 // pred_region
        %s243 = smul.u32 8, %s21
        %p244 = scmp.lt.s32.totalorder %s19, 1
        %s245 = scalar_select %p244, %s19, 1
        %p246 = scmp.lt.s32.totalorder %s20, 1
        %s247 = scalar_select %p246, %s20, 1
        %p248 = scmp.lt.s32.totalorder %s243, 7
        %s249 = scalar_select %p248, %s243, 7
        %s250 = smul.addr %s247, 8
        %s251 = sadd.s32 %s249, %s250
        %s252 = smul.addr %s245, 16
        %s253 = sadd.s32 %s251, %s252
        %s254 = smul.addr %s253, 4
        %s255 = scalar_lea.vmem %s0, %s254
        %s256 = smul.u32 8, %s21
      $region20: #{vss_layer.12} parent=15 // pred_fallthru
        _
      // Predicated region
      $region21: #{vss_layer.12} parent=15 // pred_check
        %p257 = pneg %p81
      $region22: #{vss_layer.12} parent=15 // pred_check_branch
        %259 = sbr.rel (%p257) target = $region24
      $region23: #{vss_layer.12} parent=15 // pred_region
        %p260 = scmp.lt.s32.totalorder %s20, 1
        %s261 = scalar_select %p260, %s20, 1
        %s262 = smul.addr %s261, 8
        %s263 = smul.addr %s262, 4
        %s264 = scalar_lea.vmem %s1, %s263
      $region24: #{vss_layer.12} parent=15 // pred_fallthru
        _
      // Predicated region
      $region25: #{vss_layer.12} parent=15 // pred_check
        %p265 = pneg %p107
      $region26: #{vss_layer.12} parent=15 // pred_check_branch
        %267 = sbr.rel (%p265) target = $region28
      $region27: #{vss_layer.12} parent=15 // pred_region
        %p268 = scmp.lt.s32.totalorder %s20, 1
        %s269 = scalar_select %p268, %s20, 1
        %s270 = smul.addr %s269, 4
        %s271 = smul.addr %s270, 4
        %s272 = scalar_lea.vmem %s2, %s271
      $region28: #{vss_layer.12} parent=15 // pred_fallthru
        _
      // Predicated region
      $region29: #{vss_layer.12} parent=15 // pred_check
        %p273 = pneg %p133
      $region30: #{vss_layer.12} parent=15 // pred_check_branch
        %275 = sbr.rel (%p273) target = $region32
      $region31: #{vss_layer.12} parent=15 // pred_region
        %p276 = scmp.lt.s32.totalorder %s20, 1
        %s277 = scalar_select %p276, %s20, 1
        %s278 = scalar_lea.vmem %s3, %s277
      $region32: #{vss_layer.12} parent=15 // pred_fallthru
        _
      // Predicated region
      $region33: #{vss_layer.12} parent=15 // pred_check
        %p279 = pneg %p159
      $region34: #{vss_layer.12} parent=15 // pred_check_branch
        %281 = sbr.rel (%p279) target = $region36
      $region35: #{vss_layer.12} parent=15 // pred_region
        %p282 = scmp.lt.s32.totalorder %s20, 1
        %s283 = scalar_select %p282, %s20, 1
        %s284 = smul.addr %s283, 2
        %s285 = smul.addr %s284, 8
        %s286 = scalar_lea.vmem %s4, %s285
      $region36: #{vss_layer.12} parent=15 // pred_fallthru
        _
      // Predicated region
      $region37: #{vss_layer.12} parent=15 // pred_check
        %p287 = pneg %p185
      $region38: #{vss_layer.12} parent=15 // pred_check_branch
        %289 = sbr.rel (%p287) target = $region40
      $region39: #{vss_layer.12} parent=15 // pred_region
        %p290 = scmp.lt.s32.totalorder %s20, 1
        %s291 = scalar_select %p290, %s20, 1
        %s292 = scalar_lea.vmem %s5, %s291
      $region40: #{vss_layer.12} parent=15 // pred_fallthru
        _
    $region16: #{vss_layer.12} parent=5 // pred_fallthru
      _
    %p293 = scmp.le.s32.totalorder 1, %s12
    %p294 = scmp.lt.s32.totalorder %s12, 5
    %p295 = pnand %p293, %p294
    %p296 = pneg %p295
    // Predicated region
    $region41: #{vss_layer.12} parent=5 // pred_check
      _
    $region42: #{vss_layer.12} parent=5 // pred_check_branch
      %298 = sbr.rel (%p295) target = $region44
    $region43: #{vss_layer.12} parent=5 // pred_region
      %s299 = ssub.s32 %s12, 1
      %s300 = smul.u32 8, %s24
      %p301 = scmp.lt.s32.totalorder %s22, 1
      %s302 = scalar_select %p301, %s22, 1
      %p303 = scmp.lt.s32.totalorder %s23, 1
      %s304 = scalar_select %p303, %s23, 1
      %p305 = scmp.lt.s32.totalorder %s300, 7
      %s306 = scalar_select %p305, %s300, 7
      %s307 = smul.addr %s304, 8
      %s308 = sadd.s32 %s306, %s307
      %s309 = smul.addr %s302, 16
      %s310 = sadd.s32 %s308, %s309
      %s311 = smul.addr %s310, 4
      %s312 = scalar_lea.vmem %s0, %s311
      %p313 = pneg %p61
      %p314 = pneg %p58
      %p315 = scmp.lt.s32.totalorder %s23, 1
      %s316 = scalar_select %p315, %s23, 1
      %s317 = smul.addr %s316, 8
      %s318 = smul.addr %s317, 4
      %s319 = scalar_lea.vmem %s1, %s318
      %p320 = pneg %p87
      %p321 = pneg %p84
      %p322 = scmp.lt.s32.totalorder %s23, 1
      %s323 = scalar_select %p322, %s23, 1
      %s324 = smul.addr %s323, 4
      %s325 = smul.addr %s324, 4
      %s326 = scalar_lea.vmem %s2, %s325
      %p327 = pneg %p113
      %p328 = pneg %p110
      %p329 = scmp.lt.s32.totalorder %s23, 1
      %s330 = scalar_select %p329, %s23, 1
      %s331 = scalar_lea.vmem %s3, %s330
      %p332 = pneg %p139
      %p333 = pneg %p136
      %p334 = scmp.lt.s32.totalorder %s23, 1
      %s335 = scalar_select %p334, %s23, 1
      %s336 = smul.addr %s335, 2
      %s337 = smul.addr %s336, 8
      %s338 = scalar_lea.vmem %s4, %s337
      %p339 = pneg %p165
      %p340 = pneg %p162
      %p341 = scmp.lt.s32.totalorder %s23, 1
      %s342 = scalar_select %p341, %s23, 1
      %s343 = scalar_lea.vmem %s5, %s342
      %p344 = pneg %p191
      %p345 = pneg %p188
      %p346 = pneg %p221
      %p347 = pneg %p218
      %s348 = smul.u32 8, %s24
      %p349 = scmp.lt.s32.totalorder %s22, 1
      %s350 = scalar_select %p349, %s22, 1
      %p351 = scmp.lt.s32.totalorder %s23, 1
      %s352 = scalar_select %p351, %s23, 1
      %p353 = scmp.lt.s32.totalorder %s348, 7
      %s354 = scalar_select %p353, %s348, 7
      %s355 = smul.addr %s352, 8
      %s356 = sadd.s32 %s354, %s355
      %s357 = smul.addr %s350, 16
      %s358 = sadd.s32 %s356, %s357
      %s359 = smul.addr %s358, 4
      %s360 = scalar_lea.vmem %s6, %s359
      %s361 = smul.u32 8, %s24
      %p362 = scmp.lt.s32.totalorder %s22, 1
      %s363 = scalar_select %p362, %s22, 1
      %p364 = scmp.lt.s32.totalorder %s23, 1
      %s365 = scalar_select %p364, %s23, 1
      %p366 = scmp.lt.s32.totalorder %s361, 7
      %s367 = scalar_select %p366, %s361, 7
      %s368 = smul.addr %s365, 8
      %s369 = sadd.s32 %s367, %s368
      %s370 = smul.addr %s363, 16
      %s371 = sadd.s32 %s369, %s370
      %s372 = smul.addr %s371, 4
      %s373 = scalar_lea.vmem %s0, %s372
      %s374 = smul.u32 8, %s24
      %p375 = scmp.lt.s32.totalorder %s23, 1
      %s376 = scalar_select %p375, %s23, 1
      %s377 = smul.addr %s376, 8
      %s378 = smul.addr %s377, 4
      %s379 = scalar_lea.vmem %s1, %s378
      %p380 = scmp.lt.s32.totalorder %s23, 1
      %s381 = scalar_select %p380, %s23, 1
      %s382 = smul.addr %s381, 4
      %s383 = smul.addr %s382, 4
      %s384 = scalar_lea.vmem %s2, %s383
      %p385 = scmp.lt.s32.totalorder %s23, 1
      %s386 = scalar_select %p385, %s23, 1
      %s387 = scalar_lea.vmem %s3, %s386
      %p388 = scmp.lt.s32.totalorder %s23, 1
      %s389 = scalar_select %p388, %s23, 1
      %s390 = smul.addr %s389, 2
      %s391 = smul.addr %s390, 8
      %s392 = scalar_lea.vmem %s4, %s391
      %p393 = scmp.lt.s32.totalorder %s23, 1
      %s394 = scalar_select %p393, %s23, 1
      %s395 = scalar_lea.vmem %s5, %s394
      %s396 = smul.u32 8, %s24
      %p397 = scmp.lt.s32.totalorder %s22, 1
      %s398 = scalar_select %p397, %s22, 1
      %p399 = scmp.lt.s32.totalorder %s23, 1
      %s400 = scalar_select %p399, %s23, 1
      %p401 = scmp.lt.s32.totalorder %s396, 7
      %s402 = scalar_select %p401, %s396, 7
      %s403 = smul.addr %s400, 8
      %s404 = sadd.s32 %s402, %s403
      %s405 = smul.addr %s398, 16
      %s406 = sadd.s32 %s404, %s405
      %s407 = smul.addr %s406, 4
      %s408 = scalar_lea.vmem %s6, %s407
      %s409 = smul.u32 8, %s24
      %p411 = scmp.eq.s32.totalorder %s24, 0
      // Predicated region
      $region45: #{vss_layer.12} parent=43 // pred_check
        %p412 = pneg %p411
      $region46: #{vss_layer.12} parent=43 // pred_check_branch
        %414 = sbr.rel (%p412) target = $region48
      $region47: #{vss_layer.12} parent=43 // pred_region
        %vm415 = vcmask 523264
        %416 = vst.msk [vmem:[#allocation2] sm:$0xff] %vm415, 0.0
        %417 = vst.msk [vmem:[#allocation2 + $0x8] sm:$0xff] %vm415, 0.0
      $region48: #{vss_layer.12} parent=43 // pred_fallthru
        _
      %v418 = vld [vmem:[%s373] sm:$0xf]
      %v419 = vld [vmem:[%s373 + $0x4] sm:$0xf]
      %v420 = vld [vmem:[%s373 + $0x8] sm:$0xf]
      %v421 = vld [vmem:[%s373 + $0xc] sm:$0xf]
      %v422 = vld [vmem:[%s373 + $0x10] sm:$0xf]
      %v423 = vld [vmem:[%s373 + $0x14] sm:$0xf]
      %v424 = vld [vmem:[%s373 + $0x18] sm:$0xf]
      %v425 = vld [vmem:[%s373 + $0x1c] sm:$0xf]
      %v426 = vld [vmem:[%s379] sm:$0xf]
      %v427 = vld [vmem:[%s379 + $0x4] sm:$0xf]
      %v428 = vld [vmem:[%s379 + $0x8] sm:$0xf]
      %v429 = vld [vmem:[%s379 + $0xc] sm:$0xf]
      %v430 = vld [vmem:[%s379 + $0x10] sm:$0xf]
      %v431 = vld [vmem:[%s379 + $0x14] sm:$0xf]
      %v432 = vld [vmem:[%s379 + $0x18] sm:$0xf]
      %v433 = vld [vmem:[%s379 + $0x1c] sm:$0xf]
      %v434 = vld [vmem:[%s387] sm:$0x1]
      %v436 = vlaneseq
      %v437 = vshrl.u32 %v436, 7
      %v438 = vsub.s32 0, %v437
      %v439 = vrot.slane %v434, %v438
      %v449 = vunpack.c.l.b16 %v418
      %v450 = vunpack.c.l.b16 %v419
      %v451 = vunpack.c.l.b16 %v420
      %v452 = vunpack.c.l.b16 %v421
      %v453 = vunpack.c.l.b16 %v422
      %v454 = vunpack.c.l.b16 %v423
      %v455 = vunpack.c.l.b16 %v424
      %v456 = vunpack.c.l.b16 %v425
      %v457 = vpack.c.b16 %v450, %v449
      %v458 = vpack.c.b16 %v452, %v451
      %v459 = vpack.c.b16 %v454, %v453
      %v460 = vpack.c.b16 %v456, %v455
      %v469 = vunpack.c.l.b16 %v426
      %v470 = vunpack.c.l.b16 %v427
      %v471 = vunpack.c.l.b16 %v428
      %v472 = vunpack.c.l.b16 %v429
      %v473 = vunpack.c.l.b16 %v430
      %v474 = vunpack.c.l.b16 %v431
      %v475 = vunpack.c.l.b16 %v432
      %v476 = vunpack.c.l.b16 %v433
      %v477 = vpack.c.b16 %v470, %v469
      %v478 = vpack.c.b16 %v472, %v471
      %v479 = vpack.c.b16 %v474, %v473
      %v480 = vpack.c.b16 %v476, %v475
      %vm485 = vcmask 523264
      %v487 = vsel %vm485, %v457, 0
      %v490 = vsel %vm485, %v458, 0
      %v493 = vsel %vm485, %v459, 0
      %v496 = vsel %vm485, %v460, 0
      %498 = vmatprep.subr.bf16.mxu0 0
      %499 = vmatpush1.bf16.msra.mxu0 0
      %500 = vmatprep.subr.bf16.mxu0 0
      %501 = vmatpush1.bf16.msra.mxu0 0
      %502 = vmatprep.subr.bf16.mxu0 0
      %503 = vmatpush1.bf16.msra.mxu0 0
      %504 = vmatprep.subr.bf16.mxu0 0
      %505 = vmatpush1.bf16.msra.mxu0 0
      %506 = vmatprep.subr.bf16.mxu0 0
      %507 = vmatpush1.bf16.msra.mxu0 %v480
      %508 = vmatprep.subr.bf16.mxu0 0
      %509 = vmatpush1.bf16.msra.mxu0 %v479
      %510 = vmatprep.subr.bf16.mxu0 0
      %511 = vmatpush1.bf16.msra.mxu0 %v478
      %512 = vmatprep.subr.bf16.mxu0 0
      %513 = vmatpush1.bf16.msra.mxu0 %v477
      %514 = vmatprep.subr.bf16.mxu0 0
      %515 = vmatpush2.bf16.msra.mxu0 0
      %516 = vmatprep.subr.bf16.mxu0 0
      %517 = vmatpush2.bf16.msra.mxu0 0
      %518 = vmatprep.subr.bf16.mxu0 0
      %519 = vmatpush2.bf16.msra.mxu0 0
      %520 = vmatprep.subr.bf16.mxu0 0
      %521 = vmatpush2.bf16.msra.mxu0 0
      %522 = vmatprep.subr.bf16.mxu0 0
      %523 = vmatpush2.bf16.msra.mxu0 0
      %524 = vmatprep.subr.bf16.mxu0 0
      %525 = vmatpush2.bf16.msra.mxu0 0
      %526 = vmatprep.subr.bf16.mxu0 0
      %527 = vmatpush2.bf16.msra.mxu0 0
      %528 = vmatprep.subr.bf16.mxu0 0
      %529 = vmatpush2.bf16.msra.mxu0 0
      %530 = vmatprep.mubr.bf16.mxu0 0
      %531 = vmatmul.mubr.bf16.gmra.mxu0 %v487
      %v532 = vpop.f32.mrf.mxu0
      %v533 = vadd.f32 %v439, %v532
      %v534 = vpop.f32.mrf.mxu0
      %v535 = vpop.f32.mrf.mxu0
      %v536 = vadd.f32 %v439, %v535
      %v537 = vpop.f32.mrf.mxu0
      %538 = vmatprep.mubr.bf16.mxu0 0
      %539 = vmatmul.mubr.bf16.gmra.mxu0 %v490
      %v540 = vpop.f32.mrf.mxu0
      %v541 = vadd.f32 %v439, %v540
      %v542 = vpop.f32.mrf.mxu0
      %v543 = vpop.f32.mrf.mxu0
      %v544 = vadd.f32 %v439, %v543
      %v545 = vpop.f32.mrf.mxu0
      %546 = vmatprep.mubr.bf16.mxu0 0
      %547 = vmatmul.mubr.bf16.gmra.mxu0 %v493
      %v548 = vpop.f32.mrf.mxu0
      %v549 = vadd.f32 %v439, %v548
      %v550 = vpop.f32.mrf.mxu0
      %v551 = vpop.f32.mrf.mxu0
      %v552 = vadd.f32 %v439, %v551
      %v553 = vpop.f32.mrf.mxu0
      %554 = vmatprep.mubr.bf16.mxu0 0
      %555 = vmatmul.mubr.bf16.gmra.mxu0 %v496
      %v556 = vpop.f32.mrf.mxu0
      %v557 = vadd.f32 %v439, %v556
      %v558 = vpop.f32.mrf.mxu0
      %v559 = vpop.f32.mrf.mxu0
      %v560 = vadd.f32 %v439, %v559
      %v561 = vpop.f32.mrf.mxu0
      %562 = vdwg.mxu0
      %vm563 = vcmp.gt.f32.partialorder %v533, 20.0
      %vm564 = vcmp.gt.f32.partialorder %v536, 20.0
      %vm565 = vcmp.gt.f32.partialorder %v541, 20.0
      %vm566 = vcmp.gt.f32.partialorder %v544, 20.0
      %vm567 = vcmp.gt.f32.partialorder %v549, 20.0
      %vm568 = vcmp.gt.f32.partialorder %v552, 20.0
      %vm569 = vcmp.gt.f32.partialorder %v557, 20.0
      %vm570 = vcmp.gt.f32.partialorder %v560, 20.0
      %v571 = vmin.f32 %v533, 20.0
      %v572 = vmin.f32 %v536, 20.0
      %v573 = vmin.f32 %v541, 20.0
      %v574 = vmin.f32 %v544, 20.0
      %v575 = vmin.f32 %v549, 20.0
      %v576 = vmin.f32 %v552, 20.0
      %v577 = vmin.f32 %v557, 20.0
      %v578 = vmin.f32 %v560, 20.0
      %v579 = vmul.f32 %v571, 1.442695
      %v580 = vpow.pop %v579
      %v581 = vmul.f32 %v572, 1.442695
      %v582 = vpow.pop %v581
      %v583 = vmul.f32 %v573, 1.442695
      %v584 = vpow.pop %v583
      %v585 = vmul.f32 %v574, 1.442695
      %v586 = vpow.pop %v585
      %v587 = vmul.f32 %v575, 1.442695
      %v588 = vpow.pop %v587
      %v589 = vmul.f32 %v576, 1.442695
      %v590 = vpow.pop %v589
      %v591 = vmul.f32 %v577, 1.442695
      %v592 = vpow.pop %v591
      %v593 = vmul.f32 %v578, 1.442695
      %v594 = vpow.pop %v593
      %v595 = vadd.f32 %v580, 1.0
      %v596 = vlog2.pop %v595
      %v597 = vmul.f32 %v596, 0.6931472
      %v598 = vmul.f32 -0.5, %v580
      %v599 = vadd.f32 %v598, 1.0
      %v600 = vmul.f32 %v599, %v580
      %v601 = vand.u32 2147483647, %v580
      %vm602 = vcmp.lt.f32.partialorder %v601, 0.0004427343
      %v603 = vsel %vm602, %v600, %v597
      %v604 = vadd.f32 %v582, 1.0
      %v605 = vlog2.pop %v604
      %v606 = vmul.f32 %v605, 0.6931472
      %v607 = vmul.f32 -0.5, %v582
      %v608 = vadd.f32 %v607, 1.0
      %v609 = vmul.f32 %v608, %v582
      %v610 = vand.u32 2147483647, %v582
      %vm611 = vcmp.lt.f32.partialorder %v610, 0.0004427343
      %v612 = vsel %vm611, %v609, %v606
      %v613 = vadd.f32 %v584, 1.0
      %v614 = vlog2.pop %v613
      %v615 = vmul.f32 %v614, 0.6931472
      %v616 = vmul.f32 -0.5, %v584
      %v617 = vadd.f32 %v616, 1.0
      %v618 = vmul.f32 %v617, %v584
      %v619 = vand.u32 2147483647, %v584
      %vm620 = vcmp.lt.f32.partialorder %v619, 0.0004427343
      %v621 = vsel %vm620, %v618, %v615
      %v622 = vadd.f32 %v586, 1.0
      %v623 = vlog2.pop %v622
      %v624 = vmul.f32 %v623, 0.6931472
      %v625 = vmul.f32 -0.5, %v586
      %v626 = vadd.f32 %v625, 1.0
      %v627 = vmul.f32 %v626, %v586
      %v628 = vand.u32 2147483647, %v586
      %vm629 = vcmp.lt.f32.partialorder %v628, 0.0004427343
      %v630 = vsel %vm629, %v627, %v624
      %v631 = vadd.f32 %v588, 1.0
      %v632 = vlog2.pop %v631
      %v633 = vmul.f32 %v632, 0.6931472
      %v634 = vmul.f32 -0.5, %v588
      %v635 = vadd.f32 %v634, 1.0
      %v636 = vmul.f32 %v635, %v588
      %v637 = vand.u32 2147483647, %v588
      %vm638 = vcmp.lt.f32.partialorder %v637, 0.0004427343
      %v639 = vsel %vm638, %v636, %v633
      %v640 = vadd.f32 %v590, 1.0
      %v641 = vlog2.pop %v640
      %v642 = vmul.f32 %v641, 0.6931472
      %v643 = vmul.f32 -0.5, %v590
      %v644 = vadd.f32 %v643, 1.0
      %v645 = vmul.f32 %v644, %v590
      %v646 = vand.u32 2147483647, %v590
      %vm647 = vcmp.lt.f32.partialorder %v646, 0.0004427343
      %v648 = vsel %vm647, %v645, %v642
      %v649 = vadd.f32 %v592, 1.0
      %v650 = vlog2.pop %v649
      %v651 = vmul.f32 %v650, 0.6931472
      %v652 = vmul.f32 -0.5, %v592
      %v653 = vadd.f32 %v652, 1.0
      %v654 = vmul.f32 %v653, %v592
      %v655 = vand.u32 2147483647, %v592
      %vm656 = vcmp.lt.f32.partialorder %v655, 0.0004427343
      %v657 = vsel %vm656, %v654, %v651
      %v658 = vadd.f32 %v594, 1.0
      %v659 = vlog2.pop %v658
      %v660 = vmul.f32 %v659, 0.6931472
      %v661 = vmul.f32 -0.5, %v594
      %v662 = vadd.f32 %v661, 1.0
      %v663 = vmul.f32 %v662, %v594
      %v664 = vand.u32 2147483647, %v594
      %vm665 = vcmp.lt.f32.partialorder %v664, 0.0004427343
      %v666 = vsel %vm665, %v663, %v660
      %v667 = vsel %vm563, %v533, %v603
      %v668 = vsel %vm564, %v536, %v612
      %v669 = vsel %vm565, %v541, %v621
      %v670 = vsel %vm566, %v544, %v630
      %v671 = vsel %vm567, %v549, %v639
      %v672 = vsel %vm568, %v552, %v648
      %v673 = vsel %vm569, %v557, %v657
      %v674 = vsel %vm570, %v560, %v666
      %675 = vst.msk [vmem:[#allocation3] sm:$0xff] %vm485, %v667
      %676 = vst.msk [vmem:[#allocation3 + $0x8] sm:$0xff] %vm485, %v668
      %677 = vst.msk [vmem:[#allocation3 + $0x10] sm:$0xff] %vm485, %v669
      %678 = vst.msk [vmem:[#allocation3 + $0x18] sm:$0xff] %vm485, %v670
      %679 = vst.msk [vmem:[#allocation3 + $0x20] sm:$0xff] %vm485, %v671
      %680 = vst.msk [vmem:[#allocation3 + $0x28] sm:$0xff] %vm485, %v672
      %681 = vst.msk [vmem:[#allocation3 + $0x30] sm:$0xff] %vm485, %v673
      %682 = vst.msk [vmem:[#allocation3 + $0x38] sm:$0xff] %vm485, %v674
      %v683 = vld [vmem:[%s392] sm:$0xff]
      %v684 = vld [vmem:[%s392 + $0x8] sm:$0xff]
      %v685 = vld [vmem:[%s395] sm:$0x1]
      %v686 = vld [vmem:[%s384] sm:$0xf]
      %v687 = vld [vmem:[%s384 + $0x4] sm:$0xf]
      %v688 = vld [vmem:[%s384 + $0x8] sm:$0xf]
      %v689 = vld [vmem:[%s384 + $0xc] sm:$0xf]
      loop: start=0, step=1, limit=8
      $region49: #{vss_layer.12} parent=43 // loop_pre_header
        _
      $region50: #{vss_layer.12} parent=43 // loop_header
        %s691 = sphi 0, %s695
        %p692 = scmp.ge.s32.totalorder %s691, 8
      $region51: #{vss_layer.12} parent=43 // loop_header_branch
        %694 = sbr.rel (%p692) target = $region55
      $region52: #{vss_layer.12} parent=43 // loop_body
        %s696 = smul.u32 %s691, 8
        %s697 = sshra.s32 %s696, 3
        %s698 = sand.u32 %s696, 7
        %s699 = smul.addr %s697, 4
        %s700 = scalar_lea.vmem %s373, %s699
        %v701 = vld [vmem:[%s700] sm:$0xf]
        %v702 = vunpack.c.l.bf16 %v701
        %s703 = scalar_lea.vmem [#allocation3], %s696
        %v704 = vld [vmem:[%s703] sm:$0xff]
        %v705 = vmul.f32 %v704, %v702
        %v710 = vunpack.c.l.b16 %v686
        %v711 = vunpack.c.l.b16 %v687
        %v712 = vunpack.c.l.b16 %v688
        %v713 = vunpack.c.l.b16 %v689
        %v714 = vpack.c.b16 %v711, %v710
        %v715 = vpack.c.b16 %v713, %v712
        %v717 = vsel %vm485, %v714, 0
        %v720 = vsel %vm485, %v715, 0
        %v723 = vsel %vm485, %v701, 0
        %725 = vmatprep.subr.bf16.mxu0 0
        %726 = vmatpush1.bf16.xpose.msra.mxu0 0
        %727 = vmatprep.subr.bf16.mxu0 0
        %728 = vmatpush1.bf16.xpose.msra.mxu0 0
        %729 = vmatprep.subr.bf16.mxu0 0
        %730 = vmatpush1.bf16.xpose.msra.mxu0 0
        %731 = vmatprep.subr.bf16.mxu0 0
        %732 = vmatpush1.bf16.xpose.msra.mxu0 0
        %733 = vmatprep.subr.bf16.mxu0 0
        %734 = vmatpush1.bf16.xpose.msra.mxu0 0
        %735 = vmatprep.subr.bf16.mxu0 0
        %736 = vmatpush1.bf16.xpose.msra.mxu0 0
        %737 = vmatprep.subr.bf16.mxu0 0
        %738 = vmatpush1.bf16.xpose.msra.mxu0 0
        %739 = vmatprep.subr.bf16.mxu0 0
        %740 = vmatpush1.bf16.xpose.msra.mxu0 %v723
        %741 = vmatprep.subr.bf16.mxu0 0
        %742 = vmatpush2.bf16.xpose.msra.mxu0 0
        %743 = vmatprep.subr.bf16.mxu0 0
        %744 = vmatpush2.bf16.xpose.msra.mxu0 0
        %745 = vmatprep.subr.bf16.mxu0 0
        %746 = vmatpush2.bf16.xpose.msra.mxu0 0
        %747 = vmatprep.subr.bf16.mxu0 0
        %748 = vmatpush2.bf16.xpose.msra.mxu0 0
        %749 = vmatprep.subr.bf16.mxu0 0
        %750 = vmatpush2.bf16.xpose.msra.mxu0 0
        %751 = vmatprep.subr.bf16.mxu0 0
        %752 = vmatpush2.bf16.xpose.msra.mxu0 0
        %753 = vmatprep.subr.bf16.mxu0 0
        %754 = vmatpush2.bf16.xpose.msra.mxu0 0
        %755 = vmatprep.subr.bf16.mxu0 0
        %756 = vmatpush2.bf16.xpose.msra.mxu0 0
        %757 = vmatprep.mubr.bf16.mxu0 0
        %758 = vmatmul.mubr.bf16.gmra.mxu0 %v717
        %v759 = vpop.f32.mrf.mxu0
        %v760 = vadd.f32 0.0, %v759
        %v761 = vpop.f32.mrf.mxu0
        %v762 = vpop.f32.mrf.mxu0
        %v763 = vadd.f32 0.0, %v762
        %v764 = vpop.f32.mrf.mxu0
        %765 = vmatprep.mubr.bf16.mxu0 0
        %766 = vmatmul.mubr.bf16.gmra.mxu0 %v720
        %v767 = vpop.f32.mrf.mxu0
        %v768 = vadd.f32 0.0, %v767
        %v769 = vpop.f32.mrf.mxu0
        %v770 = vpop.f32.mrf.mxu0
        %v771 = vadd.f32 0.0, %v770
        %v772 = vpop.f32.mrf.mxu0
        %773 = vdwg.mxu0
        %v774 = vld [vmem:[#allocation2] sm:$0xff]
        %v775 = vld [vmem:[#allocation2 + $0x8] sm:$0xff]
        %v776 = vlaneseq
        %v777 = vshrl.u32 %v776, 7
        %v778 = vsub.s32 0, %v777
        %v779 = vrot.slane %v704, %v778
        %v780 = vmul.f32 %v779, %v683
        %v781 = vmul.f32 %v779, %v684
        %v782 = vmul.f32 %v780, 1.442695
        %v783 = vpow.pop %v782
        %v784 = vmul.f32 %v781, 1.442695
        %v785 = vpow.pop %v784
        %v786 = vmul.f32 %v783, %v774
        %v787 = vmul.f32 %v785, %v775
        %v788 = vlaneseq
        %v789 = vshrl.u32 %v788, 7
        %v790 = vsub.s32 0, %v789
        %v791 = vrot.slane %v705, %v790
        %793 = vset.pattern.permute.xlu0 0
        %794 = vperm.xlu0 %793, %v760
        %v795 = vpop.permute.xlu0 %794
        %798 = vset.pattern.permute.xlu0 0
        %799 = vperm.xlu0 %798, %v763
        %v800 = vpop.permute.xlu0 %799
        %v802 = vmul.f32 %v791, %v795
        %v803 = vmul.f32 %v791, %v800
        %v804 = vadd.f32 %v786, %v802
        %v805 = vadd.f32 %v787, %v803
        %807 = vset.pattern.permute.xlu0 0
        %808 = vperm.xlu0 %807, %v768
        %v809 = vpop.permute.xlu0 %808
        %812 = vset.pattern.permute.xlu0 0
        %813 = vperm.xlu0 %812, %v771
        %v814 = vpop.permute.xlu0 %813
        %v816 = vmul.f32 %v804, %v809
        %v817 = vmul.f32 %v805, %v814
        %v818 = vsel %vm485, %v816, 0.0
        %v819 = vsel %vm485, %v817, 0.0
        %v820 = vadd.f32 %v818, %v819
        %v821 = vrot.slane %v820, 4
        %v822 = vadd.f32 %v820, %v821
        %v823 = vrot.slane %v822, 2
        %v824 = vadd.f32 %v822, %v823
        %v825 = vrot.slane %v824, 1
        %v826 = vadd.f32 %v824, %v825
        %v827 = vlaneseq
        %v828 = vshrl.u32 %v827, 7
        %v829 = vsub.s32 1, %v828
        %v830 = vrot.slane %v704, %v829
        %v831 = vmul.f32 %v830, %v683
        %v832 = vmul.f32 %v830, %v684
        %v833 = vmul.f32 %v831, 1.442695
        %v834 = vpow.pop %v833
        %v835 = vmul.f32 %v832, 1.442695
        %v836 = vpow.pop %v835
        %v837 = vmul.f32 %v834, %v804
        %v838 = vmul.f32 %v836, %v805
        %v839 = vlaneseq
        %v840 = vshrl.u32 %v839, 7
        %v841 = vsub.s32 1, %v840
        %v842 = vrot.slane %v705, %v841
        %843 = vset.pattern.permute.xlu0 1
        %844 = vperm.xlu0 %843, %v760
        %v845 = vpop.permute.xlu0 %844
        %847 = vset.pattern.permute.xlu0 1
        %848 = vperm.xlu0 %847, %v763
        %v849 = vpop.permute.xlu0 %848
        %v851 = vmul.f32 %v842, %v845
        %v852 = vmul.f32 %v842, %v849
        %v853 = vadd.f32 %v837, %v851
        %v854 = vadd.f32 %v838, %v852
        %855 = vset.pattern.permute.xlu0 1
        %856 = vperm.xlu0 %855, %v768
        %v857 = vpop.permute.xlu0 %856
        %859 = vset.pattern.permute.xlu0 1
        %860 = vperm.xlu0 %859, %v771
        %v861 = vpop.permute.xlu0 %860
        %v863 = vmul.f32 %v853, %v857
        %v864 = vmul.f32 %v854, %v861
        %v865 = vsel %vm485, %v863, 0.0
        %v866 = vsel %vm485, %v864, 0.0
        %v867 = vadd.f32 %v865, %v866
        %v868 = vrot.slane %v867, 4
        %v869 = vadd.f32 %v867, %v868
        %v870 = vrot.slane %v869, 2
        %v871 = vadd.f32 %v869, %v870
        %v872 = vrot.slane %v871, 1
        %v873 = vadd.f32 %v871, %v872
        %v874 = vlaneseq
        %v875 = vshrl.u32 %v874, 7
        %v876 = vsub.s32 2, %v875
        %v877 = vrot.slane %v704, %v876
        %v878 = vmul.f32 %v877, %v683
        %v879 = vmul.f32 %v877, %v684
        %v880 = vmul.f32 %v878, 1.442695
        %v881 = vpow.pop %v880
        %v882 = vmul.f32 %v879, 1.442695
        %v883 = vpow.pop %v882
        %v884 = vmul.f32 %v881, %v853
        %v885 = vmul.f32 %v883, %v854
        %v886 = vlaneseq
        %v887 = vshrl.u32 %v886, 7
        %v888 = vsub.s32 2, %v887
        %v889 = vrot.slane %v705, %v888
        %890 = vset.pattern.permute.xlu0 2
        %891 = vperm.xlu0 %890, %v760
        %v892 = vpop.permute.xlu0 %891
        %894 = vset.pattern.permute.xlu0 2
        %895 = vperm.xlu0 %894, %v763
        %v896 = vpop.permute.xlu0 %895
        %v898 = vmul.f32 %v889, %v892
        %v899 = vmul.f32 %v889, %v896
        %v900 = vadd.f32 %v884, %v898
        %v901 = vadd.f32 %v885, %v899
        %902 = vset.pattern.permute.xlu0 2
        %903 = vperm.xlu0 %902, %v768
        %v904 = vpop.permute.xlu0 %903
        %906 = vset.pattern.permute.xlu0 2
        %907 = vperm.xlu0 %906, %v771
        %v908 = vpop.permute.xlu0 %907
        %v910 = vmul.f32 %v900, %v904
        %v911 = vmul.f32 %v901, %v908
        %v912 = vsel %vm485, %v910, 0.0
        %v913 = vsel %vm485, %v911, 0.0
        %v914 = vadd.f32 %v912, %v913
        %v915 = vrot.slane %v914, 4
        %v916 = vadd.f32 %v914, %v915
        %v917 = vrot.slane %v916, 2
        %v918 = vadd.f32 %v916, %v917
        %v919 = vrot.slane %v918, 1
        %v920 = vadd.f32 %v918, %v919
        %v921 = vlaneseq
        %v922 = vshrl.u32 %v921, 7
        %v923 = vsub.s32 3, %v922
        %v924 = vrot.slane %v704, %v923
        %v925 = vmul.f32 %v924, %v683
        %v926 = vmul.f32 %v924, %v684
        %v927 = vmul.f32 %v925, 1.442695
        %v928 = vpow.pop %v927
        %v929 = vmul.f32 %v926, 1.442695
        %v930 = vpow.pop %v929
        %v931 = vmul.f32 %v928, %v900
        %v932 = vmul.f32 %v930, %v901
        %v933 = vlaneseq
        %v934 = vshrl.u32 %v933, 7
        %v935 = vsub.s32 3, %v934
        %v936 = vrot.slane %v705, %v935
        %937 = vset.pattern.permute.xlu0 3
        %938 = vperm.xlu0 %937, %v760
        %v939 = vpop.permute.xlu0 %938
        %941 = vset.pattern.permute.xlu0 3
        %942 = vperm.xlu0 %941, %v763
        %v943 = vpop.permute.xlu0 %942
        %v945 = vmul.f32 %v936, %v939
        %v946 = vmul.f32 %v936, %v943
        %v947 = vadd.f32 %v931, %v945
        %v948 = vadd.f32 %v932, %v946
        %949 = vset.pattern.permute.xlu0 3
        %950 = vperm.xlu0 %949, %v768
        %v951 = vpop.permute.xlu0 %950
        %953 = vset.pattern.permute.xlu0 3
        %954 = vperm.xlu0 %953, %v771
        %v955 = vpop.permute.xlu0 %954
        %v957 = vmul.f32 %v947, %v951
        %v958 = vmul.f32 %v948, %v955
        %v959 = vsel %vm485, %v957, 0.0
        %v960 = vsel %vm485, %v958, 0.0
        %v961 = vadd.f32 %v959, %v960
        %v962 = vrot.slane %v961, 4
        %v963 = vadd.f32 %v961, %v962
        %v964 = vrot.slane %v963, 2
        %v965 = vadd.f32 %v963, %v964
        %v966 = vrot.slane %v965, 1
        %v967 = vadd.f32 %v965, %v966
        %v968 = vlaneseq
        %v969 = vshrl.u32 %v968, 7
        %v970 = vsub.s32 4, %v969
        %v971 = vrot.slane %v704, %v970
        %v972 = vmul.f32 %v971, %v683
        %v973 = vmul.f32 %v971, %v684
        %v974 = vmul.f32 %v972, 1.442695
        %v975 = vpow.pop %v974
        %v976 = vmul.f32 %v973, 1.442695
        %v977 = vpow.pop %v976
        %v978 = vmul.f32 %v975, %v947
        %v979 = vmul.f32 %v977, %v948
        %v980 = vlaneseq
        %v981 = vshrl.u32 %v980, 7
        %v982 = vsub.s32 4, %v981
        %v983 = vrot.slane %v705, %v982
        %984 = vset.pattern.permute.xlu0 4
        %985 = vperm.xlu0 %984, %v760
        %v986 = vpop.permute.xlu0 %985
        %988 = vset.pattern.permute.xlu0 4
        %989 = vperm.xlu0 %988, %v763
        %v990 = vpop.permute.xlu0 %989
        %v992 = vmul.f32 %v983, %v986
        %v993 = vmul.f32 %v983, %v990
        %v994 = vadd.f32 %v978, %v992
        %v995 = vadd.f32 %v979, %v993
        %996 = vset.pattern.permute.xlu0 4
        %997 = vperm.xlu0 %996, %v768
        %v998 = vpop.permute.xlu0 %997
        %1000 = vset.pattern.permute.xlu0 4
        %1001 = vperm.xlu0 %1000, %v771
        %v1002 = vpop.permute.xlu0 %1001
        %v1004 = vmul.f32 %v994, %v998
        %v1005 = vmul.f32 %v995, %v1002
        %v1006 = vsel %vm485, %v1004, 0.0
        %v1007 = vsel %vm485, %v1005, 0.0
        %v1008 = vadd.f32 %v1006, %v1007
        %v1009 = vrot.slane %v1008, 4
        %v1010 = vadd.f32 %v1008, %v1009
        %v1011 = vrot.slane %v1010, 2
        %v1012 = vadd.f32 %v1010, %v1011
        %v1013 = vrot.slane %v1012, 1
        %v1014 = vadd.f32 %v1012, %v1013
        %v1015 = vlaneseq
        %v1016 = vshrl.u32 %v1015, 7
        %v1017 = vsub.s32 5, %v1016
        %v1018 = vrot.slane %v704, %v1017
        %v1019 = vmul.f32 %v1018, %v683
        %v1020 = vmul.f32 %v1018, %v684
        %v1021 = vmul.f32 %v1019, 1.442695
        %v1022 = vpow.pop %v1021
        %v1023 = vmul.f32 %v1020, 1.442695
        %v1024 = vpow.pop %v1023
        %v1025 = vmul.f32 %v1022, %v994
        %v1026 = vmul.f32 %v1024, %v995
        %v1027 = vlaneseq
        %v1028 = vshrl.u32 %v1027, 7
        %v1029 = vsub.s32 5, %v1028
        %v1030 = vrot.slane %v705, %v1029
        %1031 = vset.pattern.permute.xlu0 5
        %1032 = vperm.xlu0 %1031, %v760
        %v1033 = vpop.permute.xlu0 %1032
        %1035 = vset.pattern.permute.xlu0 5
        %1036 = vperm.xlu0 %1035, %v763
        %v1037 = vpop.permute.xlu0 %1036
        %v1039 = vmul.f32 %v1030, %v1033
        %v1040 = vmul.f32 %v1030, %v1037
        %v1041 = vadd.f32 %v1025, %v1039
        %v1042 = vadd.f32 %v1026, %v1040
        %1043 = vset.pattern.permute.xlu0 5
        %1044 = vperm.xlu0 %1043, %v768
        %v1045 = vpop.permute.xlu0 %1044
        %1047 = vset.pattern.permute.xlu0 5
        %1048 = vperm.xlu0 %1047, %v771
        %v1049 = vpop.permute.xlu0 %1048
        %v1051 = vmul.f32 %v1041, %v1045
        %v1052 = vmul.f32 %v1042, %v1049
        %v1053 = vsel %vm485, %v1051, 0.0
        %v1054 = vsel %vm485, %v1052, 0.0
        %v1055 = vadd.f32 %v1053, %v1054
        %v1056 = vrot.slane %v1055, 4
        %v1057 = vadd.f32 %v1055, %v1056
        %v1058 = vrot.slane %v1057, 2
        %v1059 = vadd.f32 %v1057, %v1058
        %v1060 = vrot.slane %v1059, 1
        %v1061 = vadd.f32 %v1059, %v1060
        %v1062 = vlaneseq
        %v1063 = vshrl.u32 %v1062, 7
        %v1064 = vsub.s32 6, %v1063
        %v1065 = vrot.slane %v704, %v1064
        %v1066 = vmul.f32 %v1065, %v683
        %v1067 = vmul.f32 %v1065, %v684
        %v1068 = vmul.f32 %v1066, 1.442695
        %v1069 = vpow.pop %v1068
        %v1070 = vmul.f32 %v1067, 1.442695
        %v1071 = vpow.pop %v1070
        %v1072 = vmul.f32 %v1069, %v1041
        %v1073 = vmul.f32 %v1071, %v1042
        %v1074 = vlaneseq
        %v1075 = vshrl.u32 %v1074, 7
        %v1076 = vsub.s32 6, %v1075
        %v1077 = vrot.slane %v705, %v1076
        %1078 = vset.pattern.permute.xlu0 6
        %1079 = vperm.xlu0 %1078, %v760
        %v1080 = vpop.permute.xlu0 %1079
        %1082 = vset.pattern.permute.xlu0 6
        %1083 = vperm.xlu0 %1082, %v763
        %v1084 = vpop.permute.xlu0 %1083
        %v1086 = vmul.f32 %v1077, %v1080
        %v1087 = vmul.f32 %v1077, %v1084
        %v1088 = vadd.f32 %v1072, %v1086
        %v1089 = vadd.f32 %v1073, %v1087
        %1090 = vset.pattern.permute.xlu0 6
        %1091 = vperm.xlu0 %1090, %v768
        %v1092 = vpop.permute.xlu0 %1091
        %1094 = vset.pattern.permute.xlu0 6
        %1095 = vperm.xlu0 %1094, %v771
        %v1096 = vpop.permute.xlu0 %1095
        %v1098 = vmul.f32 %v1088, %v1092
        %v1099 = vmul.f32 %v1089, %v1096
        %v1100 = vsel %vm485, %v1098, 0.0
        %v1101 = vsel %vm485, %v1099, 0.0
        %v1102 = vadd.f32 %v1100, %v1101
        %v1103 = vrot.slane %v1102, 4
        %v1104 = vadd.f32 %v1102, %v1103
        %v1105 = vrot.slane %v1104, 2
        %v1106 = vadd.f32 %v1104, %v1105
        %v1107 = vrot.slane %v1106, 1
        %v1108 = vadd.f32 %v1106, %v1107
        %v1109 = vlaneseq
        %v1110 = vshrl.u32 %v1109, 7
        %v1111 = vsub.s32 7, %v1110
        %v1112 = vrot.slane %v704, %v1111
        %v1113 = vmul.f32 %v1112, %v683
        %v1114 = vmul.f32 %v1112, %v684
        %v1115 = vmul.f32 %v1113, 1.442695
        %v1116 = vpow.pop %v1115
        %v1117 = vmul.f32 %v1114, 1.442695
        %v1118 = vpow.pop %v1117
        %v1119 = vmul.f32 %v1116, %v1088
        %v1120 = vmul.f32 %v1118, %v1089
        %v1121 = vlaneseq
        %v1122 = vshrl.u32 %v1121, 7
        %v1123 = vsub.s32 7, %v1122
        %v1124 = vrot.slane %v705, %v1123
        %1125 = vset.pattern.permute.xlu0 7
        %1126 = vperm.xlu0 %1125, %v760
        %v1127 = vpop.permute.xlu0 %1126
        %1129 = vset.pattern.permute.xlu0 7
        %1130 = vperm.xlu0 %1129, %v763
        %v1131 = vpop.permute.xlu0 %1130
        %v1133 = vmul.f32 %v1124, %v1127
        %v1134 = vmul.f32 %v1124, %v1131
        %v1135 = vadd.f32 %v1119, %v1133
        %v1136 = vadd.f32 %v1120, %v1134
        %1137 = vset.pattern.permute.xlu0 7
        %1138 = vperm.xlu0 %1137, %v768
        %v1139 = vpop.permute.xlu0 %1138
        %1141 = vset.pattern.permute.xlu0 7
        %1142 = vperm.xlu0 %1141, %v771
        %v1143 = vpop.permute.xlu0 %1142
        %v1145 = vmul.f32 %v1135, %v1139
        %v1146 = vmul.f32 %v1136, %v1143
        %v1147 = vsel %vm485, %v1145, 0.0
        %v1148 = vsel %vm485, %v1146, 0.0
        %v1149 = vadd.f32 %v1147, %v1148
        %v1150 = vrot.slane %v1149, 4
        %v1151 = vadd.f32 %v1149, %v1150
        %v1152 = vrot.slane %v1151, 2
        %v1153 = vadd.f32 %v1151, %v1152
        %v1154 = vrot.slane %v1153, 1
        %v1155 = vadd.f32 %v1153, %v1154
        %1156 = vst.msk [vmem:[#allocation2] sm:$0xff] %vm485, %v1135
        %1157 = vst.msk [vmem:[#allocation2 + $0x8] sm:$0xff] %vm485, %v1136
        %vm1158 = vcmask 1040384
        %v1159 = vsel %vm1158, %v826, %v873
        %vm1160 = vcmask 1041408
        %v1161 = vsel %vm1160, %v1159, %v920
        %vm1162 = vcmask 1042432
        %v1163 = vsel %vm1162, %v1161, %v967
        %vm1164 = vcmask 1043456
        %v1165 = vsel %vm1164, %v1163, %v1014
        %vm1166 = vcmask 1044480
        %v1167 = vsel %vm1166, %v1165, %v1061
        %vm1168 = vcmask 1045504
        %v1169 = vsel %vm1168, %v1167, %v1108
        %vm1170 = vcmask 1046528
        %v1171 = vsel %vm1170, %v1169, %v1155
        %v1173 = vlaneseq
        %v1174 = vshrl.u32 %v1173, 7
        %v1175 = vsub.s32 0, %v1174
        %v1176 = vrot.slane %v685, %v1175
        %v1178 = vmul.f32 %v702, %v1176
        %v1179 = vadd.f32 %v1171, %v1178
        %v1180 = vpack.c.bf16 %v1179, %v1179
        %s1181 = smul.addr %s697, 4
        %s1182 = scalar_lea.vmem %s408, %s1181
        %vm1183 = vcmask 519168
        %1184 = vst.msk [vmem:[%s1182] sm:$0xf] %vm1183, %v1180
      $region53: #{vss_layer.12} parent=43 // loop_footer
        %s695 = sadd.s32 1, %s691
      $region54: #{vss_layer.12} parent=43 // loop_footer_branch
        %690 = sbr.rel target = $region50
      $region55: #{vss_layer.12} parent=43 // loop_exit
        _
      %s1185 = smul.u32 8, %s24
      %p1186 = scmp.lt.s32.totalorder %s22, 1
      %s1187 = scalar_select %p1186, %s22, 1
      %p1188 = scmp.lt.s32.totalorder %s23, 1
      %s1189 = scalar_select %p1188, %s23, 1
      %p1190 = scmp.lt.s32.totalorder %s1185, 7
      %s1191 = scalar_select %p1190, %s1185, 7
      %s1192 = smul.addr %s1189, 8
      %s1193 = sadd.s32 %s1191, %s1192
      %s1194 = smul.addr %s1187, 16
      %s1195 = sadd.s32 %s1193, %s1194
      %s1196 = smul.addr %s1195, 4
      %s1197 = scalar_lea.vmem %s6, %s1196
      // Predicated region
      $region56: #{vss_layer.12} parent=43 // pred_check
        %p1198 = pneg %p218
      $region57: #{vss_layer.12} parent=43 // pred_check_branch
        %1200 = sbr.rel (%p1198) target = $region59
      $region58: #{vss_layer.12} parent=43 // pred_region
        %s1201 = smul.u32 8, %s24
      $region59: #{vss_layer.12} parent=43 // pred_fallthru
        _
    $region44: #{vss_layer.12} parent=5 // pred_fallthru
      _
    %p1202 = scmp.le.s32.totalorder 2, %s12
    // Predicated region
    $region60: #{vss_layer.12} parent=5 // pred_check
      %p1203 = pneg %p1202
    $region61: #{vss_layer.12} parent=5 // pred_check_branch
      %1205 = sbr.rel (%p1203) target = $region63
    $region62: #{vss_layer.12} parent=5 // pred_region
      %s1206 = ssub.s32 %s12, 2
      // Predicated region
      $region64: #{vss_layer.12} parent=62 // pred_check
        %p1207 = pneg %p224
      $region65: #{vss_layer.12} parent=62 // pred_check_branch
        %1209 = sbr.rel (%p1207) target = $region67
      $region66: #{vss_layer.12} parent=62 // pred_region
        %s1210 = smul.u32 8, %s27
        %p1211 = scmp.lt.s32.totalorder %s25, 1
        %s1212 = scalar_select %p1211, %s25, 1
        %p1213 = scmp.lt.s32.totalorder %s26, 1
        %s1214 = scalar_select %p1213, %s26, 1
        %p1215 = scmp.lt.s32.totalorder %s1210, 7
        %s1216 = scalar_select %p1215, %s1210, 7
        %s1217 = smul.addr %s1214, 8
        %s1218 = sadd.s32 %s1216, %s1217
        %s1219 = smul.addr %s1212, 16
        %s1220 = sadd.s32 %s1218, %s1219
        %s1221 = smul.addr %s1220, 4
        %s1222 = scalar_lea.vmem %s6, %s1221
      $region67: #{vss_layer.12} parent=62 // pred_fallthru
        _
    $region63: #{vss_layer.12} parent=5 // pred_fallthru
      _
  $region6: #{vss_layer.12} parent=0 // loop_footer
    %s16 = sadd.s32 1, %s12
  $region7: #{vss_layer.12} parent=0 // loop_footer_branch
    %11 = sbr.rel target = $region3
  $region8: #{vss_layer.12} parent=0 // loop_exit
    _

// kernel: vss_layer.13
$region0: #{vss_layer.13}
  #allocation0 [shape = 'u32[]', space=smem, size = 0x4, offset = 0x4, fixed_abs, tag = 'smem constant byte address 0x4 - core index']
  #allocation1 [shape = 'u32[144,128]{1,0:T(1,128)}', space=vmem, size = 0x12000, scoped, tag = 'internal scratch']
  #allocation2 [shape = 'f32[16,64]{1,0:T(8,128)}', space=vmem, size = 0x2000, scoped, tag = 'scratch operand']
  #allocation3 [shape = 'f32[64,64]{1,0:T(8,128)}', space=vmem, size = 0x8000, scoped, tag = 'scratch operand']
  %s0 = inlined_call_operand.vmem [shape: bf16[2,2,64,64], index: 0, kind: input, shape index: {}]
  %s1 = inlined_call_operand.vmem [shape: bf16[2,64,64], index: 1, kind: input, shape index: {}]
  %s2 = inlined_call_operand.vmem [shape: bf16[2,32,64], index: 2, kind: input, shape index: {}]
  %s3 = inlined_call_operand.vmem [shape: f32[2,1,64], index: 3, kind: input, shape index: {}]
  %s4 = inlined_call_operand.vmem [shape: f32[2,16,64], index: 4, kind: input, shape index: {}]
  %s5 = inlined_call_operand.vmem [shape: f32[2,1,64], index: 5, kind: input, shape index: {}]
  %s6 = inlined_call_operand.vmem [shape: bf16[2,2,64,64], index: 6, kind: output, shape index: {}]
  %s7 = sld [smem:[#allocation0]]
  $region68: #{vss_layer.13} parent=0
    _
  %s9 = ssub.s32 1, %s7
  %s10 = scalar_select 0, %s9, %s7
  loop: start=0, step=1, limit=6
  $region2: #{vss_layer.13} parent=0 // loop_pre_header
    _
  $region3: #{vss_layer.13} parent=0 // loop_header
    %s12 = sphi 0, %s16
    %p13 = scmp.ge.s32.totalorder %s12, 6
    %s19 = sphi 0, %s38
    %s20 = sphi 0, %s34
    %s21 = sphi 0, %s30
    %s22 = sphi 0, %s19
    %s23 = sphi 0, %s20
    %s24 = sphi 0, %s21
    %s25 = sphi 0, %s22
    %s26 = sphi 0, %s23
    %s27 = sphi 0, %s24
    %s47 = sphi 0, %s49
    %s50 = sphi 0, %s47
    %s51 = sphi 0, %s50
    %s67 = sphi 0, %s51
    %s73 = sphi 0, %s75
    %s76 = sphi 0, %s73
    %s77 = sphi 0, %s76
    %s93 = sphi 0, %s77
    %s99 = sphi 0, %s101
    %s102 = sphi 0, %s99
    %s103 = sphi 0, %s102
    %s119 = sphi 0, %s103
    %s125 = sphi 0, %s127
    %s128 = sphi 0, %s125
    %s129 = sphi 0, %s128
    %s145 = sphi 0, %s129
    %s151 = sphi 0, %s153
    %s154 = sphi 0, %s151
    %s155 = sphi 0, %s154
    %s171 = sphi 0, %s155
    %s177 = sphi 0, %s179
    %s180 = sphi 0, %s177
    %s181 = sphi 0, %s180
    %s197 = sphi 0, %s181
    %s209 = sphi 0, %s211
    %s212 = sphi 0, %s209
    %s213 = sphi 0, %s212
    %s229 = sphi 0, %s213
  $region4: #{vss_layer.13} parent=0 // loop_header_branch
    %15 = sbr.rel (%p13) target = $region8
  $region5: #{vss_layer.13} parent=0 // loop_body
    %s17 = ssub.s32 %s12, 1
    %s18 = ssub.s32 %s12, 2
    %s28 = sadd.s32 1, %s21
    %p29 = scmp.ge.s32.totalorder %s28, 1
    %s30 = scalar_select %p29, 0, %s28
    %s31 = sadd.s32 1, %s20
    %s32 = scalar_select %p29, %s31, %s20
    %p33 = scmp.ge.s32.totalorder %s32, 2
    %s34 = scalar_select %p33, 0, %s32
    %s35 = sadd.s32 1, %s19
    %s36 = scalar_select %p33, %s35, %s19
    %p37 = scmp.ge.s32.totalorder %s36, 2
    %s38 = scalar_select %p37, 0, %s36
    %s39 = ssub.s32 0, %s21
    %s40 = ssub.s32 0, %s30
    %s41 = ssub.s32 %s19, %s38
    %s42 = ssub.s32 %s20, %s34
    %s43 = sor.u32 %s41, %s42
    %s44 = ssub.s32 %s39, %s40
    %s45 = sor.u32 %s43, %s44
    %p46 = scmp.eq.s32.totalorder %s45, 0
    %s48 = sadd.s32 %s47, 1
    %s49 = scalar_select %p46, %s47, %s48
    %p52 = pneg %p46
    %p53 = scmp.eq.s32.totalorder %s12, 3
    %p54 = por %p52, %p53
    %p55 = scmp.ne.s32.totalorder %s47, %s50
    %p56 = scmp.eq.s32.totalorder %s12, 0
    %p57 = por %p55, %p56
    %p58 = scmp.ne.s32.totalorder %s47, %s50
    %p59 = scmp.eq.s32.totalorder %s17, 3
    %p60 = por %p58, %p59
    %p61 = scmp.ne.s32.totalorder %s50, %s51
    %p62 = scmp.eq.s32.totalorder %s17, 0
    %p63 = por %p61, %p62
    %p64 = scmp.ne.s32.totalorder %s50, %s51
    %p65 = scmp.eq.s32.totalorder %s18, 3
    %p66 = por %p64, %p65
    %p68 = scmp.ne.s32.totalorder %s51, %s67
    %p69 = scmp.eq.s32.totalorder %s18, 0
    %p70 = por %p68, %p69
    %s71 = ssub.s32 %s20, %s34
    %p72 = scmp.eq.s32.totalorder %s71, 0
    %s74 = sadd.s32 %s73, 1
    %s75 = scalar_select %p72, %s73, %s74
    %p78 = pneg %p72
    %p79 = scmp.eq.s32.totalorder %s12, 3
    %p80 = por %p78, %p79
    %p81 = scmp.ne.s32.totalorder %s73, %s76
    %p82 = scmp.eq.s32.totalorder %s12, 0
    %p83 = por %p81, %p82
    %p84 = scmp.ne.s32.totalorder %s73, %s76
    %p85 = scmp.eq.s32.totalorder %s17, 3
    %p86 = por %p84, %p85
    %p87 = scmp.ne.s32.totalorder %s76, %s77
    %p88 = scmp.eq.s32.totalorder %s17, 0
    %p89 = por %p87, %p88
    %p90 = scmp.ne.s32.totalorder %s76, %s77
    %p91 = scmp.eq.s32.totalorder %s18, 3
    %p92 = por %p90, %p91
    %p94 = scmp.ne.s32.totalorder %s77, %s93
    %p95 = scmp.eq.s32.totalorder %s18, 0
    %p96 = por %p94, %p95
    %s97 = ssub.s32 %s20, %s34
    %p98 = scmp.eq.s32.totalorder %s97, 0
    %s100 = sadd.s32 %s99, 1
    %s101 = scalar_select %p98, %s99, %s100
    %p104 = pneg %p98
    %p105 = scmp.eq.s32.totalorder %s12, 3
    %p106 = por %p104, %p105
    %p107 = scmp.ne.s32.totalorder %s99, %s102
    %p108 = scmp.eq.s32.totalorder %s12, 0
    %p109 = por %p107, %p108
    %p110 = scmp.ne.s32.totalorder %s99, %s102
    %p111 = scmp.eq.s32.totalorder %s17, 3
    %p112 = por %p110, %p111
    %p113 = scmp.ne.s32.totalorder %s102, %s103
    %p114 = scmp.eq.s32.totalorder %s17, 0
    %p115 = por %p113, %p114
    %p116 = scmp.ne.s32.totalorder %s102, %s103
    %p117 = scmp.eq.s32.totalorder %s18, 3
    %p118 = por %p116, %p117
    %p120 = scmp.ne.s32.totalorder %s103, %s119
    %p121 = scmp.eq.s32.totalorder %s18, 0
    %p122 = por %p120, %p121
    %s123 = ssub.s32 %s20, %s34
    %p124 = scmp.eq.s32.totalorder %s123, 0
    %s126 = sadd.s32 %s125, 1
    %s127 = scalar_select %p124, %s125, %s126
    %p130 = pneg %p124
    %p131 = scmp.eq.s32.totalorder %s12, 3
    %p132 = por %p130, %p131
    %p133 = scmp.ne.s32.totalorder %s125, %s128
    %p134 = scmp.eq.s32.totalorder %s12, 0
    %p135 = por %p133, %p134
    %p136 = scmp.ne.s32.totalorder %s125, %s128
    %p137 = scmp.eq.s32.totalorder %s17, 3
    %p138 = por %p136, %p137
    %p139 = scmp.ne.s32.totalorder %s128, %s129
    %p140 = scmp.eq.s32.totalorder %s17, 0
    %p141 = por %p139, %p140
    %p142 = scmp.ne.s32.totalorder %s128, %s129
    %p143 = scmp.eq.s32.totalorder %s18, 3
    %p144 = por %p142, %p143
    %p146 = scmp.ne.s32.totalorder %s129, %s145
    %p147 = scmp.eq.s32.totalorder %s18, 0
    %p148 = por %p146, %p147
    %s149 = ssub.s32 %s20, %s34
    %p150 = scmp.eq.s32.totalorder %s149, 0
    %s152 = sadd.s32 %s151, 1
    %s153 = scalar_select %p150, %s151, %s152
    %p156 = pneg %p150
    %p157 = scmp.eq.s32.totalorder %s12, 3
    %p158 = por %p156, %p157
    %p159 = scmp.ne.s32.totalorder %s151, %s154
    %p160 = scmp.eq.s32.totalorder %s12, 0
    %p161 = por %p159, %p160
    %p162 = scmp.ne.s32.totalorder %s151, %s154
    %p163 = scmp.eq.s32.totalorder %s17, 3
    %p164 = por %p162, %p163
    %p165 = scmp.ne.s32.totalorder %s154, %s155
    %p166 = scmp.eq.s32.totalorder %s17, 0
    %p167 = por %p165, %p166
    %p168 = scmp.ne.s32.totalorder %s154, %s155
    %p169 = scmp.eq.s32.totalorder %s18, 3
    %p170 = por %p168, %p169
    %p172 = scmp.ne.s32.totalorder %s155, %s171
    %p173 = scmp.eq.s32.totalorder %s18, 0
    %p174 = por %p172, %p173
    %s175 = ssub.s32 %s20, %s34
    %p176 = scmp.eq.s32.totalorder %s175, 0
    %s178 = sadd.s32 %s177, 1
    %s179 = scalar_select %p176, %s177, %s178
    %p182 = pneg %p176
    %p183 = scmp.eq.s32.totalorder %s12, 3
    %p184 = por %p182, %p183
    %p185 = scmp.ne.s32.totalorder %s177, %s180
    %p186 = scmp.eq.s32.totalorder %s12, 0
    %p187 = por %p185, %p186
    %p188 = scmp.ne.s32.totalorder %s177, %s180
    %p189 = scmp.eq.s32.totalorder %s17, 3
    %p190 = por %p188, %p189
    %p191 = scmp.ne.s32.totalorder %s180, %s181
    %p192 = scmp.eq.s32.totalorder %s17, 0
    %p193 = por %p191, %p192
    %p194 = scmp.ne.s32.totalorder %s180, %s181
    %p195 = scmp.eq.s32.totalorder %s18, 3
    %p196 = por %p194, %p195
    %p198 = scmp.ne.s32.totalorder %s181, %s197
    %p199 = scmp.eq.s32.totalorder %s18, 0
    %p200 = por %p198, %p199
    %s201 = ssub.s32 0, %s21
    %s202 = ssub.s32 0, %s30
    %s203 = ssub.s32 %s19, %s38
    %s204 = ssub.s32 %s20, %s34
    %s205 = sor.u32 %s203, %s204
    %s206 = ssub.s32 %s201, %s202
    %s207 = sor.u32 %s205, %s206
    %p208 = scmp.eq.s32.totalorder %s207, 0
    %s210 = sadd.s32 %s209, 1
    %s211 = scalar_select %p208, %s209, %s210
    %p214 = pneg %p208
    %p215 = scmp.eq.s32.totalorder %s12, 3
    %p216 = por %p214, %p215
    %p217 = scmp.ne.s32.totalorder %s209, %s212
    %p218 = scmp.eq.s32.totalorder %s12, 0
    %p219 = por %p217, %p218
    %p220 = scmp.ne.s32.totalorder %s209, %s212
    %p221 = scmp.eq.s32.totalorder %s17, 3
    %p222 = por %p220, %p221
    %p223 = scmp.ne.s32.totalorder %s212, %s213
    %p224 = scmp.eq.s32.totalorder %s17, 0
    %p225 = por %p223, %p224
    %p226 = scmp.ne.s32.totalorder %s212, %s213
    %p227 = scmp.eq.s32.totalorder %s18, 3
    %p228 = por %p226, %p227
    %p230 = scmp.ne.s32.totalorder %s213, %s229
    %p231 = scmp.eq.s32.totalorder %s18, 0
    %p232 = por %p230, %p231
    %p233 = scmp.le.s32.totalorder 1, %s12
    %p234 = scmp.lt.s32.totalorder %s12, 5
    %p235 = pnand %p233, %p234
    %p236 = pneg %p235
    // Predicated region
    $region9: #{vss_layer.13} parent=5 // pred_check
      _
    $region10: #{vss_layer.13} parent=5 // pred_check_branch
      %238 = sbr.rel (%p235) target = $region12
    $region11: #{vss_layer.13} parent=5 // pred_region
      %s239 = ssub.s32 %s12, 1
    $region12: #{vss_layer.13} parent=5 // pred_fallthru
      _
    %p240 = scmp.lt.s32.totalorder %s12, 4
    // Predicated region
    $region13: #{vss_layer.13} parent=5 // pred_check
      %p241 = pneg %p240
    $region14: #{vss_layer.13} parent=5 // pred_check_branch
      %243 = sbr.rel (%p241) target = $region16
    $region15: #{vss_layer.13} parent=5 // pred_region
      // Predicated region
      $region17: #{vss_layer.13} parent=15 // pred_check
        %p244 = pneg %p57
      $region18: #{vss_layer.13} parent=15 // pred_check_branch
        %246 = sbr.rel (%p244) target = $region20
      $region19: #{vss_layer.13} parent=15 // pred_region
        %s247 = ssub.s32 0, %s21
        %s248 = smul.u32 8, %s247
        %p249 = scmp.lt.s32.totalorder %s19, 1
        %s250 = scalar_select %p249, %s19, 1
        %p251 = scmp.lt.s32.totalorder %s20, 1
        %s252 = scalar_select %p251, %s20, 1
        %p253 = scmp.lt.s32.totalorder %s248, 7
        %s254 = scalar_select %p253, %s248, 7
        %s255 = smul.addr %s252, 8
        %s256 = sadd.s32 %s254, %s255
        %s257 = smul.addr %s250, 16
        %s258 = sadd.s32 %s256, %s257
        %s259 = smul.addr %s258, 4
        %s260 = scalar_lea.vmem %s0, %s259
        %s261 = ssub.s32 0, %s21
        %s262 = smul.u32 8, %s261
      $region20: #{vss_layer.13} parent=15 // pred_fallthru
        _
      // Predicated region
      $region21: #{vss_layer.13} parent=15 // pred_check
        %p263 = pneg %p83
      $region22: #{vss_layer.13} parent=15 // pred_check_branch
        %265 = sbr.rel (%p263) target = $region24
      $region23: #{vss_layer.13} parent=15 // pred_region
        %p266 = scmp.lt.s32.totalorder %s20, 1
        %s267 = scalar_select %p266, %s20, 1
        %s268 = smul.addr %s267, 8
        %s269 = smul.addr %s268, 4
        %s270 = scalar_lea.vmem %s1, %s269
      $region24: #{vss_layer.13} parent=15 // pred_fallthru
        _
      // Predicated region
      $region25: #{vss_layer.13} parent=15 // pred_check
        %p271 = pneg %p109
      $region26: #{vss_layer.13} parent=15 // pred_check_branch
        %273 = sbr.rel (%p271) target = $region28
      $region27: #{vss_layer.13} parent=15 // pred_region
        %p274 = scmp.lt.s32.totalorder %s20, 1
        %s275 = scalar_select %p274, %s20, 1
        %s276 = smul.addr %s275, 4
        %s277 = smul.addr %s276, 4
        %s278 = scalar_lea.vmem %s2, %s277
      $region28: #{vss_layer.13} parent=15 // pred_fallthru
        _
      // Predicated region
      $region29: #{vss_layer.13} parent=15 // pred_check
        %p279 = pneg %p135
      $region30: #{vss_layer.13} parent=15 // pred_check_branch
        %281 = sbr.rel (%p279) target = $region32
      $region31: #{vss_layer.13} parent=15 // pred_region
        %p282 = scmp.lt.s32.totalorder %s20, 1
        %s283 = scalar_select %p282, %s20, 1
        %s284 = scalar_lea.vmem %s3, %s283
      $region32: #{vss_layer.13} parent=15 // pred_fallthru
        _
      // Predicated region
      $region33: #{vss_layer.13} parent=15 // pred_check
        %p285 = pneg %p161
      $region34: #{vss_layer.13} parent=15 // pred_check_branch
        %287 = sbr.rel (%p285) target = $region36
      $region35: #{vss_layer.13} parent=15 // pred_region
        %p288 = scmp.lt.s32.totalorder %s20, 1
        %s289 = scalar_select %p288, %s20, 1
        %s290 = smul.addr %s289, 2
        %s291 = smul.addr %s290, 8
        %s292 = scalar_lea.vmem %s4, %s291
      $region36: #{vss_layer.13} parent=15 // pred_fallthru
        _
      // Predicated region
      $region37: #{vss_layer.13} parent=15 // pred_check
        %p293 = pneg %p187
      $region38: #{vss_layer.13} parent=15 // pred_check_branch
        %295 = sbr.rel (%p293) target = $region40
      $region39: #{vss_layer.13} parent=15 // pred_region
        %p296 = scmp.lt.s32.totalorder %s20, 1
        %s297 = scalar_select %p296, %s20, 1
        %s298 = scalar_lea.vmem %s5, %s297
      $region40: #{vss_layer.13} parent=15 // pred_fallthru
        _
    $region16: #{vss_layer.13} parent=5 // pred_fallthru
      _
    %p299 = scmp.le.s32.totalorder 1, %s12
    %p300 = scmp.lt.s32.totalorder %s12, 5
    %p301 = pnand %p299, %p300
    %p302 = pneg %p301
    // Predicated region
    $region41: #{vss_layer.13} parent=5 // pred_check
      _
    $region42: #{vss_layer.13} parent=5 // pred_check_branch
      %304 = sbr.rel (%p301) target = $region44
    $region43: #{vss_layer.13} parent=5 // pred_region
      %s305 = ssub.s32 %s12, 1
      %s306 = ssub.s32 0, %s24
      %s307 = smul.u32 8, %s306
      %p308 = scmp.lt.s32.totalorder %s22, 1
      %s309 = scalar_select %p308, %s22, 1
      %p310 = scmp.lt.s32.totalorder %s23, 1
      %s311 = scalar_select %p310, %s23, 1
      %p312 = scmp.lt.s32.totalorder %s307, 7
      %s313 = scalar_select %p312, %s307, 7
      %s314 = smul.addr %s311, 8
      %s315 = sadd.s32 %s313, %s314
      %s316 = smul.addr %s309, 16
      %s317 = sadd.s32 %s315, %s316
      %s318 = smul.addr %s317, 4
      %s319 = scalar_lea.vmem %s0, %s318
      %p320 = pneg %p63
      %p321 = pneg %p60
      %p322 = scmp.lt.s32.totalorder %s23, 1
      %s323 = scalar_select %p322, %s23, 1
      %s324 = smul.addr %s323, 8
      %s325 = smul.addr %s324, 4
      %s326 = scalar_lea.vmem %s1, %s325
      %p327 = pneg %p89
      %p328 = pneg %p86
      %p329 = scmp.lt.s32.totalorder %s23, 1
      %s330 = scalar_select %p329, %s23, 1
      %s331 = smul.addr %s330, 4
      %s332 = smul.addr %s331, 4
      %s333 = scalar_lea.vmem %s2, %s332
      %p334 = pneg %p115
      %p335 = pneg %p112
      %p336 = scmp.lt.s32.totalorder %s23, 1
      %s337 = scalar_select %p336, %s23, 1
      %s338 = scalar_lea.vmem %s3, %s337
      %p339 = pneg %p141
      %p340 = pneg %p138
      %p341 = scmp.lt.s32.totalorder %s23, 1
      %s342 = scalar_select %p341, %s23, 1
      %s343 = smul.addr %s342, 2
      %s344 = smul.addr %s343, 8
      %s345 = scalar_lea.vmem %s4, %s344
      %p346 = pneg %p167
      %p347 = pneg %p164
      %p348 = scmp.lt.s32.totalorder %s23, 1
      %s349 = scalar_select %p348, %s23, 1
      %s350 = scalar_lea.vmem %s5, %s349
      %p351 = pneg %p193
      %p352 = pneg %p190
      %p353 = pneg %p225
      %p354 = pneg %p222
      %s355 = ssub.s32 0, %s24
      %s356 = smul.u32 8, %s355
      %p357 = scmp.lt.s32.totalorder %s22, 1
      %s358 = scalar_select %p357, %s22, 1
      %p359 = scmp.lt.s32.totalorder %s23, 1
      %s360 = scalar_select %p359, %s23, 1
      %p361 = scmp.lt.s32.totalorder %s356, 7
      %s362 = scalar_select %p361, %s356, 7
      %s363 = smul.addr %s360, 8
      %s364 = sadd.s32 %s362, %s363
      %s365 = smul.addr %s358, 16
      %s366 = sadd.s32 %s364, %s365
      %s367 = smul.addr %s366, 4
      %s368 = scalar_lea.vmem %s6, %s367
      %s369 = ssub.s32 0, %s24
      %s370 = smul.u32 8, %s369
      %p371 = scmp.lt.s32.totalorder %s22, 1
      %s372 = scalar_select %p371, %s22, 1
      %p373 = scmp.lt.s32.totalorder %s23, 1
      %s374 = scalar_select %p373, %s23, 1
      %p375 = scmp.lt.s32.totalorder %s370, 7
      %s376 = scalar_select %p375, %s370, 7
      %s377 = smul.addr %s374, 8
      %s378 = sadd.s32 %s376, %s377
      %s379 = smul.addr %s372, 16
      %s380 = sadd.s32 %s378, %s379
      %s381 = smul.addr %s380, 4
      %s382 = scalar_lea.vmem %s0, %s381
      %s383 = ssub.s32 0, %s24
      %s384 = smul.u32 8, %s383
      %p385 = scmp.lt.s32.totalorder %s23, 1
      %s386 = scalar_select %p385, %s23, 1
      %s387 = smul.addr %s386, 8
      %s388 = smul.addr %s387, 4
      %s389 = scalar_lea.vmem %s1, %s388
      %p390 = scmp.lt.s32.totalorder %s23, 1
      %s391 = scalar_select %p390, %s23, 1
      %s392 = smul.addr %s391, 4
      %s393 = smul.addr %s392, 4
      %s394 = scalar_lea.vmem %s2, %s393
      %p395 = scmp.lt.s32.totalorder %s23, 1
      %s396 = scalar_select %p395, %s23, 1
      %s397 = scalar_lea.vmem %s3, %s396
      %p398 = scmp.lt.s32.totalorder %s23, 1
      %s399 = scalar_select %p398, %s23, 1
      %s400 = smul.addr %s399, 2
      %s401 = smul.addr %s400, 8
      %s402 = scalar_lea.vmem %s4, %s401
      %p403 = scmp.lt.s32.totalorder %s23, 1
      %s404 = scalar_select %p403, %s23, 1
      %s405 = scalar_lea.vmem %s5, %s404
      %s406 = ssub.s32 0, %s24
      %s407 = smul.u32 8, %s406
      %p408 = scmp.lt.s32.totalorder %s22, 1
      %s409 = scalar_select %p408, %s22, 1
      %p410 = scmp.lt.s32.totalorder %s23, 1
      %s411 = scalar_select %p410, %s23, 1
      %p412 = scmp.lt.s32.totalorder %s407, 7
      %s413 = scalar_select %p412, %s407, 7
      %s414 = smul.addr %s411, 8
      %s415 = sadd.s32 %s413, %s414
      %s416 = smul.addr %s409, 16
      %s417 = sadd.s32 %s415, %s416
      %s418 = smul.addr %s417, 4
      %s419 = scalar_lea.vmem %s6, %s418
      %s420 = ssub.s32 0, %s24
      %s421 = smul.u32 8, %s420
      %p423 = scmp.eq.s32.totalorder %s24, 0
      // Predicated region
      $region45: #{vss_layer.13} parent=43 // pred_check
        %p424 = pneg %p423
      $region46: #{vss_layer.13} parent=43 // pred_check_branch
        %426 = sbr.rel (%p424) target = $region48
      $region47: #{vss_layer.13} parent=43 // pred_region
        %vm427 = vcmask 523264
        %428 = vst.msk [vmem:[#allocation2] sm:$0xff] %vm427, 0.0
        %429 = vst.msk [vmem:[#allocation2 + $0x8] sm:$0xff] %vm427, 0.0
      $region48: #{vss_layer.13} parent=43 // pred_fallthru
        _
      %v430 = vld [vmem:[%s382] sm:$0xf]
      %v431 = vld [vmem:[%s382 + $0x4] sm:$0xf]
      %v432 = vld [vmem:[%s382 + $0x8] sm:$0xf]
      %v433 = vld [vmem:[%s382 + $0xc] sm:$0xf]
      %v434 = vld [vmem:[%s382 + $0x10] sm:$0xf]
      %v435 = vld [vmem:[%s382 + $0x14] sm:$0xf]
      %v436 = vld [vmem:[%s382 + $0x18] sm:$0xf]
      %v437 = vld [vmem:[%s382 + $0x1c] sm:$0xf]
      %v438 = vld [vmem:[%s389] sm:$0xf]
      %v439 = vld [vmem:[%s389 + $0x4] sm:$0xf]
      %v440 = vld [vmem:[%s389 + $0x8] sm:$0xf]
      %v441 = vld [vmem:[%s389 + $0xc] sm:$0xf]
      %v442 = vld [vmem:[%s389 + $0x10] sm:$0xf]
      %v443 = vld [vmem:[%s389 + $0x14] sm:$0xf]
      %v444 = vld [vmem:[%s389 + $0x18] sm:$0xf]
      %v445 = vld [vmem:[%s389 + $0x1c] sm:$0xf]
      %v446 = vld [vmem:[%s397] sm:$0x1]
      %v448 = vlaneseq
      %v449 = vshrl.u32 %v448, 7
      %v450 = vsub.s32 0, %v449
      %v451 = vrot.slane %v446, %v450
      %v461 = vunpack.c.l.b16 %v430
      %v462 = vunpack.c.l.b16 %v431
      %v463 = vunpack.c.l.b16 %v432
      %v464 = vunpack.c.l.b16 %v433
      %v465 = vunpack.c.l.b16 %v434
      %v466 = vunpack.c.l.b16 %v435
      %v467 = vunpack.c.l.b16 %v436
      %v468 = vunpack.c.l.b16 %v437
      %v469 = vpack.c.b16 %v462, %v461
      %v470 = vpack.c.b16 %v464, %v463
      %v471 = vpack.c.b16 %v466, %v465
      %v472 = vpack.c.b16 %v468, %v467
      %v481 = vunpack.c.l.b16 %v438
      %v482 = vunpack.c.l.b16 %v439
      %v483 = vunpack.c.l.b16 %v440
      %v484 = vunpack.c.l.b16 %v441
      %v485 = vunpack.c.l.b16 %v442
      %v486 = vunpack.c.l.b16 %v443
      %v487 = vunpack.c.l.b16 %v444
      %v488 = vunpack.c.l.b16 %v445
      %v489 = vpack.c.b16 %v482, %v481
      %v490 = vpack.c.b16 %v484, %v483
      %v491 = vpack.c.b16 %v486, %v485
      %v492 = vpack.c.b16 %v488, %v487
      %vm497 = vcmask 523264
      %v499 = vsel %vm497, %v469, 0
      %v502 = vsel %vm497, %v470, 0
      %v505 = vsel %vm497, %v471, 0
      %v508 = vsel %vm497, %v472, 0
      %510 = vmatprep.subr.bf16.mxu0 0
      %511 = vmatpush1.bf16.msra.mxu0 0
      %512 = vmatprep.subr.bf16.mxu0 0
      %513 = vmatpush1.bf16.msra.mxu0 0
      %514 = vmatprep.subr.bf16.mxu0 0
      %515 = vmatpush1.bf16.msra.mxu0 0
      %516 = vmatprep.subr.bf16.mxu0 0
      %517 = vmatpush1.bf16.msra.mxu0 0
      %518 = vmatprep.subr.bf16.mxu0 0
      %519 = vmatpush1.bf16.msra.mxu0 %v492
      %520 = vmatprep.subr.bf16.mxu0 0
      %521 = vmatpush1.bf16.msra.mxu0 %v491
      %522 = vmatprep.subr.bf16.mxu0 0
      %523 = vmatpush1.bf16.msra.mxu0 %v490
      %524 = vmatprep.subr.bf16.mxu0 0
      %525 = vmatpush1.bf16.msra.mxu0 %v489
      %526 = vmatprep.subr.bf16.mxu0 0
      %527 = vmatpush2.bf16.msra.mxu0 0
      %528 = vmatprep.subr.bf16.mxu0 0
      %529 = vmatpush2.bf16.msra.mxu0 0
      %530 = vmatprep.subr.bf16.mxu0 0
      %531 = vmatpush2.bf16.msra.mxu0 0
      %532 = vmatprep.subr.bf16.mxu0 0
      %533 = vmatpush2.bf16.msra.mxu0 0
      %534 = vmatprep.subr.bf16.mxu0 0
      %535 = vmatpush2.bf16.msra.mxu0 0
      %536 = vmatprep.subr.bf16.mxu0 0
      %537 = vmatpush2.bf16.msra.mxu0 0
      %538 = vmatprep.subr.bf16.mxu0 0
      %539 = vmatpush2.bf16.msra.mxu0 0
      %540 = vmatprep.subr.bf16.mxu0 0
      %541 = vmatpush2.bf16.msra.mxu0 0
      %542 = vmatprep.mubr.bf16.mxu0 0
      %543 = vmatmul.mubr.bf16.gmra.mxu0 %v499
      %v544 = vpop.f32.mrf.mxu0
      %v545 = vadd.f32 %v451, %v544
      %v546 = vpop.f32.mrf.mxu0
      %v547 = vpop.f32.mrf.mxu0
      %v548 = vadd.f32 %v451, %v547
      %v549 = vpop.f32.mrf.mxu0
      %550 = vmatprep.mubr.bf16.mxu0 0
      %551 = vmatmul.mubr.bf16.gmra.mxu0 %v502
      %v552 = vpop.f32.mrf.mxu0
      %v553 = vadd.f32 %v451, %v552
      %v554 = vpop.f32.mrf.mxu0
      %v555 = vpop.f32.mrf.mxu0
      %v556 = vadd.f32 %v451, %v555
      %v557 = vpop.f32.mrf.mxu0
      %558 = vmatprep.mubr.bf16.mxu0 0
      %559 = vmatmul.mubr.bf16.gmra.mxu0 %v505
      %v560 = vpop.f32.mrf.mxu0
      %v561 = vadd.f32 %v451, %v560
      %v562 = vpop.f32.mrf.mxu0
      %v563 = vpop.f32.mrf.mxu0
      %v564 = vadd.f32 %v451, %v563
      %v565 = vpop.f32.mrf.mxu0
      %566 = vmatprep.mubr.bf16.mxu0 0
      %567 = vmatmul.mubr.bf16.gmra.mxu0 %v508
      %v568 = vpop.f32.mrf.mxu0
      %v569 = vadd.f32 %v451, %v568
      %v570 = vpop.f32.mrf.mxu0
      %v571 = vpop.f32.mrf.mxu0
      %v572 = vadd.f32 %v451, %v571
      %v573 = vpop.f32.mrf.mxu0
      %574 = vdwg.mxu0
      %vm575 = vcmp.gt.f32.partialorder %v545, 20.0
      %vm576 = vcmp.gt.f32.partialorder %v548, 20.0
      %vm577 = vcmp.gt.f32.partialorder %v553, 20.0
      %vm578 = vcmp.gt.f32.partialorder %v556, 20.0
      %vm579 = vcmp.gt.f32.partialorder %v561, 20.0
      %vm580 = vcmp.gt.f32.partialorder %v564, 20.0
      %vm581 = vcmp.gt.f32.partialorder %v569, 20.0
      %vm582 = vcmp.gt.f32.partialorder %v572, 20.0
      %v583 = vmin.f32 %v545, 20.0
      %v584 = vmin.f32 %v548, 20.0
      %v585 = vmin.f32 %v553, 20.0
      %v586 = vmin.f32 %v556, 20.0
      %v587 = vmin.f32 %v561, 20.0
      %v588 = vmin.f32 %v564, 20.0
      %v589 = vmin.f32 %v569, 20.0
      %v590 = vmin.f32 %v572, 20.0
      %v591 = vmul.f32 %v583, 1.442695
      %v592 = vpow.pop %v591
      %v593 = vmul.f32 %v584, 1.442695
      %v594 = vpow.pop %v593
      %v595 = vmul.f32 %v585, 1.442695
      %v596 = vpow.pop %v595
      %v597 = vmul.f32 %v586, 1.442695
      %v598 = vpow.pop %v597
      %v599 = vmul.f32 %v587, 1.442695
      %v600 = vpow.pop %v599
      %v601 = vmul.f32 %v588, 1.442695
      %v602 = vpow.pop %v601
      %v603 = vmul.f32 %v589, 1.442695
      %v604 = vpow.pop %v603
      %v605 = vmul.f32 %v590, 1.442695
      %v606 = vpow.pop %v605
      %v607 = vadd.f32 %v592, 1.0
      %v608 = vlog2.pop %v607
      %v609 = vmul.f32 %v608, 0.6931472
      %v610 = vmul.f32 -0.5, %v592
      %v611 = vadd.f32 %v610, 1.0
      %v612 = vmul.f32 %v611, %v592
      %v613 = vand.u32 2147483647, %v592
      %vm614 = vcmp.lt.f32.partialorder %v613, 0.0004427343
      %v615 = vsel %vm614, %v612, %v609
      %v616 = vadd.f32 %v594, 1.0
      %v617 = vlog2.pop %v616
      %v618 = vmul.f32 %v617, 0.6931472
      %v619 = vmul.f32 -0.5, %v594
      %v620 = vadd.f32 %v619, 1.0
      %v621 = vmul.f32 %v620, %v594
      %v622 = vand.u32 2147483647, %v594
      %vm623 = vcmp.lt.f32.partialorder %v622, 0.0004427343
      %v624 = vsel %vm623, %v621, %v618
      %v625 = vadd.f32 %v596, 1.0
      %v626 = vlog2.pop %v625
      %v627 = vmul.f32 %v626, 0.6931472
      %v628 = vmul.f32 -0.5, %v596
      %v629 = vadd.f32 %v628, 1.0
      %v630 = vmul.f32 %v629, %v596
      %v631 = vand.u32 2147483647, %v596
      %vm632 = vcmp.lt.f32.partialorder %v631, 0.0004427343
      %v633 = vsel %vm632, %v630, %v627
      %v634 = vadd.f32 %v598, 1.0
      %v635 = vlog2.pop %v634
      %v636 = vmul.f32 %v635, 0.6931472
      %v637 = vmul.f32 -0.5, %v598
      %v638 = vadd.f32 %v637, 1.0
      %v639 = vmul.f32 %v638, %v598
      %v640 = vand.u32 2147483647, %v598
      %vm641 = vcmp.lt.f32.partialorder %v640, 0.0004427343
      %v642 = vsel %vm641, %v639, %v636
      %v643 = vadd.f32 %v600, 1.0
      %v644 = vlog2.pop %v643
      %v645 = vmul.f32 %v644, 0.6931472
      %v646 = vmul.f32 -0.5, %v600
      %v647 = vadd.f32 %v646, 1.0
      %v648 = vmul.f32 %v647, %v600
      %v649 = vand.u32 2147483647, %v600
      %vm650 = vcmp.lt.f32.partialorder %v649, 0.0004427343
      %v651 = vsel %vm650, %v648, %v645
      %v652 = vadd.f32 %v602, 1.0
      %v653 = vlog2.pop %v652
      %v654 = vmul.f32 %v653, 0.6931472
      %v655 = vmul.f32 -0.5, %v602
      %v656 = vadd.f32 %v655, 1.0
      %v657 = vmul.f32 %v656, %v602
      %v658 = vand.u32 2147483647, %v602
      %vm659 = vcmp.lt.f32.partialorder %v658, 0.0004427343
      %v660 = vsel %vm659, %v657, %v654
      %v661 = vadd.f32 %v604, 1.0
      %v662 = vlog2.pop %v661
      %v663 = vmul.f32 %v662, 0.6931472
      %v664 = vmul.f32 -0.5, %v604
      %v665 = vadd.f32 %v664, 1.0
      %v666 = vmul.f32 %v665, %v604
      %v667 = vand.u32 2147483647, %v604
      %vm668 = vcmp.lt.f32.partialorder %v667, 0.0004427343
      %v669 = vsel %vm668, %v666, %v663
      %v670 = vadd.f32 %v606, 1.0
      %v671 = vlog2.pop %v670
      %v672 = vmul.f32 %v671, 0.6931472
      %v673 = vmul.f32 -0.5, %v606
      %v674 = vadd.f32 %v673, 1.0
      %v675 = vmul.f32 %v674, %v606
      %v676 = vand.u32 2147483647, %v606
      %vm677 = vcmp.lt.f32.partialorder %v676, 0.0004427343
      %v678 = vsel %vm677, %v675, %v672
      %v679 = vsel %vm575, %v545, %v615
      %v680 = vsel %vm576, %v548, %v624
      %v681 = vsel %vm577, %v553, %v633
      %v682 = vsel %vm578, %v556, %v642
      %v683 = vsel %vm579, %v561, %v651
      %v684 = vsel %vm580, %v564, %v660
      %v685 = vsel %vm581, %v569, %v669
      %v686 = vsel %vm582, %v572, %v678
      %687 = vst.msk [vmem:[#allocation3] sm:$0xff] %vm497, %v679
      %688 = vst.msk [vmem:[#allocation3 + $0x8] sm:$0xff] %vm497, %v680
      %689 = vst.msk [vmem:[#allocation3 + $0x10] sm:$0xff] %vm497, %v681
      %690 = vst.msk [vmem:[#allocation3 + $0x18] sm:$0xff] %vm497, %v682
      %691 = vst.msk [vmem:[#allocation3 + $0x20] sm:$0xff] %vm497, %v683
      %692 = vst.msk [vmem:[#allocation3 + $0x28] sm:$0xff] %vm497, %v684
      %693 = vst.msk [vmem:[#allocation3 + $0x30] sm:$0xff] %vm497, %v685
      %694 = vst.msk [vmem:[#allocation3 + $0x38] sm:$0xff] %vm497, %v686
      %v695 = vld [vmem:[%s402] sm:$0xff]
      %v696 = vld [vmem:[%s402 + $0x8] sm:$0xff]
      %v697 = vld [vmem:[%s405] sm:$0x1]
      %v698 = vld [vmem:[%s394] sm:$0xf]
      %v699 = vld [vmem:[%s394 + $0x4] sm:$0xf]
      %v700 = vld [vmem:[%s394 + $0x8] sm:$0xf]
      %v701 = vld [vmem:[%s394 + $0xc] sm:$0xf]
      loop: start=0, step=1, limit=8
      $region49: #{vss_layer.13} parent=43 // loop_pre_header
        _
      $region50: #{vss_layer.13} parent=43 // loop_header
        %s703 = sphi 0, %s707
        %p704 = scmp.ge.s32.totalorder %s703, 8
      $region51: #{vss_layer.13} parent=43 // loop_header_branch
        %706 = sbr.rel (%p704) target = $region55
      $region52: #{vss_layer.13} parent=43 // loop_body
        %s708 = ssub.s32 7, %s703
        %s709 = smul.u32 %s708, 8
        %s710 = sshra.s32 %s709, 3
        %s711 = sand.u32 %s709, 7
        %s712 = smul.addr %s710, 4
        %s713 = scalar_lea.vmem %s382, %s712
        %v714 = vld [vmem:[%s713] sm:$0xf]
        %v715 = vunpack.c.l.bf16 %v714
        %s716 = scalar_lea.vmem [#allocation3], %s709
        %v717 = vld [vmem:[%s716] sm:$0xff]
        %v718 = vmul.f32 %v717, %v715
        %v723 = vunpack.c.l.b16 %v698
        %v724 = vunpack.c.l.b16 %v699
        %v725 = vunpack.c.l.b16 %v700
        %v726 = vunpack.c.l.b16 %v701
        %v727 = vpack.c.b16 %v724, %v723
        %v728 = vpack.c.b16 %v726, %v725
        %v730 = vsel %vm497, %v727, 0
        %v733 = vsel %vm497, %v728, 0
        %v736 = vsel %vm497, %v714, 0
        %738 = vmatprep.subr.bf16.mxu0 0
        %739 = vmatpush1.bf16.xpose.msra.mxu0 0
        %740 = vmatprep.subr.bf16.mxu0 0
        %741 = vmatpush1.bf16.xpose.msra.mxu0 0
        %742 = vmatprep.subr.bf16.mxu0 0
        %743 = vmatpush1.bf16.xpose.msra.mxu0 0
        %744 = vmatprep.subr.bf16.mxu0 0
        %745 = vmatpush1.bf16.xpose.msra.mxu0 0
        %746 = vmatprep.subr.bf16.mxu0 0
        %747 = vmatpush1.bf16.xpose.msra.mxu0 0
        %748 = vmatprep.subr.bf16.mxu0 0
        %749 = vmatpush1.bf16.xpose.msra.mxu0 0
        %750 = vmatprep.subr.bf16.mxu0 0
        %751 = vmatpush1.bf16.xpose.msra.mxu0 0
        %752 = vmatprep.subr.bf16.mxu0 0
        %753 = vmatpush1.bf16.xpose.msra.mxu0 %v736
        %754 = vmatprep.subr.bf16.mxu0 0
        %755 = vmatpush2.bf16.xpose.msra.mxu0 0
        %756 = vmatprep.subr.bf16.mxu0 0
        %757 = vmatpush2.bf16.xpose.msra.mxu0 0
        %758 = vmatprep.subr.bf16.mxu0 0
        %759 = vmatpush2.bf16.xpose.msra.mxu0 0
        %760 = vmatprep.subr.bf16.mxu0 0
        %761 = vmatpush2.bf16.xpose.msra.mxu0 0
        %762 = vmatprep.subr.bf16.mxu0 0
        %763 = vmatpush2.bf16.xpose.msra.mxu0 0
        %764 = vmatprep.subr.bf16.mxu0 0
        %765 = vmatpush2.bf16.xpose.msra.mxu0 0
        %766 = vmatprep.subr.bf16.mxu0 0
        %767 = vmatpush2.bf16.xpose.msra.mxu0 0
        %768 = vmatprep.subr.bf16.mxu0 0
        %769 = vmatpush2.bf16.xpose.msra.mxu0 0
        %770 = vmatprep.mubr.bf16.mxu0 0
        %771 = vmatmul.mubr.bf16.gmra.mxu0 %v730
        %v772 = vpop.f32.mrf.mxu0
        %v773 = vadd.f32 0.0, %v772
        %v774 = vpop.f32.mrf.mxu0
        %v775 = vpop.f32.mrf.mxu0
        %v776 = vadd.f32 0.0, %v775
        %v777 = vpop.f32.mrf.mxu0
        %778 = vmatprep.mubr.bf16.mxu0 0
        %779 = vmatmul.mubr.bf16.gmra.mxu0 %v733
        %v780 = vpop.f32.mrf.mxu0
        %v781 = vadd.f32 0.0, %v780
        %v782 = vpop.f32.mrf.mxu0
        %v783 = vpop.f32.mrf.mxu0
        %v784 = vadd.f32 0.0, %v783
        %v785 = vpop.f32.mrf.mxu0
        %786 = vdwg.mxu0
        %v787 = vld [vmem:[#allocation2] sm:$0xff]
        %v788 = vld [vmem:[#allocation2 + $0x8] sm:$0xff]
        %v789 = vlaneseq
        %v790 = vshrl.u32 %v789, 7
        %v791 = vsub.s32 7, %v790
        %v792 = vrot.slane %v717, %v791
        %v793 = vmul.f32 %v792, %v695
        %v794 = vmul.f32 %v792, %v696
        %v795 = vmul.f32 %v793, 1.442695
        %v796 = vpow.pop %v795
        %v797 = vmul.f32 %v794, 1.442695
        %v798 = vpow.pop %v797
        %v799 = vmul.f32 %v796, %v787
        %v800 = vmul.f32 %v798, %v788
        %v801 = vlaneseq
        %v802 = vshrl.u32 %v801, 7
        %v803 = vsub.s32 7, %v802
        %v804 = vrot.slane %v718, %v803
        %806 = vset.pattern.permute.xlu0 7
        %807 = vperm.xlu0 %806, %v773
        %v808 = vpop.permute.xlu0 %807
        %811 = vset.pattern.permute.xlu0 7
        %812 = vperm.xlu0 %811, %v776
        %v813 = vpop.permute.xlu0 %812
        %v815 = vmul.f32 %v804, %v808
        %v816 = vmul.f32 %v804, %v813
        %v817 = vadd.f32 %v799, %v815
        %v818 = vadd.f32 %v800, %v816
        %820 = vset.pattern.permute.xlu0 7
        %821 = vperm.xlu0 %820, %v781
        %v822 = vpop.permute.xlu0 %821
        %825 = vset.pattern.permute.xlu0 7
        %826 = vperm.xlu0 %825, %v784
        %v827 = vpop.permute.xlu0 %826
        %v829 = vmul.f32 %v817, %v822
        %v830 = vmul.f32 %v818, %v827
        %v831 = vsel %vm497, %v829, 0.0
        %v832 = vsel %vm497, %v830, 0.0
        %v833 = vadd.f32 %v831, %v832
        %v834 = vrot.slane %v833, 4
        %v835 = vadd.f32 %v833, %v834
        %v836 = vrot.slane %v835, 2
        %v837 = vadd.f32 %v835, %v836
        %v838 = vrot.slane %v837, 1
        %v839 = vadd.f32 %v837, %v838
        %v840 = vlaneseq
        %v841 = vshrl.u32 %v840, 7
        %v842 = vsub.s32 6, %v841
        %v843 = vrot.slane %v717, %v842
        %v844 = vmul.f32 %v843, %v695
        %v845 = vmul.f32 %v843, %v696
        %v846 = vmul.f32 %v844, 1.442695
        %v847 = vpow.pop %v846
        %v848 = vmul.f32 %v845, 1.442695
        %v849 = vpow.pop %v848
        %v850 = vmul.f32 %v847, %v817
        %v851 = vmul.f32 %v849, %v818
        %v852 = vlaneseq
        %v853 = vshrl.u32 %v852, 7
        %v854 = vsub.s32 6, %v853
        %v855 = vrot.slane %v718, %v854
        %856 = vset.pattern.permute.xlu0 6
        %857 = vperm.xlu0 %856, %v773
        %v858 = vpop.permute.xlu0 %857
        %860 = vset.pattern.permute.xlu0 6
        %861 = vperm.xlu0 %860, %v776
        %v862 = vpop.permute.xlu0 %861
        %v864 = vmul.f32 %v855, %v858
        %v865 = vmul.f32 %v855, %v862
        %v866 = vadd.f32 %v850, %v864
        %v867 = vadd.f32 %v851, %v865
        %868 = vset.pattern.permute.xlu0 6
        %869 = vperm.xlu0 %868, %v781
        %v870 = vpop.permute.xlu0 %869
        %872 = vset.pattern.permute.xlu0 6
        %873 = vperm.xlu0 %872, %v784
        %v874 = vpop.permute.xlu0 %873
        %v876 = vmul.f32 %v866, %v870
        %v877 = vmul.f32 %v867, %v874
        %v878 = vsel %vm497, %v876, 0.0
        %v879 = vsel %vm497, %v877, 0.0
        %v880 = vadd.f32 %v878, %v879
        %v881 = vrot.slane %v880, 4
        %v882 = vadd.f32 %v880, %v881
        %v883 = vrot.slane %v882, 2
        %v884 = vadd.f32 %v882, %v883
        %v885 = vrot.slane %v884, 1
        %v886 = vadd.f32 %v884, %v885
        %v887 = vlaneseq
        %v888 = vshrl.u32 %v887, 7
        %v889 = vsub.s32 5, %v888
        %v890 = vrot.slane %v717, %v889
        %v891 = vmul.f32 %v890, %v695
        %v892 = vmul.f32 %v890, %v696
        %v893 = vmul.f32 %v891, 1.442695
        %v894 = vpow.pop %v893
        %v895 = vmul.f32 %v892, 1.442695
        %v896 = vpow.pop %v895
        %v897 = vmul.f32 %v894, %v866
        %v898 = vmul.f32 %v896, %v867
        %v899 = vlaneseq
        %v900 = vshrl.u32 %v899, 7
        %v901 = vsub.s32 5, %v900
        %v902 = vrot.slane %v718, %v901
        %903 = vset.pattern.permute.xlu0 5
        %904 = vperm.xlu0 %903, %v773
        %v905 = vpop.permute.xlu0 %904
        %907 = vset.pattern.permute.xlu0 5
        %908 = vperm.xlu0 %907, %v776
        %v909 = vpop.permute.xlu0 %908
        %v911 = vmul.f32 %v902, %v905
        %v912 = vmul.f32 %v902, %v909
        %v913 = vadd.f32 %v897, %v911
        %v914 = vadd.f32 %v898, %v912
        %915 = vset.pattern.permute.xlu0 5
        %916 = vperm.xlu0 %915, %v781
        %v917 = vpop.permute.xlu0 %916
        %919 = vset.pattern.permute.xlu0 5
        %920 = vperm.xlu0 %919, %v784
        %v921 = vpop.permute.xlu0 %920
        %v923 = vmul.f32 %v913, %v917
        %v924 = vmul.f32 %v914, %v921
        %v925 = vsel %vm497, %v923, 0.0
        %v926 = vsel %vm497, %v924, 0.0
        %v927 = vadd.f32 %v925, %v926
        %v928 = vrot.slane %v927, 4
        %v929 = vadd.f32 %v927, %v928
        %v930 = vrot.slane %v929, 2
        %v931 = vadd.f32 %v929, %v930
        %v932 = vrot.slane %v931, 1
        %v933 = vadd.f32 %v931, %v932
        %v934 = vlaneseq
        %v935 = vshrl.u32 %v934, 7
        %v936 = vsub.s32 4, %v935
        %v937 = vrot.slane %v717, %v936
        %v938 = vmul.f32 %v937, %v695
        %v939 = vmul.f32 %v937, %v696
        %v940 = vmul.f32 %v938, 1.442695
        %v941 = vpow.pop %v940
        %v942 = vmul.f32 %v939, 1.442695
        %v943 = vpow.pop %v942
        %v944 = vmul.f32 %v941, %v913
        %v945 = vmul.f32 %v943, %v914
        %v946 = vlaneseq
        %v947 = vshrl.u32 %v946, 7
        %v948 = vsub.s32 4, %v947
        %v949 = vrot.slane %v718, %v948
        %950 = vset.pattern.permute.xlu0 4
        %951 = vperm.xlu0 %950, %v773
        %v952 = vpop.permute.xlu0 %951
        %954 = vset.pattern.permute.xlu0 4
        %955 = vperm.xlu0 %954, %v776
        %v956 = vpop.permute.xlu0 %955
        %v958 = vmul.f32 %v949, %v952
        %v959 = vmul.f32 %v949, %v956
        %v960 = vadd.f32 %v944, %v958
        %v961 = vadd.f32 %v945, %v959
        %962 = vset.pattern.permute.xlu0 4
        %963 = vperm.xlu0 %962, %v781
        %v964 = vpop.permute.xlu0 %963
        %966 = vset.pattern.permute.xlu0 4
        %967 = vperm.xlu0 %966, %v784
        %v968 = vpop.permute.xlu0 %967
        %v970 = vmul.f32 %v960, %v964
        %v971 = vmul.f32 %v961, %v968
        %v972 = vsel %vm497, %v970, 0.0
        %v973 = vsel %vm497, %v971, 0.0
        %v974 = vadd.f32 %v972, %v973
        %v975 = vrot.slane %v974, 4
        %v976 = vadd.f32 %v974, %v975
        %v977 = vrot.slane %v976, 2
        %v978 = vadd.f32 %v976, %v977
        %v979 = vrot.slane %v978, 1
        %v980 = vadd.f32 %v978, %v979
        %v981 = vlaneseq
        %v982 = vshrl.u32 %v981, 7
        %v983 = vsub.s32 3, %v982
        %v984 = vrot.slane %v717, %v983
        %v985 = vmul.f32 %v984, %v695
        %v986 = vmul.f32 %v984, %v696
        %v987 = vmul.f32 %v985, 1.442695
        %v988 = vpow.pop %v987
        %v989 = vmul.f32 %v986, 1.442695
        %v990 = vpow.pop %v989
        %v991 = vmul.f32 %v988, %v960
        %v992 = vmul.f32 %v990, %v961
        %v993 = vlaneseq
        %v994 = vshrl.u32 %v993, 7
        %v995 = vsub.s32 3, %v994
        %v996 = vrot.slane %v718, %v995
        %997 = vset.pattern.permute.xlu0 3
        %998 = vperm.xlu0 %997, %v773
        %v999 = vpop.permute.xlu0 %998
        %1001 = vset.pattern.permute.xlu0 3
        %1002 = vperm.xlu0 %1001, %v776
        %v1003 = vpop.permute.xlu0 %1002
        %v1005 = vmul.f32 %v996, %v999
        %v1006 = vmul.f32 %v996, %v1003
        %v1007 = vadd.f32 %v991, %v1005
        %v1008 = vadd.f32 %v992, %v1006
        %1009 = vset.pattern.permute.xlu0 3
        %1010 = vperm.xlu0 %1009, %v781
        %v1011 = vpop.permute.xlu0 %1010
        %1013 = vset.pattern.permute.xlu0 3
        %1014 = vperm.xlu0 %1013, %v784
        %v1015 = vpop.permute.xlu0 %1014
        %v1017 = vmul.f32 %v1007, %v1011
        %v1018 = vmul.f32 %v1008, %v1015
        %v1019 = vsel %vm497, %v1017, 0.0
        %v1020 = vsel %vm497, %v1018, 0.0
        %v1021 = vadd.f32 %v1019, %v1020
        %v1022 = vrot.slane %v1021, 4
        %v1023 = vadd.f32 %v1021, %v1022
        %v1024 = vrot.slane %v1023, 2
        %v1025 = vadd.f32 %v1023, %v1024
        %v1026 = vrot.slane %v1025, 1
        %v1027 = vadd.f32 %v1025, %v1026
        %v1028 = vlaneseq
        %v1029 = vshrl.u32 %v1028, 7
        %v1030 = vsub.s32 2, %v1029
        %v1031 = vrot.slane %v717, %v1030
        %v1032 = vmul.f32 %v1031, %v695
        %v1033 = vmul.f32 %v1031, %v696
        %v1034 = vmul.f32 %v1032, 1.442695
        %v1035 = vpow.pop %v1034
        %v1036 = vmul.f32 %v1033, 1.442695
        %v1037 = vpow.pop %v1036
        %v1038 = vmul.f32 %v1035, %v1007
        %v1039 = vmul.f32 %v1037, %v1008
        %v1040 = vlaneseq
        %v1041 = vshrl.u32 %v1040, 7
        %v1042 = vsub.s32 2, %v1041
        %v1043 = vrot.slane %v718, %v1042
        %1044 = vset.pattern.permute.xlu0 2
        %1045 = vperm.xlu0 %1044, %v773
        %v1046 = vpop.permute.xlu0 %1045
        %1048 = vset.pattern.permute.xlu0 2
        %1049 = vperm.xlu0 %1048, %v776
        %v1050 = vpop.permute.xlu0 %1049
        %v1052 = vmul.f32 %v1043, %v1046
        %v1053 = vmul.f32 %v1043, %v1050
        %v1054 = vadd.f32 %v1038, %v1052
        %v1055 = vadd.f32 %v1039, %v1053
        %1056 = vset.pattern.permute.xlu0 2
        %1057 = vperm.xlu0 %1056, %v781
        %v1058 = vpop.permute.xlu0 %1057
        %1060 = vset.pattern.permute.xlu0 2
        %1061 = vperm.xlu0 %1060, %v784
        %v1062 = vpop.permute.xlu0 %1061
        %v1064 = vmul.f32 %v1054, %v1058
        %v1065 = vmul.f32 %v1055, %v1062
        %v1066 = vsel %vm497, %v1064, 0.0
        %v1067 = vsel %vm497, %v1065, 0.0
        %v1068 = vadd.f32 %v1066, %v1067
        %v1069 = vrot.slane %v1068, 4
        %v1070 = vadd.f32 %v1068, %v1069
        %v1071 = vrot.slane %v1070, 2
        %v1072 = vadd.f32 %v1070, %v1071
        %v1073 = vrot.slane %v1072, 1
        %v1074 = vadd.f32 %v1072, %v1073
        %v1075 = vlaneseq
        %v1076 = vshrl.u32 %v1075, 7
        %v1077 = vsub.s32 1, %v1076
        %v1078 = vrot.slane %v717, %v1077
        %v1079 = vmul.f32 %v1078, %v695
        %v1080 = vmul.f32 %v1078, %v696
        %v1081 = vmul.f32 %v1079, 1.442695
        %v1082 = vpow.pop %v1081
        %v1083 = vmul.f32 %v1080, 1.442695
        %v1084 = vpow.pop %v1083
        %v1085 = vmul.f32 %v1082, %v1054
        %v1086 = vmul.f32 %v1084, %v1055
        %v1087 = vlaneseq
        %v1088 = vshrl.u32 %v1087, 7
        %v1089 = vsub.s32 1, %v1088
        %v1090 = vrot.slane %v718, %v1089
        %1091 = vset.pattern.permute.xlu0 1
        %1092 = vperm.xlu0 %1091, %v773
        %v1093 = vpop.permute.xlu0 %1092
        %1095 = vset.pattern.permute.xlu0 1
        %1096 = vperm.xlu0 %1095, %v776
        %v1097 = vpop.permute.xlu0 %1096
        %v1099 = vmul.f32 %v1090, %v1093
        %v1100 = vmul.f32 %v1090, %v1097
        %v1101 = vadd.f32 %v1085, %v1099
        %v1102 = vadd.f32 %v1086, %v1100
        %1103 = vset.pattern.permute.xlu0 1
        %1104 = vperm.xlu0 %1103, %v781
        %v1105 = vpop.permute.xlu0 %1104
        %1107 = vset.pattern.permute.xlu0 1
        %1108 = vperm.xlu0 %1107, %v784
        %v1109 = vpop.permute.xlu0 %1108
        %v1111 = vmul.f32 %v1101, %v1105
        %v1112 = vmul.f32 %v1102, %v1109
        %v1113 = vsel %vm497, %v1111, 0.0
        %v1114 = vsel %vm497, %v1112, 0.0
        %v1115 = vadd.f32 %v1113, %v1114
        %v1116 = vrot.slane %v1115, 4
        %v1117 = vadd.f32 %v1115, %v1116
        %v1118 = vrot.slane %v1117, 2
        %v1119 = vadd.f32 %v1117, %v1118
        %v1120 = vrot.slane %v1119, 1
        %v1121 = vadd.f32 %v1119, %v1120
        %v1122 = vlaneseq
        %v1123 = vshrl.u32 %v1122, 7
        %v1124 = vsub.s32 0, %v1123
        %v1125 = vrot.slane %v717, %v1124
        %v1126 = vmul.f32 %v1125, %v695
        %v1127 = vmul.f32 %v1125, %v696
        %v1128 = vmul.f32 %v1126, 1.442695
        %v1129 = vpow.pop %v1128
        %v1130 = vmul.f32 %v1127, 1.442695
        %v1131 = vpow.pop %v1130
        %v1132 = vmul.f32 %v1129, %v1101
        %v1133 = vmul.f32 %v1131, %v1102
        %v1134 = vlaneseq
        %v1135 = vshrl.u32 %v1134, 7
        %v1136 = vsub.s32 0, %v1135
        %v1137 = vrot.slane %v718, %v1136
        %1138 = vset.pattern.permute.xlu0 0
        %1139 = vperm.xlu0 %1138, %v773
        %v1140 = vpop.permute.xlu0 %1139
        %1142 = vset.pattern.permute.xlu0 0
        %1143 = vperm.xlu0 %1142, %v776
        %v1144 = vpop.permute.xlu0 %1143
        %v1146 = vmul.f32 %v1137, %v1140
        %v1147 = vmul.f32 %v1137, %v1144
        %v1148 = vadd.f32 %v1132, %v1146
        %v1149 = vadd.f32 %v1133, %v1147
        %1150 = vset.pattern.permute.xlu0 0
        %1151 = vperm.xlu0 %1150, %v781
        %v1152 = vpop.permute.xlu0 %1151
        %1154 = vset.pattern.permute.xlu0 0
        %1155 = vperm.xlu0 %1154, %v784
        %v1156 = vpop.permute.xlu0 %1155
        %v1158 = vmul.f32 %v1148, %v1152
        %v1159 = vmul.f32 %v1149, %v1156
        %v1160 = vsel %vm497, %v1158, 0.0
        %v1161 = vsel %vm497, %v1159, 0.0
        %v1162 = vadd.f32 %v1160, %v1161
        %v1163 = vrot.slane %v1162, 4
        %v1164 = vadd.f32 %v1162, %v1163
        %v1165 = vrot.slane %v1164, 2
        %v1166 = vadd.f32 %v1164, %v1165
        %v1167 = vrot.slane %v1166, 1
        %v1168 = vadd.f32 %v1166, %v1167
        %1169 = vst.msk [vmem:[#allocation2] sm:$0xff] %vm497, %v1148
        %1170 = vst.msk [vmem:[#allocation2 + $0x8] sm:$0xff] %vm497, %v1149
        %vm1171 = vcmask 1040384
        %v1172 = vsel %vm1171, %v1168, %v1121
        %vm1173 = vcmask 1041408
        %v1174 = vsel %vm1173, %v1172, %v1074
        %vm1175 = vcmask 1042432
        %v1176 = vsel %vm1175, %v1174, %v1027
        %vm1177 = vcmask 1043456
        %v1178 = vsel %vm1177, %v1176, %v980
        %vm1179 = vcmask 1044480
        %v1180 = vsel %vm1179, %v1178, %v933
        %vm1181 = vcmask 1045504
        %v1182 = vsel %vm1181, %v1180, %v886
        %vm1183 = vcmask 1046528
        %v1184 = vsel %vm1183, %v1182, %v839
        %v1186 = vlaneseq
        %v1187 = vshrl.u32 %v1186, 7
        %v1188 = vsub.s32 0, %v1187
        %v1189 = vrot.slane %v697, %v1188
        %v1191 = vmul.f32 %v715, %v1189
        %v1192 = vadd.f32 %v1184, %v1191
        %v1193 = vpack.c.bf16 %v1192, %v1192
        %s1194 = smul.addr %s710, 4
        %s1195 = scalar_lea.vmem %s419, %s1194
        %vm1196 = vcmask 519168
        %1197 = vst.msk [vmem:[%s1195] sm:$0xf] %vm1196, %v1193
      $region53: #{vss_layer.13} parent=43 // loop_footer
        %s707 = sadd.s32 1, %s703
      $region54: #{vss_layer.13} parent=43 // loop_footer_branch
        %702 = sbr.rel target = $region50
      $region55: #{vss_layer.13} parent=43 // loop_exit
        _
      %s1198 = ssub.s32 0, %s24
      %s1199 = smul.u32 8, %s1198
      %p1200 = scmp.lt.s32.totalorder %s22, 1
      %s1201 = scalar_select %p1200, %s22, 1
      %p1202 = scmp.lt.s32.totalorder %s23, 1
      %s1203 = scalar_select %p1202, %s23, 1
      %p1204 = scmp.lt.s32.totalorder %s1199, 7
      %s1205 = scalar_select %p1204, %s1199, 7
      %s1206 = smul.addr %s1203, 8
      %s1207 = sadd.s32 %s1205, %s1206
      %s1208 = smul.addr %s1201, 16
      %s1209 = sadd.s32 %s1207, %s1208
      %s1210 = smul.addr %s1209, 4
      %s1211 = scalar_lea.vmem %s6, %s1210
      // Predicated region
      $region56: #{vss_layer.13} parent=43 // pred_check
        %p1212 = pneg %p222
      $region57: #{vss_layer.13} parent=43 // pred_check_branch
        %1214 = sbr.rel (%p1212) target = $region59
      $region58: #{vss_layer.13} parent=43 // pred_region
        %s1215 = ssub.s32 0, %s24
        %s1216 = smul.u32 8, %s1215
      $region59: #{vss_layer.13} parent=43 // pred_fallthru
        _
    $region44: #{vss_layer.13} parent=5 // pred_fallthru
      _
    %p1217 = scmp.le.s32.totalorder 2, %s12
    // Predicated region
    $region60: #{vss_layer.13} parent=5 // pred_check
      %p1218 = pneg %p1217
    $region61: #{vss_layer.13} parent=5 // pred_check_branch
      %1220 = sbr.rel (%p1218) target = $region63
    $region62: #{vss_layer.13} parent=5 // pred_region
      %s1221 = ssub.s32 %s12, 2
      // Predicated region
      $region64: #{vss_layer.13} parent=62 // pred_check
        %p1222 = pneg %p228
      $region65: #{vss_layer.13} parent=62 // pred_check_branch
        %1224 = sbr.rel (%p1222) target = $region67
      $region66: #{vss_layer.13} parent=62 // pred_region
        %s1225 = ssub.s32 0, %s27
        %s1226 = smul.u32 8, %s1225
        %p1227 = scmp.lt.s32.totalorder %s25, 1
        %s1228 = scalar_select %p1227, %s25, 1
        %p1229 = scmp.lt.s32.totalorder %s26, 1
        %s1230 = scalar_select %p1229, %s26, 1
        %p1231 = scmp.lt.s32.totalorder %s1226, 7
        %s1232 = scalar_select %p1231, %s1226, 7
        %s1233 = smul.addr %s1230, 8
        %s1234 = sadd.s32 %s1232, %s1233
        %s1235 = smul.addr %s1228, 16
        %s1236 = sadd.s32 %s1234, %s1235
        %s1237 = smul.addr %s1236, 4
        %s1238 = scalar_lea.vmem %s6, %s1237
      $region67: #{vss_layer.13} parent=62 // pred_fallthru
        _
    $region63: #{vss_layer.13} parent=5 // pred_fallthru
      _
  $region6: #{vss_layer.13} parent=0 // loop_footer
    %s16 = sadd.s32 1, %s12
  $region7: #{vss_layer.13} parent=0 // loop_footer_branch
    %11 = sbr.rel target = $region3
  $region8: #{vss_layer.13} parent=0 // loop_exit
    _

// kernel: vss_layer.14
$region0: #{vss_layer.14}
  #allocation0 [shape = 'u32[]', space=smem, size = 0x4, offset = 0x4, fixed_abs, tag = 'smem constant byte address 0x4 - core index']
  #allocation1 [shape = 'u32[144,128]{1,0:T(1,128)}', space=vmem, size = 0x12000, scoped, tag = 'internal scratch']
  %s0 = inlined_call_operand.vmem [shape: bf16[128,64], index: 0, kind: input, shape index: {}]
  %s1 = inlined_call_operand.vmem [shape: bf16[128,64], index: 1, kind: input, shape index: {}]
  %s2 = inlined_call_operand.vmem [shape: f32[128,32], index: 2, kind: input, shape index: {}, may-alias: {2,6}]
  %s3 = inlined_call_operand.vmem [shape: f32[1,64], index: 3, kind: input, shape index: {}]
  %s4 = inlined_call_operand.vmem [shape: f32[1,64], index: 4, kind: input, shape index: {}]
  %s5 = inlined_call_operand.vmem [shape: bf16[64,32], index: 5, kind: input, shape index: {}]
  %s6 = inlined_call_operand.vmem [shape: f32[128,32], index: 6, kind: output, shape index: {}, may-alias: {2,6}]
  %s7 = sld [smem:[#allocation0]]
  $region34: #{vss_layer.14} parent=0
    _
  %s9 = ssub.s32 1, %s7
  %s10 = scalar_select 0, %s9, %s7
  // Predicated region
  $region2: #{vss_layer.14} parent=0 // pred_check
    _
  $region3: #{vss_layer.14} parent=0 // pred_check_branch
    %12 = sbr.rel (0) target = $region5
  $region4: #{vss_layer.14} parent=0 // pred_region
    _
  $region5: #{vss_layer.14} parent=0 // pred_fallthru
    _
  // Predicated region
  $region6: #{vss_layer.14} parent=0 // pred_check
    _
  $region7: #{vss_layer.14} parent=0 // pred_check_branch
    %14 = sbr.rel (0) target = $region9
  $region8: #{vss_layer.14} parent=0 // pred_region
    _
  $region9: #{vss_layer.14} parent=0 // pred_fallthru
    _
  // Predicated region
  $region10: #{vss_layer.14} parent=0 // pred_check
    _
  $region11: #{vss_layer.14} parent=0 // pred_check_branch
    %16 = sbr.rel (0) target = $region13
  $region12: #{vss_layer.14} parent=0 // pred_region
    _
  $region13: #{vss_layer.14} parent=0 // pred_fallthru
    _
  // Predicated region
  $region14: #{vss_layer.14} parent=0 // pred_check
    _
  $region15: #{vss_layer.14} parent=0 // pred_check_branch
    %18 = sbr.rel (0) target = $region17
  $region16: #{vss_layer.14} parent=0 // pred_region
    _
  $region17: #{vss_layer.14} parent=0 // pred_fallthru
    _
  // Predicated region
  $region18: #{vss_layer.14} parent=0 // pred_check
    _
  $region19: #{vss_layer.14} parent=0 // pred_check_branch
    %20 = sbr.rel (0) target = $region21
  $region20: #{vss_layer.14} parent=0 // pred_region
    _
  $region21: #{vss_layer.14} parent=0 // pred_fallthru
    _
  // Predicated region
  $region22: #{vss_layer.14} parent=0 // pred_check
    _
  $region23: #{vss_layer.14} parent=0 // pred_check_branch
    %22 = sbr.rel (0) target = $region25
  $region24: #{vss_layer.14} parent=0 // pred_region
    _
  $region25: #{vss_layer.14} parent=0 // pred_fallthru
    _
  %v24 = vld [vmem:[%s0] sm:$0xf]
  %v25 = vld [vmem:[%s0 + $0x4] sm:$0xf]
  %v26 = vld [vmem:[%s0 + $0x8] sm:$0xf]
  %v27 = vld [vmem:[%s0 + $0xc] sm:$0xf]
  %v28 = vld [vmem:[%s0 + $0x10] sm:$0xf]
  %v29 = vld [vmem:[%s0 + $0x14] sm:$0xf]
  %v30 = vld [vmem:[%s0 + $0x18] sm:$0xf]
  %v31 = vld [vmem:[%s0 + $0x1c] sm:$0xf]
  %v32 = vld [vmem:[%s0 + $0x20] sm:$0xf]
  %v33 = vld [vmem:[%s0 + $0x24] sm:$0xf]
  %v34 = vld [vmem:[%s0 + $0x28] sm:$0xf]
  %v35 = vld [vmem:[%s0 + $0x2c] sm:$0xf]
  %v36 = vld [vmem:[%s0 + $0x30] sm:$0xf]
  %v37 = vld [vmem:[%s0 + $0x34] sm:$0xf]
  %v38 = vld [vmem:[%s0 + $0x38] sm:$0xf]
  %v39 = vld [vmem:[%s0 + $0x3c] sm:$0xf]
  %v40 = vunpack.c.l.bf16 %v24
  %v41 = vunpack.c.l.bf16 %v25
  %v42 = vunpack.c.l.bf16 %v26
  %v43 = vunpack.c.l.bf16 %v27
  %v44 = vunpack.c.l.bf16 %v28
  %v45 = vunpack.c.l.bf16 %v29
  %v46 = vunpack.c.l.bf16 %v30
  %v47 = vunpack.c.l.bf16 %v31
  %v48 = vunpack.c.l.bf16 %v32
  %v49 = vunpack.c.l.bf16 %v33
  %v50 = vunpack.c.l.bf16 %v34
  %v51 = vunpack.c.l.bf16 %v35
  %v52 = vunpack.c.l.bf16 %v36
  %v53 = vunpack.c.l.bf16 %v37
  %v54 = vunpack.c.l.bf16 %v38
  %v55 = vunpack.c.l.bf16 %v39
  %vm56 = vcmask 523264
  %v57 = vsel %vm56, %v40, 0.0
  %58 = vadd.xlane.f32.xlu0 %v57
  %v59 = vpop.xlane.xlu0 %58
  %v60 = vsel %vm56, %v41, 0.0
  %61 = vadd.xlane.f32.xlu0 %v60
  %v62 = vpop.xlane.xlu0 %61
  %v63 = vsel %vm56, %v42, 0.0
  %64 = vadd.xlane.f32.xlu0 %v63
  %v65 = vpop.xlane.xlu0 %64
  %v66 = vsel %vm56, %v43, 0.0
  %67 = vadd.xlane.f32.xlu0 %v66
  %v68 = vpop.xlane.xlu0 %67
  %v69 = vsel %vm56, %v44, 0.0
  %70 = vadd.xlane.f32.xlu0 %v69
  %v71 = vpop.xlane.xlu0 %70
  %v72 = vsel %vm56, %v45, 0.0
  %73 = vadd.xlane.f32.xlu0 %v72
  %v74 = vpop.xlane.xlu0 %73
  %v75 = vsel %vm56, %v46, 0.0
  %76 = vadd.xlane.f32.xlu0 %v75
  %v77 = vpop.xlane.xlu0 %76
  %v78 = vsel %vm56, %v47, 0.0
  %79 = vadd.xlane.f32.xlu0 %v78
  %v80 = vpop.xlane.xlu0 %79
  %v81 = vsel %vm56, %v48, 0.0
  %82 = vadd.xlane.f32.xlu0 %v81
  %v83 = vpop.xlane.xlu0 %82
  %v84 = vsel %vm56, %v49, 0.0
  %85 = vadd.xlane.f32.xlu0 %v84
  %v86 = vpop.xlane.xlu0 %85
  %v87 = vsel %vm56, %v50, 0.0
  %88 = vadd.xlane.f32.xlu0 %v87
  %v89 = vpop.xlane.xlu0 %88
  %v90 = vsel %vm56, %v51, 0.0
  %91 = vadd.xlane.f32.xlu0 %v90
  %v92 = vpop.xlane.xlu0 %91
  %v93 = vsel %vm56, %v52, 0.0
  %94 = vadd.xlane.f32.xlu0 %v93
  %v95 = vpop.xlane.xlu0 %94
  %v96 = vsel %vm56, %v53, 0.0
  %97 = vadd.xlane.f32.xlu0 %v96
  %v98 = vpop.xlane.xlu0 %97
  %v99 = vsel %vm56, %v54, 0.0
  %100 = vadd.xlane.f32.xlu0 %v99
  %v101 = vpop.xlane.xlu0 %100
  %v102 = vsel %vm56, %v55, 0.0
  %103 = vadd.xlane.f32.xlu0 %v102
  %v104 = vpop.xlane.xlu0 %103
  %v105 = vrcp.pop 64.0
  %v106 = vmul.f32 %v59, %v105
  %v107 = vmul.f32 %v62, %v105
  %v108 = vmul.f32 %v65, %v105
  %v109 = vmul.f32 %v68, %v105
  %v110 = vmul.f32 %v71, %v105
  %v111 = vmul.f32 %v74, %v105
  %v112 = vmul.f32 %v77, %v105
  %v113 = vmul.f32 %v80, %v105
  %v114 = vmul.f32 %v83, %v105
  %v115 = vmul.f32 %v86, %v105
  %v116 = vmul.f32 %v89, %v105
  %v117 = vmul.f32 %v92, %v105
  %v118 = vmul.f32 %v95, %v105
  %v119 = vmul.f32 %v98, %v105
  %v120 = vmul.f32 %v101, %v105
  %v121 = vmul.f32 %v104, %v105
  %v122 = vsub.f32 %v40, %v106
  %v123 = vsub.f32 %v41, %v107
  %v124 = vsub.f32 %v42, %v108
  %v125 = vsub.f32 %v43, %v109
  %v126 = vsub.f32 %v44, %v110
  %v127 = vsub.f32 %v45, %v111
  %v128 = vsub.f32 %v46, %v112
  %v129 = vsub.f32 %v47, %v113
  %v130 = vsub.f32 %v48, %v114
  %v131 = vsub.f32 %v49, %v115
  %v132 = vsub.f32 %v50, %v116
  %v133 = vsub.f32 %v51, %v117
  %v134 = vsub.f32 %v52, %v118
  %v135 = vsub.f32 %v53, %v119
  %v136 = vsub.f32 %v54, %v120
  %v137 = vsub.f32 %v55, %v121
  %v138 = vmul.f32 %v122, %v122
  %v139 = vmul.f32 %v123, %v123
  %v140 = vmul.f32 %v124, %v124
  %v141 = vmul.f32 %v125, %v125
  %v142 = vmul.f32 %v126, %v126
  %v143 = vmul.f32 %v127, %v127
  %v144 = vmul.f32 %v128, %v128
  %v145 = vmul.f32 %v129, %v129
  %v146 = vmul.f32 %v130, %v130
  %v147 = vmul.f32 %v131, %v131
  %v148 = vmul.f32 %v132, %v132
  %v149 = vmul.f32 %v133, %v133
  %v150 = vmul.f32 %v134, %v134
  %v151 = vmul.f32 %v135, %v135
  %v152 = vmul.f32 %v136, %v136
  %v153 = vmul.f32 %v137, %v137
  %v154 = vsel %vm56, %v138, 0.0
  %155 = vadd.xlane.f32.xlu0 %v154
  %v156 = vpop.xlane.xlu0 %155
  %v157 = vsel %vm56, %v139, 0.0
  %158 = vadd.xlane.f32.xlu0 %v157
  %v159 = vpop.xlane.xlu0 %158
  %v160 = vsel %vm56, %v140, 0.0
  %161 = vadd.xlane.f32.xlu0 %v160
  %v162 = vpop.xlane.xlu0 %161
  %v163 = vsel %vm56, %v141, 0.0
  %164 = vadd.xlane.f32.xlu0 %v163
  %v165 = vpop.xlane.xlu0 %164
  %v166 = vsel %vm56, %v142, 0.0
  %167 = vadd.xlane.f32.xlu0 %v166
  %v168 = vpop.xlane.xlu0 %167
  %v169 = vsel %vm56, %v143, 0.0
  %170 = vadd.xlane.f32.xlu0 %v169
  %v171 = vpop.xlane.xlu0 %170
  %v172 = vsel %vm56, %v144, 0.0
  %173 = vadd.xlane.f32.xlu0 %v172
  %v174 = vpop.xlane.xlu0 %173
  %v175 = vsel %vm56, %v145, 0.0
  %176 = vadd.xlane.f32.xlu0 %v175
  %v177 = vpop.xlane.xlu0 %176
  %v178 = vsel %vm56, %v146, 0.0
  %179 = vadd.xlane.f32.xlu0 %v178
  %v180 = vpop.xlane.xlu0 %179
  %v181 = vsel %vm56, %v147, 0.0
  %182 = vadd.xlane.f32.xlu0 %v181
  %v183 = vpop.xlane.xlu0 %182
  %v184 = vsel %vm56, %v148, 0.0
  %185 = vadd.xlane.f32.xlu0 %v184
  %v186 = vpop.xlane.xlu0 %185
  %v187 = vsel %vm56, %v149, 0.0
  %188 = vadd.xlane.f32.xlu0 %v187
  %v189 = vpop.xlane.xlu0 %188
  %v190 = vsel %vm56, %v150, 0.0
  %191 = vadd.xlane.f32.xlu0 %v190
  %v192 = vpop.xlane.xlu0 %191
  %v193 = vsel %vm56, %v151, 0.0
  %194 = vadd.xlane.f32.xlu0 %v193
  %v195 = vpop.xlane.xlu0 %194
  %v196 = vsel %vm56, %v152, 0.0
  %197 = vadd.xlane.f32.xlu0 %v196
  %v198 = vpop.xlane.xlu0 %197
  %v199 = vsel %vm56, %v153, 0.0
  %200 = vadd.xlane.f32.xlu0 %v199
  %v201 = vpop.xlane.xlu0 %200
  %v202 = vmul.f32 %v156, %v105
  %v203 = vmul.f32 %v159, %v105
  %v204 = vmul.f32 %v162, %v105
  %v205 = vmul.f32 %v165, %v105
  %v206 = vmul.f32 %v168, %v105
  %v207 = vmul.f32 %v171, %v105
  %v208 = vmul.f32 %v174, %v105
  %v209 = vmul.f32 %v177, %v105
  %v210 = vmul.f32 %v180, %v105
  %v211 = vmul.f32 %v183, %v105
  %v212 = vmul.f32 %v186, %v105
  %v213 = vmul.f32 %v189, %v105
  %v214 = vmul.f32 %v192, %v105
  %v215 = vmul.f32 %v195, %v105
  %v216 = vmul.f32 %v198, %v105
  %v217 = vmul.f32 %v201, %v105
  %v218 = vadd.f32 %v202, 1e-05
  %v219 = vadd.f32 %v203, 1e-05
  %v220 = vadd.f32 %v204, 1e-05
  %v221 = vadd.f32 %v205, 1e-05
  %v222 = vadd.f32 %v206, 1e-05
  %v223 = vadd.f32 %v207, 1e-05
  %v224 = vadd.f32 %v208, 1e-05
  %v225 = vadd.f32 %v209, 1e-05
  %v226 = vadd.f32 %v210, 1e-05
  %v227 = vadd.f32 %v211, 1e-05
  %v228 = vadd.f32 %v212, 1e-05
  %v229 = vadd.f32 %v213, 1e-05
  %v230 = vadd.f32 %v214, 1e-05
  %v231 = vadd.f32 %v215, 1e-05
  %v232 = vadd.f32 %v216, 1e-05
  %v233 = vadd.f32 %v217, 1e-05
  %v234 = vrsqrt.pop %v218
  %v235 = vrsqrt.pop %v219
  %v236 = vrsqrt.pop %v220
  %v237 = vrsqrt.pop %v221
  %v238 = vrsqrt.pop %v222
  %v239 = vrsqrt.pop %v223
  %v240 = vrsqrt.pop %v224
  %v241 = vrsqrt.pop %v225
  %v242 = vrsqrt.pop %v226
  %v243 = vrsqrt.pop %v227
  %v244 = vrsqrt.pop %v228
  %v245 = vrsqrt.pop %v229
  %v246 = vrsqrt.pop %v230
  %v247 = vrsqrt.pop %v231
  %v248 = vrsqrt.pop %v232
  %v249 = vrsqrt.pop %v233
  %v250 = vmul.f32 %v122, %v234
  %v251 = vmul.f32 %v123, %v235
  %v252 = vmul.f32 %v124, %v236
  %v253 = vmul.f32 %v125, %v237
  %v254 = vmul.f32 %v126, %v238
  %v255 = vmul.f32 %v127, %v239
  %v256 = vmul.f32 %v128, %v240
  %v257 = vmul.f32 %v129, %v241
  %v258 = vmul.f32 %v130, %v242
  %v259 = vmul.f32 %v131, %v243
  %v260 = vmul.f32 %v132, %v244
  %v261 = vmul.f32 %v133, %v245
  %v262 = vmul.f32 %v134, %v246
  %v263 = vmul.f32 %v135, %v247
  %v264 = vmul.f32 %v136, %v248
  %v265 = vmul.f32 %v137, %v249
  %v266 = vld [vmem:[%s3] sm:$0x1]
  %v268 = vlaneseq
  %v269 = vshrl.u32 %v268, 7
  %v270 = vsub.s32 0, %v269
  %v271 = vrot.slane %v266, %v270
  %v273 = vmul.f32 %v250, %v271
  %v274 = vmul.f32 %v251, %v271
  %v275 = vmul.f32 %v252, %v271
  %v276 = vmul.f32 %v253, %v271
  %v277 = vmul.f32 %v254, %v271
  %v278 = vmul.f32 %v255, %v271
  %v279 = vmul.f32 %v256, %v271
  %v280 = vmul.f32 %v257, %v271
  %v281 = vmul.f32 %v258, %v271
  %v282 = vmul.f32 %v259, %v271
  %v283 = vmul.f32 %v260, %v271
  %v284 = vmul.f32 %v261, %v271
  %v285 = vmul.f32 %v262, %v271
  %v286 = vmul.f32 %v263, %v271
  %v287 = vmul.f32 %v264, %v271
  %v288 = vmul.f32 %v265, %v271
  %v289 = vld [vmem:[%s4] sm:$0x1]
  %v291 = vlaneseq
  %v292 = vshrl.u32 %v291, 7
  %v293 = vsub.s32 0, %v292
  %v294 = vrot.slane %v289, %v293
  %v296 = vadd.f32 %v273, %v294
  %v297 = vadd.f32 %v274, %v294
  %v298 = vadd.f32 %v275, %v294
  %v299 = vadd.f32 %v276, %v294
  %v300 = vadd.f32 %v277, %v294
  %v301 = vadd.f32 %v278, %v294
  %v302 = vadd.f32 %v279, %v294
  %v303 = vadd.f32 %v280, %v294
  %v304 = vadd.f32 %v281, %v294
  %v305 = vadd.f32 %v282, %v294
  %v306 = vadd.f32 %v283, %v294
  %v307 = vadd.f32 %v284, %v294
  %v308 = vadd.f32 %v285, %v294
  %v309 = vadd.f32 %v286, %v294
  %v310 = vadd.f32 %v287, %v294
  %v311 = vadd.f32 %v288, %v294
  %v312 = vld [vmem:[%s1] sm:$0xf]
  %v313 = vld [vmem:[%s1 + $0x4] sm:$0xf]
  %v314 = vld [vmem:[%s1 + $0x8] sm:$0xf]
  %v315 = vld [vmem:[%s1 + $0xc] sm:$0xf]
  %v316 = vld [vmem:[%s1 + $0x10] sm:$0xf]
  %v317 = vld [vmem:[%s1 + $0x14] sm:$0xf]
  %v318 = vld [vmem:[%s1 + $0x18] sm:$0xf]
  %v319 = vld [vmem:[%s1 + $0x1c] sm:$0xf]
  %v320 = vld [vmem:[%s1 + $0x20] sm:$0xf]
  %v321 = vld [vmem:[%s1 + $0x24] sm:$0xf]
  %v322 = vld [vmem:[%s1 + $0x28] sm:$0xf]
  %v323 = vld [vmem:[%s1 + $0x2c] sm:$0xf]
  %v324 = vld [vmem:[%s1 + $0x30] sm:$0xf]
  %v325 = vld [vmem:[%s1 + $0x34] sm:$0xf]
  %v326 = vld [vmem:[%s1 + $0x38] sm:$0xf]
  %v327 = vld [vmem:[%s1 + $0x3c] sm:$0xf]
  %v328 = vunpack.c.l.bf16 %v312
  %v329 = vunpack.c.l.bf16 %v313
  %v330 = vunpack.c.l.bf16 %v314
  %v331 = vunpack.c.l.bf16 %v315
  %v332 = vunpack.c.l.bf16 %v316
  %v333 = vunpack.c.l.bf16 %v317
  %v334 = vunpack.c.l.bf16 %v318
  %v335 = vunpack.c.l.bf16 %v319
  %v336 = vunpack.c.l.bf16 %v320
  %v337 = vunpack.c.l.bf16 %v321
  %v338 = vunpack.c.l.bf16 %v322
  %v339 = vunpack.c.l.bf16 %v323
  %v340 = vunpack.c.l.bf16 %v324
  %v341 = vunpack.c.l.bf16 %v325
  %v342 = vunpack.c.l.bf16 %v326
  %v343 = vunpack.c.l.bf16 %v327
  %v344 = vxor.u32 %v328, 2147483648
  %v345 = vxor.u32 %v329, 2147483648
  %v346 = vxor.u32 %v330, 2147483648
  %v347 = vxor.u32 %v331, 2147483648
  %v348 = vxor.u32 %v332, 2147483648
  %v349 = vxor.u32 %v333, 2147483648
  %v350 = vxor.u32 %v334, 2147483648
  %v351 = vxor.u32 %v335, 2147483648
  %v352 = vxor.u32 %v336, 2147483648
  %v353 = vxor.u32 %v337, 2147483648
  %v354 = vxor.u32 %v338, 2147483648
  %v355 = vxor.u32 %v339, 2147483648
  %v356 = vxor.u32 %v340, 2147483648
  %v357 = vxor.u32 %v341, 2147483648
  %v358 = vxor.u32 %v342, 2147483648
  %v359 = vxor.u32 %v343, 2147483648
  %v360 = vmul.f32 %v344, 1.442695
  %v361 = vpow.pop %v360
  %v362 = vmul.f32 %v345, 1.442695
  %v363 = vpow.pop %v362
  %v364 = vmul.f32 %v346, 1.442695
  %v365 = vpow.pop %v364
  %v366 = vmul.f32 %v347, 1.442695
  %v367 = vpow.pop %v366
  %v368 = vmul.f32 %v348, 1.442695
  %v369 = vpow.pop %v368
  %v370 = vmul.f32 %v349, 1.442695
  %v371 = vpow.pop %v370
  %v372 = vmul.f32 %v350, 1.442695
  %v373 = vpow.pop %v372
  %v374 = vmul.f32 %v351, 1.442695
  %v375 = vpow.pop %v374
  %v376 = vmul.f32 %v352, 1.442695
  %v377 = vpow.pop %v376
  %v378 = vmul.f32 %v353, 1.442695
  %v379 = vpow.pop %v378
  %v380 = vmul.f32 %v354, 1.442695
  %v381 = vpow.pop %v380
  %v382 = vmul.f32 %v355, 1.442695
  %v383 = vpow.pop %v382
  %v384 = vmul.f32 %v356, 1.442695
  %v385 = vpow.pop %v384
  %v386 = vmul.f32 %v357, 1.442695
  %v387 = vpow.pop %v386
  %v388 = vmul.f32 %v358, 1.442695
  %v389 = vpow.pop %v388
  %v390 = vmul.f32 %v359, 1.442695
  %v391 = vpow.pop %v390
  %v392 = vadd.f32 %v361, 1.0
  %v393 = vadd.f32 %v363, 1.0
  %v394 = vadd.f32 %v365, 1.0
  %v395 = vadd.f32 %v367, 1.0
  %v396 = vadd.f32 %v369, 1.0
  %v397 = vadd.f32 %v371, 1.0
  %v398 = vadd.f32 %v373, 1.0
  %v399 = vadd.f32 %v375, 1.0
  %v400 = vadd.f32 %v377, 1.0
  %v401 = vadd.f32 %v379, 1.0
  %v402 = vadd.f32 %v381, 1.0
  %v403 = vadd.f32 %v383, 1.0
  %v404 = vadd.f32 %v385, 1.0
  %v405 = vadd.f32 %v387, 1.0
  %v406 = vadd.f32 %v389, 1.0
  %v407 = vadd.f32 %v391, 1.0
  %v408 = vrcp.pop %v392
  %v409 = vmul.f32 1.0, %v408
  %v410 = vrcp.pop %v393
  %v411 = vmul.f32 1.0, %v410
  %v412 = vrcp.pop %v394
  %v413 = vmul.f32 1.0, %v412
  %v414 = vrcp.pop %v395
  %v415 = vmul.f32 1.0, %v414
  %v416 = vrcp.pop %v396
  %v417 = vmul.f32 1.0, %v416
  %v418 = vrcp.pop %v397
  %v419 = vmul.f32 1.0, %v418
  %v420 = vrcp.pop %v398
  %v421 = vmul.f32 1.0, %v420
  %v422 = vrcp.pop %v399
  %v423 = vmul.f32 1.0, %v422
  %v424 = vrcp.pop %v400
  %v425 = vmul.f32 1.0, %v424
  %v426 = vrcp.pop %v401
  %v427 = vmul.f32 1.0, %v426
  %v428 = vrcp.pop %v402
  %v429 = vmul.f32 1.0, %v428
  %v430 = vrcp.pop %v403
  %v431 = vmul.f32 1.0, %v430
  %v432 = vrcp.pop %v404
  %v433 = vmul.f32 1.0, %v432
  %v434 = vrcp.pop %v405
  %v435 = vmul.f32 1.0, %v434
  %v436 = vrcp.pop %v406
  %v437 = vmul.f32 1.0, %v436
  %v438 = vrcp.pop %v407
  %v439 = vmul.f32 1.0, %v438
  %v440 = vmul.f32 %v328, %v409
  %v441 = vmul.f32 %v329, %v411
  %v442 = vmul.f32 %v330, %v413
  %v443 = vmul.f32 %v331, %v415
  %v444 = vmul.f32 %v332, %v417
  %v445 = vmul.f32 %v333, %v419
  %v446 = vmul.f32 %v334, %v421
  %v447 = vmul.f32 %v335, %v423
  %v448 = vmul.f32 %v336, %v425
  %v449 = vmul.f32 %v337, %v427
  %v450 = vmul.f32 %v338, %v429
  %v451 = vmul.f32 %v339, %v431
  %v452 = vmul.f32 %v340, %v433
  %v453 = vmul.f32 %v341, %v435
  %v454 = vmul.f32 %v342, %v437
  %v455 = vmul.f32 %v343, %v439
  %v456 = vmul.f32 %v296, %v440
  %v457 = vmul.f32 %v297, %v441
  %v458 = vmul.f32 %v298, %v442
  %v459 = vmul.f32 %v299, %v443
  %v460 = vmul.f32 %v300, %v444
  %v461 = vmul.f32 %v301, %v445
  %v462 = vmul.f32 %v302, %v446
  %v463 = vmul.f32 %v303, %v447
  %v464 = vmul.f32 %v304, %v448
  %v465 = vmul.f32 %v305, %v449
  %v466 = vmul.f32 %v306, %v450
  %v467 = vmul.f32 %v307, %v451
  %v468 = vmul.f32 %v308, %v452
  %v469 = vmul.f32 %v309, %v453
  %v470 = vmul.f32 %v310, %v454
  %v471 = vmul.f32 %v311, %v455
  %v472 = vpack.c.bf16 %v457, %v456
  %v473 = vpack.c.bf16 %v459, %v458
  %v474 = vpack.c.bf16 %v461, %v460
  %v475 = vpack.c.bf16 %v463, %v462
  %v476 = vpack.c.bf16 %v465, %v464
  %v477 = vpack.c.bf16 %v467, %v466
  %v478 = vpack.c.bf16 %v469, %v468
  %v479 = vpack.c.bf16 %v471, %v470
  %v480 = vld [vmem:[%s5] sm:$0xf]
  %v481 = vld [vmem:[%s5 + $0x4] sm:$0xf]
  %v482 = vld [vmem:[%s5 + $0x8] sm:$0xf]
  %v483 = vld [vmem:[%s5 + $0xc] sm:$0xf]
  %v484 = vld [vmem:[%s5 + $0x10] sm:$0xf]
  %v485 = vld [vmem:[%s5 + $0x14] sm:$0xf]
  %v486 = vld [vmem:[%s5 + $0x18] sm:$0xf]
  %v487 = vld [vmem:[%s5 + $0x1c] sm:$0xf]
  %v496 = vunpack.c.l.b16 %v480
  %v497 = vunpack.c.l.b16 %v481
  %v498 = vunpack.c.l.b16 %v482
  %v499 = vunpack.c.l.b16 %v483
  %v500 = vunpack.c.l.b16 %v484
  %v501 = vunpack.c.l.b16 %v485
  %v502 = vunpack.c.l.b16 %v486
  %v503 = vunpack.c.l.b16 %v487
  %v504 = vpack.c.b16 %v497, %v496
  %v505 = vpack.c.b16 %v499, %v498
  %v506 = vpack.c.b16 %v501, %v500
  %v507 = vpack.c.b16 %v503, %v502
  %v513 = vsel %vm56, %v472, 0
  %v516 = vsel %vm56, %v473, 0
  %v519 = vsel %vm56, %v474, 0
  %v522 = vsel %vm56, %v475, 0
  %v525 = vsel %vm56, %v476, 0
  %v528 = vsel %vm56, %v477, 0
  %v531 = vsel %vm56, %v478, 0
  %v534 = vsel %vm56, %v479, 0
  %536 = vmatprep.subr.bf16.mxu0 0
  %537 = vmatpush1.bf16.msra.mxu0 0
  %538 = vmatprep.subr.bf16.mxu0 0
  %539 = vmatpush1.bf16.msra.mxu0 0
  %540 = vmatprep.subr.bf16.mxu0 0
  %541 = vmatpush1.bf16.msra.mxu0 0
  %542 = vmatprep.subr.bf16.mxu0 0
  %543 = vmatpush1.bf16.msra.mxu0 0
  %544 = vmatprep.subr.bf16.mxu0 0
  %545 = vmatpush1.bf16.msra.mxu0 %v507
  %546 = vmatprep.subr.bf16.mxu0 0
  %547 = vmatpush1.bf16.msra.mxu0 %v506
  %548 = vmatprep.subr.bf16.mxu0 0
  %549 = vmatpush1.bf16.msra.mxu0 %v505
  %550 = vmatprep.subr.bf16.mxu0 0
  %551 = vmatpush1.bf16.msra.mxu0 %v504
  %552 = vmatprep.subr.bf16.mxu0 0
  %553 = vmatpush2.bf16.msra.mxu0 0
  %554 = vmatprep.subr.bf16.mxu0 0
  %555 = vmatpush2.bf16.msra.mxu0 0
  %556 = vmatprep.subr.bf16.mxu0 0
  %557 = vmatpush2.bf16.msra.mxu0 0
  %558 = vmatprep.subr.bf16.mxu0 0
  %559 = vmatpush2.bf16.msra.mxu0 0
  %560 = vmatprep.subr.bf16.mxu0 0
  %561 = vmatpush2.bf16.msra.mxu0 0
  %562 = vmatprep.subr.bf16.mxu0 0
  %563 = vmatpush2.bf16.msra.mxu0 0
  %564 = vmatprep.subr.bf16.mxu0 0
  %565 = vmatpush2.bf16.msra.mxu0 0
  %566 = vmatprep.subr.bf16.mxu0 0
  %567 = vmatpush2.bf16.msra.mxu0 0
  %568 = vmatprep.mubr.bf16.mxu0 0
  %569 = vmatmul.mubr.bf16.gmra.mxu0 %v513
  %v570 = vpop.f32.mrf.mxu0
  %v571 = vadd.f32 0.0, %v570
  %v572 = vpop.f32.mrf.mxu0
  %v573 = vpop.f32.mrf.mxu0
  %v574 = vadd.f32 0.0, %v573
  %v575 = vpop.f32.mrf.mxu0
  %576 = vmatprep.mubr.bf16.mxu0 0
  %577 = vmatmul.mubr.bf16.gmra.mxu0 %v516
  %v578 = vpop.f32.mrf.mxu0
  %v579 = vadd.f32 0.0, %v578
  %v580 = vpop.f32.mrf.mxu0
  %v581 = vpop.f32.mrf.mxu0
  %v582 = vadd.f32 0.0, %v581
  %v583 = vpop.f32.mrf.mxu0
  %584 = vmatprep.mubr.bf16.mxu0 0
  %585 = vmatmul.mubr.bf16.gmra.mxu0 %v519
  %v586 = vpop.f32.mrf.mxu0
  %v587 = vadd.f32 0.0, %v586
  %v588 = vpop.f32.mrf.mxu0
  %v589 = vpop.f32.mrf.mxu0
  %v590 = vadd.f32 0.0, %v589
  %v591 = vpop.f32.mrf.mxu0
  %592 = vmatprep.mubr.bf16.mxu0 0
  %593 = vmatmul.mubr.bf16.gmra.mxu0 %v522
  %v594 = vpop.f32.mrf.mxu0
  %v595 = vadd.f32 0.0, %v594
  %v596 = vpop.f32.mrf.mxu0
  %v597 = vpop.f32.mrf.mxu0
  %v598 = vadd.f32 0.0, %v597
  %v599 = vpop.f32.mrf.mxu0
  %600 = vmatprep.mubr.bf16.mxu0 0
  %601 = vmatmul.mubr.bf16.gmra.mxu0 %v525
  %v602 = vpop.f32.mrf.mxu0
  %v603 = vadd.f32 0.0, %v602
  %v604 = vpop.f32.mrf.mxu0
  %v605 = vpop.f32.mrf.mxu0
  %v606 = vadd.f32 0.0, %v605
  %v607 = vpop.f32.mrf.mxu0
  %608 = vmatprep.mubr.bf16.mxu0 0
  %609 = vmatmul.mubr.bf16.gmra.mxu0 %v528
  %v610 = vpop.f32.mrf.mxu0
  %v611 = vadd.f32 0.0, %v610
  %v612 = vpop.f32.mrf.mxu0
  %v613 = vpop.f32.mrf.mxu0
  %v614 = vadd.f32 0.0, %v613
  %v615 = vpop.f32.mrf.mxu0
  %616 = vmatprep.mubr.bf16.mxu0 0
  %617 = vmatmul.mubr.bf16.gmra.mxu0 %v531
  %v618 = vpop.f32.mrf.mxu0
  %v619 = vadd.f32 0.0, %v618
  %v620 = vpop.f32.mrf.mxu0
  %v621 = vpop.f32.mrf.mxu0
  %v622 = vadd.f32 0.0, %v621
  %v623 = vpop.f32.mrf.mxu0
  %624 = vmatprep.mubr.bf16.mxu0 0
  %625 = vmatmul.mubr.bf16.gmra.mxu0 %v534
  %v626 = vpop.f32.mrf.mxu0
  %v627 = vadd.f32 0.0, %v626
  %v628 = vpop.f32.mrf.mxu0
  %v629 = vpop.f32.mrf.mxu0
  %v630 = vadd.f32 0.0, %v629
  %v631 = vpop.f32.mrf.mxu0
  %632 = vdwg.mxu0
  %v633 = vld [vmem:[%s2] sm:$0xff]
  %v634 = vld [vmem:[%s2 + $0x8] sm:$0xff]
  %v635 = vld [vmem:[%s2 + $0x10] sm:$0xff]
  %v636 = vld [vmem:[%s2 + $0x18] sm:$0xff]
  %v637 = vld [vmem:[%s2 + $0x20] sm:$0xff]
  %v638 = vld [vmem:[%s2 + $0x28] sm:$0xff]
  %v639 = vld [vmem:[%s2 + $0x30] sm:$0xff]
  %v640 = vld [vmem:[%s2 + $0x38] sm:$0xff]
  %v641 = vld [vmem:[%s2 + $0x40] sm:$0xff]
  %v642 = vld [vmem:[%s2 + $0x48] sm:$0xff]
  %v643 = vld [vmem:[%s2 + $0x50] sm:$0xff]
  %v644 = vld [vmem:[%s2 + $0x58] sm:$0xff]
  %v645 = vld [vmem:[%s2 + $0x60] sm:$0xff]
  %v646 = vld [vmem:[%s2 + $0x68] sm:$0xff]
  %v647 = vld [vmem:[%s2 + $0x70] sm:$0xff]
  %v648 = vld [vmem:[%s2 + $0x78] sm:$0xff]
  %v649 = vadd.f32 %v633, %v571
  %v650 = vadd.f32 %v634, %v574
  %v651 = vadd.f32 %v635, %v579
  %v652 = vadd.f32 %v636, %v582
  %v653 = vadd.f32 %v637, %v587
  %v654 = vadd.f32 %v638, %v590
  %v655 = vadd.f32 %v639, %v595
  %v656 = vadd.f32 %v640, %v598
  %v657 = vadd.f32 %v641, %v603
  %v658 = vadd.f32 %v642, %v606
  %v659 = vadd.f32 %v643, %v611
  %v660 = vadd.f32 %v644, %v614
  %v661 = vadd.f32 %v645, %v619
  %v662 = vadd.f32 %v646, %v622
  %v663 = vadd.f32 %v647, %v627
  %v664 = vadd.f32 %v648, %v630
  %vm665 = vcmask 261120
  %666 = vst.msk [vmem:[%s6] sm:$0xff] %vm665, %v649
  %667 = vst.msk [vmem:[%s6 + $0x8] sm:$0xff] %vm665, %v650
  %668 = vst.msk [vmem:[%s6 + $0x10] sm:$0xff] %vm665, %v651
  %669 = vst.msk [vmem:[%s6 + $0x18] sm:$0xff] %vm665, %v652
  %670 = vst.msk [vmem:[%s6 + $0x20] sm:$0xff] %vm665, %v653
  %671 = vst.msk [vmem:[%s6 + $0x28] sm:$0xff] %vm665, %v654
  %672 = vst.msk [vmem:[%s6 + $0x30] sm:$0xff] %vm665, %v655
  %673 = vst.msk [vmem:[%s6 + $0x38] sm:$0xff] %vm665, %v656
  %674 = vst.msk [vmem:[%s6 + $0x40] sm:$0xff] %vm665, %v657
  %675 = vst.msk [vmem:[%s6 + $0x48] sm:$0xff] %vm665, %v658
  %676 = vst.msk [vmem:[%s6 + $0x50] sm:$0xff] %vm665, %v659
  %677 = vst.msk [vmem:[%s6 + $0x58] sm:$0xff] %vm665, %v660
  %678 = vst.msk [vmem:[%s6 + $0x60] sm:$0xff] %vm665, %v661
  %679 = vst.msk [vmem:[%s6 + $0x68] sm:$0xff] %vm665, %v662
  %680 = vst.msk [vmem:[%s6 + $0x70] sm:$0xff] %vm665, %v663
  %681 = vst.msk [vmem:[%s6 + $0x78] sm:$0xff] %vm665, %v664
  // Predicated region
  $region26: #{vss_layer.14} parent=0 // pred_check
    _
  $region27: #{vss_layer.14} parent=0 // pred_check_branch
    %683 = sbr.rel (0) target = $region29
  $region28: #{vss_layer.14} parent=0 // pred_region
    _
  $region29: #{vss_layer.14} parent=0 // pred_fallthru
    _
  // Predicated region
  $region30: #{vss_layer.14} parent=0 // pred_check
    _
  $region31: #{vss_layer.14} parent=0 // pred_check_branch
    %685 = sbr.rel (0) target = $region33
  $region32: #{vss_layer.14} parent=0 // pred_region
    _
  $region33: #{vss_layer.14} parent=0 // pred_fallthru
    _

</llo_original>
